<compile_context>
chip_gen: v7x
topology: tpu7x:2x2x1
jax: 0.10.0
libtpu: 0.0.40
codegen_flags: <defaults>
</compile_context>

<pallas_src>
import jax
import jax.numpy as jnp
import numpy as np
from jax import lax
from jax.experimental import pallas as pl
from jax.experimental.pallas import tpu as pltpu

# ----------------------------- hyperparameters ------------------------------
NMELS = 32
HIDDEN = 32
NUM_LAYER = 3
PROJ = 16

BATCH = 2
SEQ = 8

BP = 8          # batch rows padded to one sublane group
_EPS = 1e-12


# --------------------------- parameter slab layout ---------------------------
def _slab_offsets(num_layers, d_in, hidden):
    """Static, 8-row-aligned offsets of each parameter block in the packed slab."""
    offs, r = {}, 0
    offs["wih0"], r = r, r + d_in            # (d_in, 4H)
    offs["whh0"], r = r, r + hidden          # (H,    4H)
    offs["b0"], r = r, r + 8                 # (1,    4H) padded to 8 rows
    for l in range(1, num_layers):
        offs[f"wcat{l}"], r = r, r + 2 * hidden   # [W_ih ; W_hh]  (2H, 4H)
        offs[f"b{l}"], r = r, r + 8
    offs["wproj"], r = r, r + hidden         # (H, 4H); cols >= P are zero
    offs["bproj"], r = r, r + 8              # (1, 4H); cols >= P are zero
    return offs, r


def _pack_slab(params, hidden, proj):
    """Pack all parameters into one (rows, 4H) f32 slab (single DMA)."""
    G = 4 * hidden

    def pad_rows(a, rows):
        return jnp.pad(a, ((0, rows - a.shape[0]), (0, 0)))

    l0 = params["lstm"][0]
    blocks = [l0["w_ih_t"], l0["w_hh_t"], pad_rows(l0["bias"], 8)]
    for layer in params["lstm"][1:]:
        blocks.append(jnp.concatenate([layer["w_ih_t"], layer["w_hh_t"]], axis=0))
        blocks.append(pad_rows(layer["bias"], 8))
    blocks.append(jnp.pad(params["w_proj_t"], ((0, 0), (0, G - proj))))       # (H, G)
    blocks.append(jnp.pad(params["b_proj"], ((0, 7), (0, G - proj))))         # (8, G)
    return jnp.concatenate(blocks, axis=0).astype(jnp.float32)


# ------------------------------ Pallas kernel -------------------------------
def make_embedder_kernel(num_layers, T, bp, D, H, offs):
    """Fused kernel for fixed (static) layer count and shapes."""
    G = 4 * H

    def kernel(x_ref, w_ref, out_ref):
        # ---- parameter slab (static, 8-row-aligned slices; loaded once) ----
        wih0 = w_ref[offs["wih0"]:offs["wih0"] + D, :]            # (D, 4H)
        whh0 = w_ref[offs["whh0"]:offs["whh0"] + H, :]            # (H, 4H)
        b0 = w_ref[offs["b0"]:offs["b0"] + 1, :]                  # (1, 4H)
        wcat = [whh0]
        bias = [None]
        for l in range(1, num_layers):
            wcat.append(w_ref[offs[f"wcat{l}"]:offs[f"wcat{l}"] + 2 * H, :])  # (2H, 4H)
            bl = w_ref[offs[f"b{l}"]:offs[f"b{l}"] + 1, :]
            bias.append(jnp.broadcast_to(bl, (bp, G)))            # hoisted broadcast
        wproj = w_ref[offs["wproj"]:offs["wproj"] + H, :]         # (H, 128), cols >= P are 0
        bproj = w_ref[offs["bproj"]:offs["bproj"] + 1, :]         # (1, 128), cols >= P are 0

        # ---- layer-0 input contribution hoisted over the whole sequence ----
        # One (T*BP, D) @ (D, 4H) MXU op + one bias broadcast. Each per-step
        # slice below is an exact (8, 128) tile (BP == 8 sublanes), so no
        # sublane shuffles ever touch the recurrent path.
        z_in0 = jnp.dot(x_ref[...], wih0, preferred_element_type=jnp.float32) + b0

        h = [jnp.zeros((bp, H), jnp.float32) for _ in range(num_layers)]
        c = [jnp.zeros((bp, H), jnp.float32) for _ in range(num_layers)]

        # ---- (layer, time) wavefront, fully unrolled (T is small & static) ----
        # TODO(synk): at production T/H, replace the full unroll with a time
        # grid axis (h, c carried in VMEM scratch, axis "arbitrary"), add a
        # batch grid axis with dimension_semantics=("parallel", ...) to use
        # both v7x TensorCores, cast weights to bf16 on v6e/v7x (keep gate math
        # and c in f32 for v5e), and re-derive the time tile for v7x's 64 MiB
        # VMEM via pltpu.CompilerParams(vmem_limit_bytes=...).
        for t in range(T):
            for l in range(num_layers):
                if l == 0:
                    z = z_in0[t * bp:(t + 1) * bp, :] + jnp.dot(
                        h[0], whh0, preferred_element_type=jnp.float32)
                else:
                    # fused input + recurrent matmul on [x_t, h_{t-1}]
                    cat = jnp.concatenate([h[l - 1], h[l]], axis=1)        # (BP, 2H)
                    z = jnp.dot(cat, wcat[l],
                                preferred_element_type=jnp.float32) + bias[l]
                # two full-width (128-lane) nonlinearities, PyTorch gate order i,f,g,o
                sig = jax.nn.sigmoid(z)
                th = jnp.tanh(z)
                i_g = sig[:, 0 * H:1 * H]
                f_g = sig[:, 1 * H:2 * H]
                g_g = th[:, 2 * H:3 * H]
                o_g = sig[:, 3 * H:4 * H]
                c[l] = f_g * c[l] + i_g * g_g
                h[l] = o_g * jnp.tanh(c[l])

        # ---- projection of the last timestep + L2 normalize ----
        zp = jnp.dot(h[num_layers - 1], wproj,
                     preferred_element_type=jnp.float32) + bproj           # (BP, 128)
        # cols >= P have zero weight and bias, so the full-lane sum is exact.
        inv = lax.rsqrt(jnp.sum(zp * zp, axis=1, keepdims=True) + _EPS)
        out_ref[...] = zp * inv                                            # lane-dense store

    return kernel


# --------------------------------- wrapper ----------------------------------
@jax.jit
def speech_embedder_forward(x, params):
    """x: (B, T, NMELS) batch-first, like the PyTorch module. Returns (B, PROJ)."""
    x = x.astype(jnp.float32)
    B, T, D = x.shape
    num_layers = len(params["lstm"])
    H = params["lstm"][0]["w_hh_t"].shape[0]
    P = params["w_proj_t"].shape[1]
    G = 4 * H
    assert B <= BP and D % 8 == 0 and H % 8 == 0 and G % 128 == 0 and P <= G

    # time-major, batch rows padded to one sublane group, flattened to 2-D so
    # timestep t occupies rows [t*BP, (t+1)*BP) -- no in-kernel reshape needed.
    x_t = jnp.transpose(x, (1, 0, 2))                     # (T, B, D)
    x_t = jnp.pad(x_t, ((0, 0), (0, BP - B), (0, 0)))     # (T, BP, D)
    x2d = x_t.reshape(T * BP, D)

    offs, rows = _slab_offsets(num_layers, D, H)
    slab = _pack_slab(params, H, P)
    assert slab.shape == (rows, G)

    vmem = pl.BlockSpec(memory_space=pltpu.MemorySpace.VMEM)
    kernel = make_embedder_kernel(num_layers, T, BP, D, H, offs)
    out = pl.pallas_call(
        kernel,
        out_shape=jax.ShapeDtypeStruct((BP, G), jnp.float32),
        in_specs=[vmem, vmem],
        out_specs=vmem,
    )(x2d, slab)
    return out[:B, :P]


# --------------------------- parameter construction --------------------------
def xavier_normal(key, shape):
    fan_out, fan_in = shape
    std = np.sqrt(2.0 / (fan_in + fan_out))
    return jax.random.normal(key, shape, jnp.float32) * std


def make_params(key):
    params = {"lstm": []}
    for l in range(NUM_LAYER):
        d_in = NMELS if l == 0 else HIDDEN
        key, k1, k2 = jax.random.split(key, 3)
        w_ih = xavier_normal(k1, (4 * HIDDEN, d_in))    # PyTorch weight_ih_l{l}
        w_hh = xavier_normal(k2, (4 * HIDDEN, HIDDEN))  # PyTorch weight_hh_l{l}
        # biases are nn.init.constant_(0.0) in the module; for a real checkpoint
        # this row must be bias_ih_l{l} + bias_hh_l{l}.
        bias = jnp.zeros((1, 4 * HIDDEN), jnp.float32)
        params["lstm"].append({"w_ih_t": w_ih.T, "w_hh_t": w_hh.T, "bias": bias})
    key, kp = jax.random.split(key)
    w_proj = xavier_normal(kp, (PROJ, HIDDEN))  # deterministic synthetic init
    params["w_proj_t"] = w_proj.T
    params["b_proj"] = jnp.zeros((1, PROJ), jnp.float32)
    return params


# ------------------------------ pure-JAX reference ---------------------------
def reference_forward(x, params):
    x = x.astype(jnp.float32)
    B, T, _ = x.shape
    h_seq = x
    for layer in params["lstm"]:
        w_ih_t, w_hh_t, bias = layer["w_ih_t"], layer["w_hh_t"], layer["bias"]
        H = w_hh_t.shape[0]
        h = jnp.zeros((B, H), jnp.float32)
        c = jnp.zeros((B, H), jnp.float32)
        outs = []
        for t in range(T):
            z = h_seq[:, t] @ w_ih_t + h @ w_hh_t + bias
            i = jax.nn.sigmoid(z[:, 0 * H:1 * H])
            f = jax.nn.sigmoid(z[:, 1 * H:2 * H])
            g = jnp.tanh(z[:, 2 * H:3 * H])
            o = jax.nn.sigmoid(z[:, 3 * H:4 * H])
            c = f * c + i * g
            h = o * jnp.tanh(c)
            outs.append(h)
        h_seq = jnp.stack(outs, axis=1)
    z = h_seq[:, -1] @ params["w_proj_t"] + params["b_proj"]
    return z / jnp.linalg.norm(z, axis=1, keepdims=True)


# ----------------------------------- main ------------------------------------
if __name__ == "__main__":
    key = jax.random.PRNGKey(0)
    key, kx, kp = jax.random.split(key, 3)
    x = jax.random.normal(kx, (BATCH, SEQ, NMELS), jnp.float32)
    params = make_params(kp)

    out = speech_embedder_forward(x, params)
    out = jax.block_until_ready(out)

    ref = reference_forward(x, params)
    assert out.shape == (BATCH, PROJ)
    np.testing.assert_allclose(np.asarray(out), np.asarray(ref), atol=1e-4, rtol=1e-4)

    print("KERNEL_OK")
</pallas_src>

<mosaic_0001>
module attributes {stable_mosaic.version = 11 : i64} {
  func.func @kernel(%arg0: memref<64x32xf32, #tpu.memory_space<vmem>>, %arg1: memref<256x128xf32, #tpu.memory_space<vmem>>, %arg2: memref<8x128xf32, #tpu.memory_space<vmem>>) attributes {dimension_semantics = [], scalar_prefetch = 0 : i64, scratch_operands = 0 : i64, tpu.core_type = #tpu.core_type<tc>} {
    %c0 = arith.constant 0 : index
    %c0_0 = arith.constant 0 : index
    %0 = vector.load %arg1[%c0, %c0_0] : memref<256x128xf32, #tpu.memory_space<vmem>>, vector<32x128xf32>
    %c32 = arith.constant 32 : index
    %c0_1 = arith.constant 0 : index
    %1 = vector.load %arg1[%c32, %c0_1] : memref<256x128xf32, #tpu.memory_space<vmem>>, vector<32x128xf32>
    %c64 = arith.constant 64 : index
    %c0_2 = arith.constant 0 : index
    %2 = vector.load %arg1[%c64, %c0_2] : memref<256x128xf32, #tpu.memory_space<vmem>>, vector<1x128xf32>
    %c72 = arith.constant 72 : index
    %c0_3 = arith.constant 0 : index
    %3 = vector.load %arg1[%c72, %c0_3] : memref<256x128xf32, #tpu.memory_space<vmem>>, vector<64x128xf32>
    %c136 = arith.constant 136 : index
    %c0_4 = arith.constant 0 : index
    %4 = vector.load %arg1[%c136, %c0_4] : memref<256x128xf32, #tpu.memory_space<vmem>>, vector<1x128xf32>
    %5 = vector.shape_cast %4 : vector<1x128xf32> to vector<1x128xf32>
    %6 = vector.broadcast %5 : vector<1x128xf32> to vector<8x128xf32>
    %c144 = arith.constant 144 : index
    %c0_5 = arith.constant 0 : index
    %7 = vector.load %arg1[%c144, %c0_5] : memref<256x128xf32, #tpu.memory_space<vmem>>, vector<64x128xf32>
    %c208 = arith.constant 208 : index
    %c0_6 = arith.constant 0 : index
    %8 = vector.load %arg1[%c208, %c0_6] : memref<256x128xf32, #tpu.memory_space<vmem>>, vector<1x128xf32>
    %9 = vector.shape_cast %8 : vector<1x128xf32> to vector<1x128xf32>
    %10 = vector.broadcast %9 : vector<1x128xf32> to vector<8x128xf32>
    %c216 = arith.constant 216 : index
    %c0_7 = arith.constant 0 : index
    %11 = vector.load %arg1[%c216, %c0_7] : memref<256x128xf32, #tpu.memory_space<vmem>>, vector<32x128xf32>
    %c248 = arith.constant 248 : index
    %c0_8 = arith.constant 0 : index
    %12 = vector.load %arg1[%c248, %c0_8] : memref<256x128xf32, #tpu.memory_space<vmem>>, vector<1x128xf32>
    %c0_9 = arith.constant 0 : index
    %c0_10 = arith.constant 0 : index
    %13 = vector.load %arg0[%c0_9, %c0_10] : memref<64x32xf32, #tpu.memory_space<vmem>>, vector<64x32xf32>
    %cst = arith.constant dense<0.000000e+00> : vector<64x128xf32>
    %14 = tpu.matmul %13, %0, %cst {dimension_numbers = #tpu.dot_dimension_numbers<[1], [0], [0], [1], [0, 0, 1, 1], [], []>} : vector<64x32xf32>, vector<32x128xf32>, vector<64x128xf32> -> vector<64x128xf32>
    %15 = vector.broadcast %2 : vector<1x128xf32> to vector<64x128xf32>
    %16 = arith.addf %14, %15 : vector<64x128xf32>
    %cst_11 = arith.constant 0.000000e+00 : f32
    %17 = vector.broadcast %cst_11 : f32 to vector<8x32xf32>
    %cst_12 = arith.constant 0.000000e+00 : f32
    %18 = vector.broadcast %cst_12 : f32 to vector<8x32xf32>
    %cst_13 = arith.constant 0.000000e+00 : f32
    %19 = vector.broadcast %cst_13 : f32 to vector<8x32xf32>
    %cst_14 = arith.constant 0.000000e+00 : f32
    %20 = vector.broadcast %cst_14 : f32 to vector<8x32xf32>
    %cst_15 = arith.constant 0.000000e+00 : f32
    %21 = vector.broadcast %cst_15 : f32 to vector<8x32xf32>
    %cst_16 = arith.constant 0.000000e+00 : f32
    %22 = vector.broadcast %cst_16 : f32 to vector<8x32xf32>
    %23 = vector.extract_strided_slice %16 {offsets = [0, 0], sizes = [8, 128], strides = [1, 1]} : vector<64x128xf32> to vector<8x128xf32>
    %cst_17 = arith.constant dense<0.000000e+00> : vector<8x128xf32>
    %24 = tpu.matmul %17, %1, %cst_17 {dimension_numbers = #tpu.dot_dimension_numbers<[1], [0], [0], [1], [0, 0, 1, 1], [], []>} : vector<8x32xf32>, vector<32x128xf32>, vector<8x128xf32> -> vector<8x128xf32>
    %25 = arith.addf %23, %24 : vector<8x128xf32>
    %26 = arith.negf %25 : vector<8x128xf32>
    %27 = math.exp %26 : vector<8x128xf32>
    %cst_18 = arith.constant 1.000000e+00 : f32
    %28 = vector.broadcast %cst_18 : f32 to vector<8x128xf32>
    %29 = arith.addf %28, %27 : vector<8x128xf32>
    %30 = arith.divf %28, %29 : vector<8x128xf32>
    %31 = math.tanh %25 : vector<8x128xf32>
    %32 = vector.extract_strided_slice %30 {offsets = [0, 0], sizes = [8, 32], strides = [1, 1]} : vector<8x128xf32> to vector<8x32xf32>
    %33 = vector.extract_strided_slice %30 {offsets = [0, 32], sizes = [8, 32], strides = [1, 1]} : vector<8x128xf32> to vector<8x32xf32>
    %34 = vector.extract_strided_slice %31 {offsets = [0, 64], sizes = [8, 32], strides = [1, 1]} : vector<8x128xf32> to vector<8x32xf32>
    %35 = vector.extract_strided_slice %30 {offsets = [0, 96], sizes = [8, 32], strides = [1, 1]} : vector<8x128xf32> to vector<8x32xf32>
    %36 = arith.mulf %33, %20 : vector<8x32xf32>
    %37 = arith.mulf %32, %34 : vector<8x32xf32>
    %38 = arith.addf %36, %37 : vector<8x32xf32>
    %39 = math.tanh %38 : vector<8x32xf32>
    %40 = arith.mulf %35, %39 : vector<8x32xf32>
    %41 = tpu.concatenate %40, %18 in 1 : vector<8x32xf32>, vector<8x32xf32> -> vector<8x64xf32>
    %cst_19 = arith.constant dense<0.000000e+00> : vector<8x128xf32>
    %42 = tpu.matmul %41, %3, %cst_19 {dimension_numbers = #tpu.dot_dimension_numbers<[1], [0], [0], [1], [0, 0, 1, 1], [], []>} : vector<8x64xf32>, vector<64x128xf32>, vector<8x128xf32> -> vector<8x128xf32>
    %43 = arith.addf %42, %6 : vector<8x128xf32>
    %44 = arith.negf %43 : vector<8x128xf32>
    %45 = math.exp %44 : vector<8x128xf32>
    %cst_20 = arith.constant 1.000000e+00 : f32
    %46 = vector.broadcast %cst_20 : f32 to vector<8x128xf32>
    %47 = arith.addf %46, %45 : vector<8x128xf32>
    %48 = arith.divf %46, %47 : vector<8x128xf32>
    %49 = math.tanh %43 : vector<8x128xf32>
    %50 = vector.extract_strided_slice %48 {offsets = [0, 0], sizes = [8, 32], strides = [1, 1]} : vector<8x128xf32> to vector<8x32xf32>
    %51 = vector.extract_strided_slice %48 {offsets = [0, 32], sizes = [8, 32], strides = [1, 1]} : vector<8x128xf32> to vector<8x32xf32>
    %52 = vector.extract_strided_slice %49 {offsets = [0, 64], sizes = [8, 32], strides = [1, 1]} : vector<8x128xf32> to vector<8x32xf32>
    %53 = vector.extract_strided_slice %48 {offsets = [0, 96], sizes = [8, 32], strides = [1, 1]} : vector<8x128xf32> to vector<8x32xf32>
    %54 = arith.mulf %51, %21 : vector<8x32xf32>
    %55 = arith.mulf %50, %52 : vector<8x32xf32>
    %56 = arith.addf %54, %55 : vector<8x32xf32>
    %57 = math.tanh %56 : vector<8x32xf32>
    %58 = arith.mulf %53, %57 : vector<8x32xf32>
    %59 = tpu.concatenate %58, %19 in 1 : vector<8x32xf32>, vector<8x32xf32> -> vector<8x64xf32>
    %cst_21 = arith.constant dense<0.000000e+00> : vector<8x128xf32>
    %60 = tpu.matmul %59, %7, %cst_21 {dimension_numbers = #tpu.dot_dimension_numbers<[1], [0], [0], [1], [0, 0, 1, 1], [], []>} : vector<8x64xf32>, vector<64x128xf32>, vector<8x128xf32> -> vector<8x128xf32>
    %61 = arith.addf %60, %10 : vector<8x128xf32>
    %62 = arith.negf %61 : vector<8x128xf32>
    %63 = math.exp %62 : vector<8x128xf32>
    %cst_22 = arith.constant 1.000000e+00 : f32
    %64 = vector.broadcast %cst_22 : f32 to vector<8x128xf32>
    %65 = arith.addf %64, %63 : vector<8x128xf32>
    %66 = arith.divf %64, %65 : vector<8x128xf32>
    %67 = math.tanh %61 : vector<8x128xf32>
    %68 = vector.extract_strided_slice %66 {offsets = [0, 0], sizes = [8, 32], strides = [1, 1]} : vector<8x128xf32> to vector<8x32xf32>
    %69 = vector.extract_strided_slice %66 {offsets = [0, 32], sizes = [8, 32], strides = [1, 1]} : vector<8x128xf32> to vector<8x32xf32>
    %70 = vector.extract_strided_slice %67 {offsets = [0, 64], sizes = [8, 32], strides = [1, 1]} : vector<8x128xf32> to vector<8x32xf32>
    %71 = vector.extract_strided_slice %66 {offsets = [0, 96], sizes = [8, 32], strides = [1, 1]} : vector<8x128xf32> to vector<8x32xf32>
    %72 = arith.mulf %69, %22 : vector<8x32xf32>
    %73 = arith.mulf %68, %70 : vector<8x32xf32>
    %74 = arith.addf %72, %73 : vector<8x32xf32>
    %75 = math.tanh %74 : vector<8x32xf32>
    %76 = arith.mulf %71, %75 : vector<8x32xf32>
    %77 = vector.extract_strided_slice %16 {offsets = [8, 0], sizes = [8, 128], strides = [1, 1]} : vector<64x128xf32> to vector<8x128xf32>
    %cst_23 = arith.constant dense<0.000000e+00> : vector<8x128xf32>
    %78 = tpu.matmul %40, %1, %cst_23 {dimension_numbers = #tpu.dot_dimension_numbers<[1], [0], [0], [1], [0, 0, 1, 1], [], []>} : vector<8x32xf32>, vector<32x128xf32>, vector<8x128xf32> -> vector<8x128xf32>
    %79 = arith.addf %77, %78 : vector<8x128xf32>
    %80 = arith.negf %79 : vector<8x128xf32>
    %81 = math.exp %80 : vector<8x128xf32>
    %cst_24 = arith.constant 1.000000e+00 : f32
    %82 = vector.broadcast %cst_24 : f32 to vector<8x128xf32>
    %83 = arith.addf %82, %81 : vector<8x128xf32>
    %84 = arith.divf %82, %83 : vector<8x128xf32>
    %85 = math.tanh %79 : vector<8x128xf32>
    %86 = vector.extract_strided_slice %84 {offsets = [0, 0], sizes = [8, 32], strides = [1, 1]} : vector<8x128xf32> to vector<8x32xf32>
    %87 = vector.extract_strided_slice %84 {offsets = [0, 32], sizes = [8, 32], strides = [1, 1]} : vector<8x128xf32> to vector<8x32xf32>
    %88 = vector.extract_strided_slice %85 {offsets = [0, 64], sizes = [8, 32], strides = [1, 1]} : vector<8x128xf32> to vector<8x32xf32>
    %89 = vector.extract_strided_slice %84 {offsets = [0, 96], sizes = [8, 32], strides = [1, 1]} : vector<8x128xf32> to vector<8x32xf32>
    %90 = arith.mulf %87, %38 : vector<8x32xf32>
    %91 = arith.mulf %86, %88 : vector<8x32xf32>
    %92 = arith.addf %90, %91 : vector<8x32xf32>
    %93 = math.tanh %92 : vector<8x32xf32>
    %94 = arith.mulf %89, %93 : vector<8x32xf32>
    %95 = tpu.concatenate %94, %58 in 1 : vector<8x32xf32>, vector<8x32xf32> -> vector<8x64xf32>
    %cst_25 = arith.constant dense<0.000000e+00> : vector<8x128xf32>
    %96 = tpu.matmul %95, %3, %cst_25 {dimension_numbers = #tpu.dot_dimension_numbers<[1], [0], [0], [1], [0, 0, 1, 1], [], []>} : vector<8x64xf32>, vector<64x128xf32>, vector<8x128xf32> -> vector<8x128xf32>
    %97 = arith.addf %96, %6 : vector<8x128xf32>
    %98 = arith.negf %97 : vector<8x128xf32>
    %99 = math.exp %98 : vector<8x128xf32>
    %cst_26 = arith.constant 1.000000e+00 : f32
    %100 = vector.broadcast %cst_26 : f32 to vector<8x128xf32>
    %101 = arith.addf %100, %99 : vector<8x128xf32>
    %102 = arith.divf %100, %101 : vector<8x128xf32>
    %103 = math.tanh %97 : vector<8x128xf32>
    %104 = vector.extract_strided_slice %102 {offsets = [0, 0], sizes = [8, 32], strides = [1, 1]} : vector<8x128xf32> to vector<8x32xf32>
    %105 = vector.extract_strided_slice %102 {offsets = [0, 32], sizes = [8, 32], strides = [1, 1]} : vector<8x128xf32> to vector<8x32xf32>
    %106 = vector.extract_strided_slice %103 {offsets = [0, 64], sizes = [8, 32], strides = [1, 1]} : vector<8x128xf32> to vector<8x32xf32>
    %107 = vector.extract_strided_slice %102 {offsets = [0, 96], sizes = [8, 32], strides = [1, 1]} : vector<8x128xf32> to vector<8x32xf32>
    %108 = arith.mulf %105, %56 : vector<8x32xf32>
    %109 = arith.mulf %104, %106 : vector<8x32xf32>
    %110 = arith.addf %108, %109 : vector<8x32xf32>
    %111 = math.tanh %110 : vector<8x32xf32>
    %112 = arith.mulf %107, %111 : vector<8x32xf32>
    %113 = tpu.concatenate %112, %76 in 1 : vector<8x32xf32>, vector<8x32xf32> -> vector<8x64xf32>
    %cst_27 = arith.constant dense<0.000000e+00> : vector<8x128xf32>
    %114 = tpu.matmul %113, %7, %cst_27 {dimension_numbers = #tpu.dot_dimension_numbers<[1], [0], [0], [1], [0, 0, 1, 1], [], []>} : vector<8x64xf32>, vector<64x128xf32>, vector<8x128xf32> -> vector<8x128xf32>
    %115 = arith.addf %114, %10 : vector<8x128xf32>
    %116 = arith.negf %115 : vector<8x128xf32>
    %117 = math.exp %116 : vector<8x128xf32>
    %cst_28 = arith.constant 1.000000e+00 : f32
    %118 = vector.broadcast %cst_28 : f32 to vector<8x128xf32>
    %119 = arith.addf %118, %117 : vector<8x128xf32>
    %120 = arith.divf %118, %119 : vector<8x128xf32>
    %121 = math.tanh %115 : vector<8x128xf32>
    %122 = vector.extract_strided_slice %120 {offsets = [0, 0], sizes = [8, 32], strides = [1, 1]} : vector<8x128xf32> to vector<8x32xf32>
    %123 = vector.extract_strided_slice %120 {offsets = [0, 32], sizes = [8, 32], strides = [1, 1]} : vector<8x128xf32> to vector<8x32xf32>
    %124 = vector.extract_strided_slice %121 {offsets = [0, 64], sizes = [8, 32], strides = [1, 1]} : vector<8x128xf32> to vector<8x32xf32>
    %125 = vector.extract_strided_slice %120 {offsets = [0, 96], sizes = [8, 32], strides = [1, 1]} : vector<8x128xf32> to vector<8x32xf32>
    %126 = arith.mulf %123, %74 : vector<8x32xf32>
    %127 = arith.mulf %122, %124 : vector<8x32xf32>
    %128 = arith.addf %126, %127 : vector<8x32xf32>
    %129 = math.tanh %128 : vector<8x32xf32>
    %130 = arith.mulf %125, %129 : vector<8x32xf32>
    %131 = vector.extract_strided_slice %16 {offsets = [16, 0], sizes = [8, 128], strides = [1, 1]} : vector<64x128xf32> to vector<8x128xf32>
    %cst_29 = arith.constant dense<0.000000e+00> : vector<8x128xf32>
    %132 = tpu.matmul %94, %1, %cst_29 {dimension_numbers = #tpu.dot_dimension_numbers<[1], [0], [0], [1], [0, 0, 1, 1], [], []>} : vector<8x32xf32>, vector<32x128xf32>, vector<8x128xf32> -> vector<8x128xf32>
    %133 = arith.addf %131, %132 : vector<8x128xf32>
    %134 = arith.negf %133 : vector<8x128xf32>
    %135 = math.exp %134 : vector<8x128xf32>
    %cst_30 = arith.constant 1.000000e+00 : f32
    %136 = vector.broadcast %cst_30 : f32 to vector<8x128xf32>
    %137 = arith.addf %136, %135 : vector<8x128xf32>
    %138 = arith.divf %136, %137 : vector<8x128xf32>
    %139 = math.tanh %133 : vector<8x128xf32>
    %140 = vector.extract_strided_slice %138 {offsets = [0, 0], sizes = [8, 32], strides = [1, 1]} : vector<8x128xf32> to vector<8x32xf32>
    %141 = vector.extract_strided_slice %138 {offsets = [0, 32], sizes = [8, 32], strides = [1, 1]} : vector<8x128xf32> to vector<8x32xf32>
    %142 = vector.extract_strided_slice %139 {offsets = [0, 64], sizes = [8, 32], strides = [1, 1]} : vector<8x128xf32> to vector<8x32xf32>
    %143 = vector.extract_strided_slice %138 {offsets = [0, 96], sizes = [8, 32], strides = [1, 1]} : vector<8x128xf32> to vector<8x32xf32>
    %144 = arith.mulf %141, %92 : vector<8x32xf32>
    %145 = arith.mulf %140, %142 : vector<8x32xf32>
    %146 = arith.addf %144, %145 : vector<8x32xf32>
    %147 = math.tanh %146 : vector<8x32xf32>
    %148 = arith.mulf %143, %147 : vector<8x32xf32>
    %149 = tpu.concatenate %148, %112 in 1 : vector<8x32xf32>, vector<8x32xf32> -> vector<8x64xf32>
    %cst_31 = arith.constant dense<0.000000e+00> : vector<8x128xf32>
    %150 = tpu.matmul %149, %3, %cst_31 {dimension_numbers = #tpu.dot_dimension_numbers<[1], [0], [0], [1], [0, 0, 1, 1], [], []>} : vector<8x64xf32>, vector<64x128xf32>, vector<8x128xf32> -> vector<8x128xf32>
    %151 = arith.addf %150, %6 : vector<8x128xf32>
    %152 = arith.negf %151 : vector<8x128xf32>
    %153 = math.exp %152 : vector<8x128xf32>
    %cst_32 = arith.constant 1.000000e+00 : f32
    %154 = vector.broadcast %cst_32 : f32 to vector<8x128xf32>
    %155 = arith.addf %154, %153 : vector<8x128xf32>
    %156 = arith.divf %154, %155 : vector<8x128xf32>
    %157 = math.tanh %151 : vector<8x128xf32>
    %158 = vector.extract_strided_slice %156 {offsets = [0, 0], sizes = [8, 32], strides = [1, 1]} : vector<8x128xf32> to vector<8x32xf32>
    %159 = vector.extract_strided_slice %156 {offsets = [0, 32], sizes = [8, 32], strides = [1, 1]} : vector<8x128xf32> to vector<8x32xf32>
    %160 = vector.extract_strided_slice %157 {offsets = [0, 64], sizes = [8, 32], strides = [1, 1]} : vector<8x128xf32> to vector<8x32xf32>
    %161 = vector.extract_strided_slice %156 {offsets = [0, 96], sizes = [8, 32], strides = [1, 1]} : vector<8x128xf32> to vector<8x32xf32>
    %162 = arith.mulf %159, %110 : vector<8x32xf32>
    %163 = arith.mulf %158, %160 : vector<8x32xf32>
    %164 = arith.addf %162, %163 : vector<8x32xf32>
    %165 = math.tanh %164 : vector<8x32xf32>
    %166 = arith.mulf %161, %165 : vector<8x32xf32>
    %167 = tpu.concatenate %166, %130 in 1 : vector<8x32xf32>, vector<8x32xf32> -> vector<8x64xf32>
    %cst_33 = arith.constant dense<0.000000e+00> : vector<8x128xf32>
    %168 = tpu.matmul %167, %7, %cst_33 {dimension_numbers = #tpu.dot_dimension_numbers<[1], [0], [0], [1], [0, 0, 1, 1], [], []>} : vector<8x64xf32>, vector<64x128xf32>, vector<8x128xf32> -> vector<8x128xf32>
    %169 = arith.addf %168, %10 : vector<8x128xf32>
    %170 = arith.negf %169 : vector<8x128xf32>
    %171 = math.exp %170 : vector<8x128xf32>
    %cst_34 = arith.constant 1.000000e+00 : f32
    %172 = vector.broadcast %cst_34 : f32 to vector<8x128xf32>
    %173 = arith.addf %172, %171 : vector<8x128xf32>
    %174 = arith.divf %172, %173 : vector<8x128xf32>
    %175 = math.tanh %169 : vector<8x128xf32>
    %176 = vector.extract_strided_slice %174 {offsets = [0, 0], sizes = [8, 32], strides = [1, 1]} : vector<8x128xf32> to vector<8x32xf32>
    %177 = vector.extract_strided_slice %174 {offsets = [0, 32], sizes = [8, 32], strides = [1, 1]} : vector<8x128xf32> to vector<8x32xf32>
    %178 = vector.extract_strided_slice %175 {offsets = [0, 64], sizes = [8, 32], strides = [1, 1]} : vector<8x128xf32> to vector<8x32xf32>
    %179 = vector.extract_strided_slice %174 {offsets = [0, 96], sizes = [8, 32], strides = [1, 1]} : vector<8x128xf32> to vector<8x32xf32>
    %180 = arith.mulf %177, %128 : vector<8x32xf32>
    %181 = arith.mulf %176, %178 : vector<8x32xf32>
    %182 = arith.addf %180, %181 : vector<8x32xf32>
    %183 = math.tanh %182 : vector<8x32xf32>
    %184 = arith.mulf %179, %183 : vector<8x32xf32>
    %185 = vector.extract_strided_slice %16 {offsets = [24, 0], sizes = [8, 128], strides = [1, 1]} : vector<64x128xf32> to vector<8x128xf32>
    %cst_35 = arith.constant dense<0.000000e+00> : vector<8x128xf32>
    %186 = tpu.matmul %148, %1, %cst_35 {dimension_numbers = #tpu.dot_dimension_numbers<[1], [0], [0], [1], [0, 0, 1, 1], [], []>} : vector<8x32xf32>, vector<32x128xf32>, vector<8x128xf32> -> vector<8x128xf32>
    %187 = arith.addf %185, %186 : vector<8x128xf32>
    %188 = arith.negf %187 : vector<8x128xf32>
    %189 = math.exp %188 : vector<8x128xf32>
    %cst_36 = arith.constant 1.000000e+00 : f32
    %190 = vector.broadcast %cst_36 : f32 to vector<8x128xf32>
    %191 = arith.addf %190, %189 : vector<8x128xf32>
    %192 = arith.divf %190, %191 : vector<8x128xf32>
    %193 = math.tanh %187 : vector<8x128xf32>
    %194 = vector.extract_strided_slice %192 {offsets = [0, 0], sizes = [8, 32], strides = [1, 1]} : vector<8x128xf32> to vector<8x32xf32>
    %195 = vector.extract_strided_slice %192 {offsets = [0, 32], sizes = [8, 32], strides = [1, 1]} : vector<8x128xf32> to vector<8x32xf32>
    %196 = vector.extract_strided_slice %193 {offsets = [0, 64], sizes = [8, 32], strides = [1, 1]} : vector<8x128xf32> to vector<8x32xf32>
    %197 = vector.extract_strided_slice %192 {offsets = [0, 96], sizes = [8, 32], strides = [1, 1]} : vector<8x128xf32> to vector<8x32xf32>
    %198 = arith.mulf %195, %146 : vector<8x32xf32>
    %199 = arith.mulf %194, %196 : vector<8x32xf32>
    %200 = arith.addf %198, %199 : vector<8x32xf32>
    %201 = math.tanh %200 : vector<8x32xf32>
    %202 = arith.mulf %197, %201 : vector<8x32xf32>
    %203 = tpu.concatenate %202, %166 in 1 : vector<8x32xf32>, vector<8x32xf32> -> vector<8x64xf32>
    %cst_37 = arith.constant dense<0.000000e+00> : vector<8x128xf32>
    %204 = tpu.matmul %203, %3, %cst_37 {dimension_numbers = #tpu.dot_dimension_numbers<[1], [0], [0], [1], [0, 0, 1, 1], [], []>} : vector<8x64xf32>, vector<64x128xf32>, vector<8x128xf32> -> vector<8x128xf32>
    %205 = arith.addf %204, %6 : vector<8x128xf32>
    %206 = arith.negf %205 : vector<8x128xf32>
    %207 = math.exp %206 : vector<8x128xf32>
    %cst_38 = arith.constant 1.000000e+00 : f32
    %208 = vector.broadcast %cst_38 : f32 to vector<8x128xf32>
    %209 = arith.addf %208, %207 : vector<8x128xf32>
    %210 = arith.divf %208, %209 : vector<8x128xf32>
    %211 = math.tanh %205 : vector<8x128xf32>
    %212 = vector.extract_strided_slice %210 {offsets = [0, 0], sizes = [8, 32], strides = [1, 1]} : vector<8x128xf32> to vector<8x32xf32>
    %213 = vector.extract_strided_slice %210 {offsets = [0, 32], sizes = [8, 32], strides = [1, 1]} : vector<8x128xf32> to vector<8x32xf32>
    %214 = vector.extract_strided_slice %211 {offsets = [0, 64], sizes = [8, 32], strides = [1, 1]} : vector<8x128xf32> to vector<8x32xf32>
    %215 = vector.extract_strided_slice %210 {offsets = [0, 96], sizes = [8, 32], strides = [1, 1]} : vector<8x128xf32> to vector<8x32xf32>
    %216 = arith.mulf %213, %164 : vector<8x32xf32>
    %217 = arith.mulf %212, %214 : vector<8x32xf32>
    %218 = arith.addf %216, %217 : vector<8x32xf32>
    %219 = math.tanh %218 : vector<8x32xf32>
    %220 = arith.mulf %215, %219 : vector<8x32xf32>
    %221 = tpu.concatenate %220, %184 in 1 : vector<8x32xf32>, vector<8x32xf32> -> vector<8x64xf32>
    %cst_39 = arith.constant dense<0.000000e+00> : vector<8x128xf32>
    %222 = tpu.matmul %221, %7, %cst_39 {dimension_numbers = #tpu.dot_dimension_numbers<[1], [0], [0], [1], [0, 0, 1, 1], [], []>} : vector<8x64xf32>, vector<64x128xf32>, vector<8x128xf32> -> vector<8x128xf32>
    %223 = arith.addf %222, %10 : vector<8x128xf32>
    %224 = arith.negf %223 : vector<8x128xf32>
    %225 = math.exp %224 : vector<8x128xf32>
    %cst_40 = arith.constant 1.000000e+00 : f32
    %226 = vector.broadcast %cst_40 : f32 to vector<8x128xf32>
    %227 = arith.addf %226, %225 : vector<8x128xf32>
    %228 = arith.divf %226, %227 : vector<8x128xf32>
    %229 = math.tanh %223 : vector<8x128xf32>
    %230 = vector.extract_strided_slice %228 {offsets = [0, 0], sizes = [8, 32], strides = [1, 1]} : vector<8x128xf32> to vector<8x32xf32>
    %231 = vector.extract_strided_slice %228 {offsets = [0, 32], sizes = [8, 32], strides = [1, 1]} : vector<8x128xf32> to vector<8x32xf32>
    %232 = vector.extract_strided_slice %229 {offsets = [0, 64], sizes = [8, 32], strides = [1, 1]} : vector<8x128xf32> to vector<8x32xf32>
    %233 = vector.extract_strided_slice %228 {offsets = [0, 96], sizes = [8, 32], strides = [1, 1]} : vector<8x128xf32> to vector<8x32xf32>
    %234 = arith.mulf %231, %182 : vector<8x32xf32>
    %235 = arith.mulf %230, %232 : vector<8x32xf32>
    %236 = arith.addf %234, %235 : vector<8x32xf32>
    %237 = math.tanh %236 : vector<8x32xf32>
    %238 = arith.mulf %233, %237 : vector<8x32xf32>
    %239 = vector.extract_strided_slice %16 {offsets = [32, 0], sizes = [8, 128], strides = [1, 1]} : vector<64x128xf32> to vector<8x128xf32>
    %cst_41 = arith.constant dense<0.000000e+00> : vector<8x128xf32>
    %240 = tpu.matmul %202, %1, %cst_41 {dimension_numbers = #tpu.dot_dimension_numbers<[1], [0], [0], [1], [0, 0, 1, 1], [], []>} : vector<8x32xf32>, vector<32x128xf32>, vector<8x128xf32> -> vector<8x128xf32>
    %241 = arith.addf %239, %240 : vector<8x128xf32>
    %242 = arith.negf %241 : vector<8x128xf32>
    %243 = math.exp %242 : vector<8x128xf32>
    %cst_42 = arith.constant 1.000000e+00 : f32
    %244 = vector.broadcast %cst_42 : f32 to vector<8x128xf32>
    %245 = arith.addf %244, %243 : vector<8x128xf32>
    %246 = arith.divf %244, %245 : vector<8x128xf32>
    %247 = math.tanh %241 : vector<8x128xf32>
    %248 = vector.extract_strided_slice %246 {offsets = [0, 0], sizes = [8, 32], strides = [1, 1]} : vector<8x128xf32> to vector<8x32xf32>
    %249 = vector.extract_strided_slice %246 {offsets = [0, 32], sizes = [8, 32], strides = [1, 1]} : vector<8x128xf32> to vector<8x32xf32>
    %250 = vector.extract_strided_slice %247 {offsets = [0, 64], sizes = [8, 32], strides = [1, 1]} : vector<8x128xf32> to vector<8x32xf32>
    %251 = vector.extract_strided_slice %246 {offsets = [0, 96], sizes = [8, 32], strides = [1, 1]} : vector<8x128xf32> to vector<8x32xf32>
    %252 = arith.mulf %249, %200 : vector<8x32xf32>
    %253 = arith.mulf %248, %250 : vector<8x32xf32>
    %254 = arith.addf %252, %253 : vector<8x32xf32>
    %255 = math.tanh %254 : vector<8x32xf32>
    %256 = arith.mulf %251, %255 : vector<8x32xf32>
    %257 = tpu.concatenate %256, %220 in 1 : vector<8x32xf32>, vector<8x32xf32> -> vector<8x64xf32>
    %cst_43 = arith.constant dense<0.000000e+00> : vector<8x128xf32>
    %258 = tpu.matmul %257, %3, %cst_43 {dimension_numbers = #tpu.dot_dimension_numbers<[1], [0], [0], [1], [0, 0, 1, 1], [], []>} : vector<8x64xf32>, vector<64x128xf32>, vector<8x128xf32> -> vector<8x128xf32>
    %259 = arith.addf %258, %6 : vector<8x128xf32>
    %260 = arith.negf %259 : vector<8x128xf32>
    %261 = math.exp %260 : vector<8x128xf32>
    %cst_44 = arith.constant 1.000000e+00 : f32
    %262 = vector.broadcast %cst_44 : f32 to vector<8x128xf32>
    %263 = arith.addf %262, %261 : vector<8x128xf32>
    %264 = arith.divf %262, %263 : vector<8x128xf32>
    %265 = math.tanh %259 : vector<8x128xf32>
    %266 = vector.extract_strided_slice %264 {offsets = [0, 0], sizes = [8, 32], strides = [1, 1]} : vector<8x128xf32> to vector<8x32xf32>
    %267 = vector.extract_strided_slice %264 {offsets = [0, 32], sizes = [8, 32], strides = [1, 1]} : vector<8x128xf32> to vector<8x32xf32>
    %268 = vector.extract_strided_slice %265 {offsets = [0, 64], sizes = [8, 32], strides = [1, 1]} : vector<8x128xf32> to vector<8x32xf32>
    %269 = vector.extract_strided_slice %264 {offsets = [0, 96], sizes = [8, 32], strides = [1, 1]} : vector<8x128xf32> to vector<8x32xf32>
    %270 = arith.mulf %267, %218 : vector<8x32xf32>
    %271 = arith.mulf %266, %268 : vector<8x32xf32>
    %272 = arith.addf %270, %271 : vector<8x32xf32>
    %273 = math.tanh %272 : vector<8x32xf32>
    %274 = arith.mulf %269, %273 : vector<8x32xf32>
    %275 = tpu.concatenate %274, %238 in 1 : vector<8x32xf32>, vector<8x32xf32> -> vector<8x64xf32>
    %cst_45 = arith.constant dense<0.000000e+00> : vector<8x128xf32>
    %276 = tpu.matmul %275, %7, %cst_45 {dimension_numbers = #tpu.dot_dimension_numbers<[1], [0], [0], [1], [0, 0, 1, 1], [], []>} : vector<8x64xf32>, vector<64x128xf32>, vector<8x128xf32> -> vector<8x128xf32>
    %277 = arith.addf %276, %10 : vector<8x128xf32>
    %278 = arith.negf %277 : vector<8x128xf32>
    %279 = math.exp %278 : vector<8x128xf32>
    %cst_46 = arith.constant 1.000000e+00 : f32
    %280 = vector.broadcast %cst_46 : f32 to vector<8x128xf32>
    %281 = arith.addf %280, %279 : vector<8x128xf32>
    %282 = arith.divf %280, %281 : vector<8x128xf32>
    %283 = math.tanh %277 : vector<8x128xf32>
    %284 = vector.extract_strided_slice %282 {offsets = [0, 0], sizes = [8, 32], strides = [1, 1]} : vector<8x128xf32> to vector<8x32xf32>
    %285 = vector.extract_strided_slice %282 {offsets = [0, 32], sizes = [8, 32], strides = [1, 1]} : vector<8x128xf32> to vector<8x32xf32>
    %286 = vector.extract_strided_slice %283 {offsets = [0, 64], sizes = [8, 32], strides = [1, 1]} : vector<8x128xf32> to vector<8x32xf32>
    %287 = vector.extract_strided_slice %282 {offsets = [0, 96], sizes = [8, 32], strides = [1, 1]} : vector<8x128xf32> to vector<8x32xf32>
    %288 = arith.mulf %285, %236 : vector<8x32xf32>
    %289 = arith.mulf %284, %286 : vector<8x32xf32>
    %290 = arith.addf %288, %289 : vector<8x32xf32>
    %291 = math.tanh %290 : vector<8x32xf32>
    %292 = arith.mulf %287, %291 : vector<8x32xf32>
    %293 = vector.extract_strided_slice %16 {offsets = [40, 0], sizes = [8, 128], strides = [1, 1]} : vector<64x128xf32> to vector<8x128xf32>
    %cst_47 = arith.constant dense<0.000000e+00> : vector<8x128xf32>
    %294 = tpu.matmul %256, %1, %cst_47 {dimension_numbers = #tpu.dot_dimension_numbers<[1], [0], [0], [1], [0, 0, 1, 1], [], []>} : vector<8x32xf32>, vector<32x128xf32>, vector<8x128xf32> -> vector<8x128xf32>
    %295 = arith.addf %293, %294 : vector<8x128xf32>
    %296 = arith.negf %295 : vector<8x128xf32>
    %297 = math.exp %296 : vector<8x128xf32>
    %cst_48 = arith.constant 1.000000e+00 : f32
    %298 = vector.broadcast %cst_48 : f32 to vector<8x128xf32>
    %299 = arith.addf %298, %297 : vector<8x128xf32>
    %300 = arith.divf %298, %299 : vector<8x128xf32>
    %301 = math.tanh %295 : vector<8x128xf32>
    %302 = vector.extract_strided_slice %300 {offsets = [0, 0], sizes = [8, 32], strides = [1, 1]} : vector<8x128xf32> to vector<8x32xf32>
    %303 = vector.extract_strided_slice %300 {offsets = [0, 32], sizes = [8, 32], strides = [1, 1]} : vector<8x128xf32> to vector<8x32xf32>
    %304 = vector.extract_strided_slice %301 {offsets = [0, 64], sizes = [8, 32], strides = [1, 1]} : vector<8x128xf32> to vector<8x32xf32>
    %305 = vector.extract_strided_slice %300 {offsets = [0, 96], sizes = [8, 32], strides = [1, 1]} : vector<8x128xf32> to vector<8x32xf32>
    %306 = arith.mulf %303, %254 : vector<8x32xf32>
    %307 = arith.mulf %302, %304 : vector<8x32xf32>
    %308 = arith.addf %306, %307 : vector<8x32xf32>
    %309 = math.tanh %308 : vector<8x32xf32>
    %310 = arith.mulf %305, %309 : vector<8x32xf32>
    %311 = tpu.concatenate %310, %274 in 1 : vector<8x32xf32>, vector<8x32xf32> -> vector<8x64xf32>
    %cst_49 = arith.constant dense<0.000000e+00> : vector<8x128xf32>
    %312 = tpu.matmul %311, %3, %cst_49 {dimension_numbers = #tpu.dot_dimension_numbers<[1], [0], [0], [1], [0, 0, 1, 1], [], []>} : vector<8x64xf32>, vector<64x128xf32>, vector<8x128xf32> -> vector<8x128xf32>
    %313 = arith.addf %312, %6 : vector<8x128xf32>
    %314 = arith.negf %313 : vector<8x128xf32>
    %315 = math.exp %314 : vector<8x128xf32>
    %cst_50 = arith.constant 1.000000e+00 : f32
    %316 = vector.broadcast %cst_50 : f32 to vector<8x128xf32>
    %317 = arith.addf %316, %315 : vector<8x128xf32>
    %318 = arith.divf %316, %317 : vector<8x128xf32>
    %319 = math.tanh %313 : vector<8x128xf32>
    %320 = vector.extract_strided_slice %318 {offsets = [0, 0], sizes = [8, 32], strides = [1, 1]} : vector<8x128xf32> to vector<8x32xf32>
    %321 = vector.extract_strided_slice %318 {offsets = [0, 32], sizes = [8, 32], strides = [1, 1]} : vector<8x128xf32> to vector<8x32xf32>
    %322 = vector.extract_strided_slice %319 {offsets = [0, 64], sizes = [8, 32], strides = [1, 1]} : vector<8x128xf32> to vector<8x32xf32>
    %323 = vector.extract_strided_slice %318 {offsets = [0, 96], sizes = [8, 32], strides = [1, 1]} : vector<8x128xf32> to vector<8x32xf32>
    %324 = arith.mulf %321, %272 : vector<8x32xf32>
    %325 = arith.mulf %320, %322 : vector<8x32xf32>
    %326 = arith.addf %324, %325 : vector<8x32xf32>
    %327 = math.tanh %326 : vector<8x32xf32>
    %328 = arith.mulf %323, %327 : vector<8x32xf32>
    %329 = tpu.concatenate %328, %292 in 1 : vector<8x32xf32>, vector<8x32xf32> -> vector<8x64xf32>
    %cst_51 = arith.constant dense<0.000000e+00> : vector<8x128xf32>
    %330 = tpu.matmul %329, %7, %cst_51 {dimension_numbers = #tpu.dot_dimension_numbers<[1], [0], [0], [1], [0, 0, 1, 1], [], []>} : vector<8x64xf32>, vector<64x128xf32>, vector<8x128xf32> -> vector<8x128xf32>
    %331 = arith.addf %330, %10 : vector<8x128xf32>
    %332 = arith.negf %331 : vector<8x128xf32>
    %333 = math.exp %332 : vector<8x128xf32>
    %cst_52 = arith.constant 1.000000e+00 : f32
    %334 = vector.broadcast %cst_52 : f32 to vector<8x128xf32>
    %335 = arith.addf %334, %333 : vector<8x128xf32>
    %336 = arith.divf %334, %335 : vector<8x128xf32>
    %337 = math.tanh %331 : vector<8x128xf32>
    %338 = vector.extract_strided_slice %336 {offsets = [0, 0], sizes = [8, 32], strides = [1, 1]} : vector<8x128xf32> to vector<8x32xf32>
    %339 = vector.extract_strided_slice %336 {offsets = [0, 32], sizes = [8, 32], strides = [1, 1]} : vector<8x128xf32> to vector<8x32xf32>
    %340 = vector.extract_strided_slice %337 {offsets = [0, 64], sizes = [8, 32], strides = [1, 1]} : vector<8x128xf32> to vector<8x32xf32>
    %341 = vector.extract_strided_slice %336 {offsets = [0, 96], sizes = [8, 32], strides = [1, 1]} : vector<8x128xf32> to vector<8x32xf32>
    %342 = arith.mulf %339, %290 : vector<8x32xf32>
    %343 = arith.mulf %338, %340 : vector<8x32xf32>
    %344 = arith.addf %342, %343 : vector<8x32xf32>
    %345 = math.tanh %344 : vector<8x32xf32>
    %346 = arith.mulf %341, %345 : vector<8x32xf32>
    %347 = vector.extract_strided_slice %16 {offsets = [48, 0], sizes = [8, 128], strides = [1, 1]} : vector<64x128xf32> to vector<8x128xf32>
    %cst_53 = arith.constant dense<0.000000e+00> : vector<8x128xf32>
    %348 = tpu.matmul %310, %1, %cst_53 {dimension_numbers = #tpu.dot_dimension_numbers<[1], [0], [0], [1], [0, 0, 1, 1], [], []>} : vector<8x32xf32>, vector<32x128xf32>, vector<8x128xf32> -> vector<8x128xf32>
    %349 = arith.addf %347, %348 : vector<8x128xf32>
    %350 = arith.negf %349 : vector<8x128xf32>
    %351 = math.exp %350 : vector<8x128xf32>
    %cst_54 = arith.constant 1.000000e+00 : f32
    %352 = vector.broadcast %cst_54 : f32 to vector<8x128xf32>
    %353 = arith.addf %352, %351 : vector<8x128xf32>
    %354 = arith.divf %352, %353 : vector<8x128xf32>
    %355 = math.tanh %349 : vector<8x128xf32>
    %356 = vector.extract_strided_slice %354 {offsets = [0, 0], sizes = [8, 32], strides = [1, 1]} : vector<8x128xf32> to vector<8x32xf32>
    %357 = vector.extract_strided_slice %354 {offsets = [0, 32], sizes = [8, 32], strides = [1, 1]} : vector<8x128xf32> to vector<8x32xf32>
    %358 = vector.extract_strided_slice %355 {offsets = [0, 64], sizes = [8, 32], strides = [1, 1]} : vector<8x128xf32> to vector<8x32xf32>
    %359 = vector.extract_strided_slice %354 {offsets = [0, 96], sizes = [8, 32], strides = [1, 1]} : vector<8x128xf32> to vector<8x32xf32>
    %360 = arith.mulf %357, %308 : vector<8x32xf32>
    %361 = arith.mulf %356, %358 : vector<8x32xf32>
    %362 = arith.addf %360, %361 : vector<8x32xf32>
    %363 = math.tanh %362 : vector<8x32xf32>
    %364 = arith.mulf %359, %363 : vector<8x32xf32>
    %365 = tpu.concatenate %364, %328 in 1 : vector<8x32xf32>, vector<8x32xf32> -> vector<8x64xf32>
    %cst_55 = arith.constant dense<0.000000e+00> : vector<8x128xf32>
    %366 = tpu.matmul %365, %3, %cst_55 {dimension_numbers = #tpu.dot_dimension_numbers<[1], [0], [0], [1], [0, 0, 1, 1], [], []>} : vector<8x64xf32>, vector<64x128xf32>, vector<8x128xf32> -> vector<8x128xf32>
    %367 = arith.addf %366, %6 : vector<8x128xf32>
    %368 = arith.negf %367 : vector<8x128xf32>
    %369 = math.exp %368 : vector<8x128xf32>
    %cst_56 = arith.constant 1.000000e+00 : f32
    %370 = vector.broadcast %cst_56 : f32 to vector<8x128xf32>
    %371 = arith.addf %370, %369 : vector<8x128xf32>
    %372 = arith.divf %370, %371 : vector<8x128xf32>
    %373 = math.tanh %367 : vector<8x128xf32>
    %374 = vector.extract_strided_slice %372 {offsets = [0, 0], sizes = [8, 32], strides = [1, 1]} : vector<8x128xf32> to vector<8x32xf32>
    %375 = vector.extract_strided_slice %372 {offsets = [0, 32], sizes = [8, 32], strides = [1, 1]} : vector<8x128xf32> to vector<8x32xf32>
    %376 = vector.extract_strided_slice %373 {offsets = [0, 64], sizes = [8, 32], strides = [1, 1]} : vector<8x128xf32> to vector<8x32xf32>
    %377 = vector.extract_strided_slice %372 {offsets = [0, 96], sizes = [8, 32], strides = [1, 1]} : vector<8x128xf32> to vector<8x32xf32>
    %378 = arith.mulf %375, %326 : vector<8x32xf32>
    %379 = arith.mulf %374, %376 : vector<8x32xf32>
    %380 = arith.addf %378, %379 : vector<8x32xf32>
    %381 = math.tanh %380 : vector<8x32xf32>
    %382 = arith.mulf %377, %381 : vector<8x32xf32>
    %383 = tpu.concatenate %382, %346 in 1 : vector<8x32xf32>, vector<8x32xf32> -> vector<8x64xf32>
    %cst_57 = arith.constant dense<0.000000e+00> : vector<8x128xf32>
    %384 = tpu.matmul %383, %7, %cst_57 {dimension_numbers = #tpu.dot_dimension_numbers<[1], [0], [0], [1], [0, 0, 1, 1], [], []>} : vector<8x64xf32>, vector<64x128xf32>, vector<8x128xf32> -> vector<8x128xf32>
    %385 = arith.addf %384, %10 : vector<8x128xf32>
    %386 = arith.negf %385 : vector<8x128xf32>
    %387 = math.exp %386 : vector<8x128xf32>
    %cst_58 = arith.constant 1.000000e+00 : f32
    %388 = vector.broadcast %cst_58 : f32 to vector<8x128xf32>
    %389 = arith.addf %388, %387 : vector<8x128xf32>
    %390 = arith.divf %388, %389 : vector<8x128xf32>
    %391 = math.tanh %385 : vector<8x128xf32>
    %392 = vector.extract_strided_slice %390 {offsets = [0, 0], sizes = [8, 32], strides = [1, 1]} : vector<8x128xf32> to vector<8x32xf32>
    %393 = vector.extract_strided_slice %390 {offsets = [0, 32], sizes = [8, 32], strides = [1, 1]} : vector<8x128xf32> to vector<8x32xf32>
    %394 = vector.extract_strided_slice %391 {offsets = [0, 64], sizes = [8, 32], strides = [1, 1]} : vector<8x128xf32> to vector<8x32xf32>
    %395 = vector.extract_strided_slice %390 {offsets = [0, 96], sizes = [8, 32], strides = [1, 1]} : vector<8x128xf32> to vector<8x32xf32>
    %396 = arith.mulf %393, %344 : vector<8x32xf32>
    %397 = arith.mulf %392, %394 : vector<8x32xf32>
    %398 = arith.addf %396, %397 : vector<8x32xf32>
    %399 = math.tanh %398 : vector<8x32xf32>
    %400 = arith.mulf %395, %399 : vector<8x32xf32>
    %401 = vector.extract_strided_slice %16 {offsets = [56, 0], sizes = [8, 128], strides = [1, 1]} : vector<64x128xf32> to vector<8x128xf32>
    %cst_59 = arith.constant dense<0.000000e+00> : vector<8x128xf32>
    %402 = tpu.matmul %364, %1, %cst_59 {dimension_numbers = #tpu.dot_dimension_numbers<[1], [0], [0], [1], [0, 0, 1, 1], [], []>} : vector<8x32xf32>, vector<32x128xf32>, vector<8x128xf32> -> vector<8x128xf32>
    %403 = arith.addf %401, %402 : vector<8x128xf32>
    %404 = arith.negf %403 : vector<8x128xf32>
    %405 = math.exp %404 : vector<8x128xf32>
    %cst_60 = arith.constant 1.000000e+00 : f32
    %406 = vector.broadcast %cst_60 : f32 to vector<8x128xf32>
    %407 = arith.addf %406, %405 : vector<8x128xf32>
    %408 = arith.divf %406, %407 : vector<8x128xf32>
    %409 = math.tanh %403 : vector<8x128xf32>
    %410 = vector.extract_strided_slice %408 {offsets = [0, 0], sizes = [8, 32], strides = [1, 1]} : vector<8x128xf32> to vector<8x32xf32>
    %411 = vector.extract_strided_slice %408 {offsets = [0, 32], sizes = [8, 32], strides = [1, 1]} : vector<8x128xf32> to vector<8x32xf32>
    %412 = vector.extract_strided_slice %409 {offsets = [0, 64], sizes = [8, 32], strides = [1, 1]} : vector<8x128xf32> to vector<8x32xf32>
    %413 = vector.extract_strided_slice %408 {offsets = [0, 96], sizes = [8, 32], strides = [1, 1]} : vector<8x128xf32> to vector<8x32xf32>
    %414 = arith.mulf %411, %362 : vector<8x32xf32>
    %415 = arith.mulf %410, %412 : vector<8x32xf32>
    %416 = arith.addf %414, %415 : vector<8x32xf32>
    %417 = math.tanh %416 : vector<8x32xf32>
    %418 = arith.mulf %413, %417 : vector<8x32xf32>
    %419 = tpu.concatenate %418, %382 in 1 : vector<8x32xf32>, vector<8x32xf32> -> vector<8x64xf32>
    %cst_61 = arith.constant dense<0.000000e+00> : vector<8x128xf32>
    %420 = tpu.matmul %419, %3, %cst_61 {dimension_numbers = #tpu.dot_dimension_numbers<[1], [0], [0], [1], [0, 0, 1, 1], [], []>} : vector<8x64xf32>, vector<64x128xf32>, vector<8x128xf32> -> vector<8x128xf32>
    %421 = arith.addf %420, %6 : vector<8x128xf32>
    %422 = arith.negf %421 : vector<8x128xf32>
    %423 = math.exp %422 : vector<8x128xf32>
    %cst_62 = arith.constant 1.000000e+00 : f32
    %424 = vector.broadcast %cst_62 : f32 to vector<8x128xf32>
    %425 = arith.addf %424, %423 : vector<8x128xf32>
    %426 = arith.divf %424, %425 : vector<8x128xf32>
    %427 = math.tanh %421 : vector<8x128xf32>
    %428 = vector.extract_strided_slice %426 {offsets = [0, 0], sizes = [8, 32], strides = [1, 1]} : vector<8x128xf32> to vector<8x32xf32>
    %429 = vector.extract_strided_slice %426 {offsets = [0, 32], sizes = [8, 32], strides = [1, 1]} : vector<8x128xf32> to vector<8x32xf32>
    %430 = vector.extract_strided_slice %427 {offsets = [0, 64], sizes = [8, 32], strides = [1, 1]} : vector<8x128xf32> to vector<8x32xf32>
    %431 = vector.extract_strided_slice %426 {offsets = [0, 96], sizes = [8, 32], strides = [1, 1]} : vector<8x128xf32> to vector<8x32xf32>
    %432 = arith.mulf %429, %380 : vector<8x32xf32>
    %433 = arith.mulf %428, %430 : vector<8x32xf32>
    %434 = arith.addf %432, %433 : vector<8x32xf32>
    %435 = math.tanh %434 : vector<8x32xf32>
    %436 = arith.mulf %431, %435 : vector<8x32xf32>
    %437 = tpu.concatenate %436, %400 in 1 : vector<8x32xf32>, vector<8x32xf32> -> vector<8x64xf32>
    %cst_63 = arith.constant dense<0.000000e+00> : vector<8x128xf32>
    %438 = tpu.matmul %437, %7, %cst_63 {dimension_numbers = #tpu.dot_dimension_numbers<[1], [0], [0], [1], [0, 0, 1, 1], [], []>} : vector<8x64xf32>, vector<64x128xf32>, vector<8x128xf32> -> vector<8x128xf32>
    %439 = arith.addf %438, %10 : vector<8x128xf32>
    %440 = arith.negf %439 : vector<8x128xf32>
    %441 = math.exp %440 : vector<8x128xf32>
    %cst_64 = arith.constant 1.000000e+00 : f32
    %442 = vector.broadcast %cst_64 : f32 to vector<8x128xf32>
    %443 = arith.addf %442, %441 : vector<8x128xf32>
    %444 = arith.divf %442, %443 : vector<8x128xf32>
    %445 = math.tanh %439 : vector<8x128xf32>
    %446 = vector.extract_strided_slice %444 {offsets = [0, 0], sizes = [8, 32], strides = [1, 1]} : vector<8x128xf32> to vector<8x32xf32>
    %447 = vector.extract_strided_slice %444 {offsets = [0, 32], sizes = [8, 32], strides = [1, 1]} : vector<8x128xf32> to vector<8x32xf32>
    %448 = vector.extract_strided_slice %445 {offsets = [0, 64], sizes = [8, 32], strides = [1, 1]} : vector<8x128xf32> to vector<8x32xf32>
    %449 = vector.extract_strided_slice %444 {offsets = [0, 96], sizes = [8, 32], strides = [1, 1]} : vector<8x128xf32> to vector<8x32xf32>
    %450 = arith.mulf %447, %398 : vector<8x32xf32>
    %451 = arith.mulf %446, %448 : vector<8x32xf32>
    %452 = arith.addf %450, %451 : vector<8x32xf32>
    %453 = math.tanh %452 : vector<8x32xf32>
    %454 = arith.mulf %449, %453 : vector<8x32xf32>
    %cst_65 = arith.constant dense<0.000000e+00> : vector<8x128xf32>
    %455 = tpu.matmul %454, %11, %cst_65 {dimension_numbers = #tpu.dot_dimension_numbers<[1], [0], [0], [1], [0, 0, 1, 1], [], []>} : vector<8x32xf32>, vector<32x128xf32>, vector<8x128xf32> -> vector<8x128xf32>
    %456 = vector.broadcast %12 : vector<1x128xf32> to vector<8x128xf32>
    %457 = arith.addf %455, %456 : vector<8x128xf32>
    %458 = arith.mulf %457, %457 : vector<8x128xf32>
    %cst_66 = arith.constant dense<0.000000e+00> : vector<8xf32>
    %459 = vector.multi_reduction <add>, %458, %cst_66 [1] : vector<8x128xf32> to vector<8xf32>
    %460 = vector.shape_cast %459 : vector<8xf32> to vector<8x1xf32>
    %cst_67 = arith.constant 9.99999996E-13 : f32
    %461 = vector.broadcast %cst_67 : f32 to vector<8x1xf32>
    %462 = arith.addf %460, %461 : vector<8x1xf32>
    %463 = math.rsqrt %462 : vector<8x1xf32>
    %464 = vector.broadcast %463 : vector<8x1xf32> to vector<8x128xf32>
    %465 = arith.mulf %457, %464 : vector<8x128xf32>
    %c0_68 = arith.constant 0 : index
    %c0_69 = arith.constant 0 : index
    %466 = vector.load %arg2[%c0_68, %c0_69] : memref<8x128xf32, #tpu.memory_space<vmem>>, vector<8x128xf32>
    tpu.vector_store %arg2[%c0_68, %c0_69], %465 {strides = array<i32>} : memref<8x128xf32, #tpu.memory_space<vmem>>, vector<8x128xf32>,
    return
  }
}

</mosaic_0001>

<llo_original>
// kernel: speech_embedder_forward.1
$region0: #{speech_embedder_forward.1}
  #allocation0 [shape = 'u32[]', space=smem, size = 0x4, offset = 0x4, fixed_abs, tag = 'smem constant byte address 0x4 - core index']
  #allocation1 [shape = 'u32[144,128]{1,0:T(1,128)}', space=vmem, size = 0x12000, scoped, tag = 'internal scratch']
  %s0 = inlined_call_operand.vmem [shape: f32[64,32], index: 0, kind: input, shape index: {}]
  %s1 = inlined_call_operand.vmem [shape: f32[256,128], index: 1, kind: input, shape index: {}]
  %s2 = inlined_call_operand.vmem [shape: f32[8,128], index: 2, kind: output, shape index: {}]
  %s3 = sld [smem:[#allocation0]]
  $region18: #{speech_embedder_forward.1} parent=0
    _
  %s5 = ssub.s32 1, %s3
  %s6 = scalar_select 0, %s5, %s3
  // Predicated region
  $region2: #{speech_embedder_forward.1} parent=0 // pred_check
    _
  $region3: #{speech_embedder_forward.1} parent=0 // pred_check_branch
    %8 = sbr.rel (0) target = $region5
  $region4: #{speech_embedder_forward.1} parent=0 // pred_region
    _
  $region5: #{speech_embedder_forward.1} parent=0 // pred_fallthru
    _
  // Predicated region
  $region6: #{speech_embedder_forward.1} parent=0 // pred_check
    _
  $region7: #{speech_embedder_forward.1} parent=0 // pred_check_branch
    %10 = sbr.rel (0) target = $region9
  $region8: #{speech_embedder_forward.1} parent=0 // pred_region
    _
  $region9: #{speech_embedder_forward.1} parent=0 // pred_fallthru
    _
  %v11 = vld [vmem:[%s1] sm:$0xff]
  %v12 = vld [vmem:[%s1 + $0x8] sm:$0xff]
  %v13 = vld [vmem:[%s1 + $0x10] sm:$0xff]
  %v14 = vld [vmem:[%s1 + $0x18] sm:$0xff]
  %v15 = vld [vmem:[%s1 + $0x20] sm:$0xff]
  %v16 = vld [vmem:[%s1 + $0x28] sm:$0xff]
  %v17 = vld [vmem:[%s1 + $0x30] sm:$0xff]
  %v18 = vld [vmem:[%s1 + $0x38] sm:$0xff]
  %v19 = vld [vmem:[%s1 + $0x40] sm:$0x1]
  %v20 = vld [vmem:[%s1 + $0x48] sm:$0xff]
  %v21 = vld [vmem:[%s1 + $0x50] sm:$0xff]
  %v22 = vld [vmem:[%s1 + $0x58] sm:$0xff]
  %v23 = vld [vmem:[%s1 + $0x60] sm:$0xff]
  %v24 = vld [vmem:[%s1 + $0x68] sm:$0xff]
  %v25 = vld [vmem:[%s1 + $0x70] sm:$0xff]
  %v26 = vld [vmem:[%s1 + $0x78] sm:$0xff]
  %v27 = vld [vmem:[%s1 + $0x80] sm:$0xff]
  %v28 = vld [vmem:[%s1 + $0x88] sm:$0x1]
  %v29 = vlaneseq
  %v30 = vshrl.u32 %v29, 7
  %v31 = vsub.s32 0, %v30
  %v32 = vrot.slane %v28, %v31
  %v33 = vld [vmem:[%s1 + $0x90] sm:$0xff]
  %v34 = vld [vmem:[%s1 + $0x98] sm:$0xff]
  %v35 = vld [vmem:[%s1 + $0xa0] sm:$0xff]
  %v36 = vld [vmem:[%s1 + $0xa8] sm:$0xff]
  %v37 = vld [vmem:[%s1 + $0xb0] sm:$0xff]
  %v38 = vld [vmem:[%s1 + $0xb8] sm:$0xff]
  %v39 = vld [vmem:[%s1 + $0xc0] sm:$0xff]
  %v40 = vld [vmem:[%s1 + $0xc8] sm:$0xff]
  %v41 = vld [vmem:[%s1 + $0xd0] sm:$0x1]
  %v42 = vlaneseq
  %v43 = vshrl.u32 %v42, 7
  %v44 = vsub.s32 0, %v43
  %v45 = vrot.slane %v41, %v44
  %v46 = vld [vmem:[%s1 + $0xd8] sm:$0xff]
  %v47 = vld [vmem:[%s1 + $0xe0] sm:$0xff]
  %v48 = vld [vmem:[%s1 + $0xe8] sm:$0xff]
  %v49 = vld [vmem:[%s1 + $0xf0] sm:$0xff]
  %v50 = vld [vmem:[%s1 + $0xf8] sm:$0x1]
  %v51 = vld [vmem:[%s0] sm:$0xff]
  %v52 = vld [vmem:[%s0 + $0x8] sm:$0xff]
  %v53 = vld [vmem:[%s0 + $0x10] sm:$0xff]
  %v54 = vld [vmem:[%s0 + $0x18] sm:$0xff]
  %v55 = vld [vmem:[%s0 + $0x20] sm:$0xff]
  %v56 = vld [vmem:[%s0 + $0x28] sm:$0xff]
  %v57 = vld [vmem:[%s0 + $0x30] sm:$0xff]
  %v58 = vld [vmem:[%s0 + $0x38] sm:$0xff]
  %v59 = vlaneseq
  %v60 = vshrl.u32 %v59, 7
  %v61 = vsub.s32 0, %v60
  %v62 = vrot.slane %v19, %v61
  %vm63 = vcmask 261120
  %v65 = vsel %vm63, %v51, 0
  %v68 = vsel %vm63, %v52, 0
  %v71 = vsel %vm63, %v53, 0
  %v74 = vsel %vm63, %v54, 0
  %v77 = vsel %vm63, %v55, 0
  %v80 = vsel %vm63, %v56, 0
  %v83 = vsel %vm63, %v57, 0
  %v86 = vsel %vm63, %v58, 0
  %88 = vmatprep.subr.mxu0 0.0
  %89 = vmatpush1.msra.mxu0 %v11
  %90 = vmatprep.subr.mxu0 0.0
  %91 = vmatpush1.msra.mxu0 %v12
  %92 = vmatprep.subr.mxu0 0.0
  %93 = vmatpush1.msra.mxu0 %v13
  %94 = vmatprep.subr.mxu0 0.0
  %95 = vmatpush1.msra.mxu0 %v14
  %96 = vmatprep.subr.mxu0 0.0
  %97 = vmatpush1.msra.mxu0 0.0
  %98 = vmatprep.subr.mxu0 0.0
  %99 = vmatpush1.msra.mxu0 0.0
  %100 = vmatprep.subr.mxu0 0.0
  %101 = vmatpush1.msra.mxu0 0.0
  %102 = vmatprep.subr.mxu0 0.0
  %103 = vmatpush1.msra.mxu0 0.0
  %104 = vmatprep.subr.mxu0 0.0
  %105 = vmatpush1.msra.mxu0 0.0
  %106 = vmatprep.subr.mxu0 0.0
  %107 = vmatpush1.msra.mxu0 0.0
  %108 = vmatprep.subr.mxu0 0.0
  %109 = vmatpush1.msra.mxu0 0.0
  %110 = vmatprep.subr.mxu0 0.0
  %111 = vmatpush1.msra.mxu0 0.0
  %112 = vmatprep.subr.mxu0 0.0
  %113 = vmatpush1.msra.mxu0 0.0
  %114 = vmatprep.subr.mxu0 0.0
  %115 = vmatpush1.msra.mxu0 0.0
  %116 = vmatprep.subr.mxu0 0.0
  %117 = vmatpush1.msra.mxu0 0.0
  %118 = vmatprep.subr.mxu0 0.0
  %119 = vmatpush1.msra.mxu0 0.0
  %120 = vmatprep.subr.mxu0 0.0
  %121 = vmatpush1.msra.mxu0 0.0
  %122 = vmatprep.subr.mxu0 0.0
  %123 = vmatpush1.msra.mxu0 0.0
  %124 = vmatprep.subr.mxu0 0.0
  %125 = vmatpush1.msra.mxu0 0.0
  %126 = vmatprep.subr.mxu0 0.0
  %127 = vmatpush1.msra.mxu0 0.0
  %128 = vmatprep.subr.mxu0 0.0
  %129 = vmatpush1.msra.mxu0 0.0
  %130 = vmatprep.subr.mxu0 0.0
  %131 = vmatpush1.msra.mxu0 0.0
  %132 = vmatprep.subr.mxu0 0.0
  %133 = vmatpush1.msra.mxu0 0.0
  %134 = vmatprep.subr.mxu0 0.0
  %135 = vmatpush1.msra.mxu0 0.0
  %136 = vmatprep.subr.mxu0 0.0
  %137 = vmatpush1.msra.mxu0 0.0
  %138 = vmatprep.subr.mxu0 0.0
  %139 = vmatpush1.msra.mxu0 0.0
  %140 = vmatprep.subr.mxu0 0.0
  %141 = vmatpush1.msra.mxu0 0.0
  %142 = vmatprep.subr.mxu0 0.0
  %143 = vmatpush1.msra.mxu0 0.0
  %144 = vmatprep.subr.mxu0 0.0
  %145 = vmatpush1.msra.mxu0 0.0
  %146 = vmatprep.subr.mxu0 0.0
  %147 = vmatpush1.msra.mxu0 0.0
  %148 = vmatprep.subr.mxu0 0.0
  %149 = vmatpush1.msra.mxu0 0.0
  %150 = vmatprep.subr.mxu0 0.0
  %151 = vmatpush1.msra.mxu0 0.0
  %152 = vmatprep.mubr.f32.mxu0 0.0
  %153 = vmatmul.mubr.f32.gmra.mrb[0].mxu0 %v65
  %v154 = vpop.f32.mrb[0].mxu0
  %v155 = vadd.f32 %v62, %v154
  %v156 = vpop.f32.mrb[0].mxu0
  %157 = vmatprep.mubr.f32.mxu0 0.0
  %158 = vmatmul.mubr.f32.gmra.mrb[0].mxu0 %v68
  %v159 = vpop.f32.mrb[0].mxu0
  %v160 = vadd.f32 %v62, %v159
  %v161 = vpop.f32.mrb[0].mxu0
  %162 = vmatprep.mubr.f32.mxu0 0.0
  %163 = vmatmul.mubr.f32.gmra.mrb[0].mxu0 %v71
  %v164 = vpop.f32.mrb[0].mxu0
  %v165 = vadd.f32 %v62, %v164
  %v166 = vpop.f32.mrb[0].mxu0
  %167 = vmatprep.mubr.f32.mxu0 0.0
  %168 = vmatmul.mubr.f32.gmra.mrb[0].mxu0 %v74
  %v169 = vpop.f32.mrb[0].mxu0
  %v170 = vadd.f32 %v62, %v169
  %v171 = vpop.f32.mrb[0].mxu0
  %172 = vmatprep.mubr.f32.mxu0 0.0
  %173 = vmatmul.mubr.f32.gmra.mrb[0].mxu0 %v77
  %v174 = vpop.f32.mrb[0].mxu0
  %v175 = vadd.f32 %v62, %v174
  %v176 = vpop.f32.mrb[0].mxu0
  %177 = vmatprep.mubr.f32.mxu0 0.0
  %178 = vmatmul.mubr.f32.gmra.mrb[0].mxu0 %v80
  %v179 = vpop.f32.mrb[0].mxu0
  %v180 = vadd.f32 %v62, %v179
  %v181 = vpop.f32.mrb[0].mxu0
  %182 = vmatprep.mubr.f32.mxu0 0.0
  %183 = vmatmul.mubr.f32.gmra.mrb[0].mxu0 %v83
  %v184 = vpop.f32.mrb[0].mxu0
  %v185 = vadd.f32 %v62, %v184
  %v186 = vpop.f32.mrb[0].mxu0
  %187 = vmatprep.mubr.f32.mxu0 0.0
  %188 = vmatmul.mubr.f32.gmra.mrb[0].mxu0 %v86
  %v189 = vpop.f32.mrb[0].mxu0
  %v190 = vadd.f32 %v62, %v189
  %v191 = vpop.f32.mrb[0].mxu0
  %192 = vdwg.mxu0
  %v194 = vsel %vm63, 0.0, 0
  %196 = vmatprep.subr.mxu0 0.0
  %197 = vmatpush1.msra.mxu0 %v15
  %198 = vmatprep.subr.mxu0 0.0
  %199 = vmatpush1.msra.mxu0 %v16
  %200 = vmatprep.subr.mxu0 0.0
  %201 = vmatpush1.msra.mxu0 %v17
  %202 = vmatprep.subr.mxu0 0.0
  %203 = vmatpush1.msra.mxu0 %v18
  %204 = vmatprep.subr.mxu0 0.0
  %205 = vmatpush1.msra.mxu0 0.0
  %206 = vmatprep.subr.mxu0 0.0
  %207 = vmatpush1.msra.mxu0 0.0
  %208 = vmatprep.subr.mxu0 0.0
  %209 = vmatpush1.msra.mxu0 0.0
  %210 = vmatprep.subr.mxu0 0.0
  %211 = vmatpush1.msra.mxu0 0.0
  %212 = vmatprep.subr.mxu0 0.0
  %213 = vmatpush1.msra.mxu0 0.0
  %214 = vmatprep.subr.mxu0 0.0
  %215 = vmatpush1.msra.mxu0 0.0
  %216 = vmatprep.subr.mxu0 0.0
  %217 = vmatpush1.msra.mxu0 0.0
  %218 = vmatprep.subr.mxu0 0.0
  %219 = vmatpush1.msra.mxu0 0.0
  %220 = vmatprep.subr.mxu0 0.0
  %221 = vmatpush1.msra.mxu0 0.0
  %222 = vmatprep.subr.mxu0 0.0
  %223 = vmatpush1.msra.mxu0 0.0
  %224 = vmatprep.subr.mxu0 0.0
  %225 = vmatpush1.msra.mxu0 0.0
  %226 = vmatprep.subr.mxu0 0.0
  %227 = vmatpush1.msra.mxu0 0.0
  %228 = vmatprep.subr.mxu0 0.0
  %229 = vmatpush1.msra.mxu0 0.0
  %230 = vmatprep.subr.mxu0 0.0
  %231 = vmatpush1.msra.mxu0 0.0
  %232 = vmatprep.subr.mxu0 0.0
  %233 = vmatpush1.msra.mxu0 0.0
  %234 = vmatprep.subr.mxu0 0.0
  %235 = vmatpush1.msra.mxu0 0.0
  %236 = vmatprep.subr.mxu0 0.0
  %237 = vmatpush1.msra.mxu0 0.0
  %238 = vmatprep.subr.mxu0 0.0
  %239 = vmatpush1.msra.mxu0 0.0
  %240 = vmatprep.subr.mxu0 0.0
  %241 = vmatpush1.msra.mxu0 0.0
  %242 = vmatprep.subr.mxu0 0.0
  %243 = vmatpush1.msra.mxu0 0.0
  %244 = vmatprep.subr.mxu0 0.0
  %245 = vmatpush1.msra.mxu0 0.0
  %246 = vmatprep.subr.mxu0 0.0
  %247 = vmatpush1.msra.mxu0 0.0
  %248 = vmatprep.subr.mxu0 0.0
  %249 = vmatpush1.msra.mxu0 0.0
  %250 = vmatprep.subr.mxu0 0.0
  %251 = vmatpush1.msra.mxu0 0.0
  %252 = vmatprep.subr.mxu0 0.0
  %253 = vmatpush1.msra.mxu0 0.0
  %254 = vmatprep.subr.mxu0 0.0
  %255 = vmatpush1.msra.mxu0 0.0
  %256 = vmatprep.subr.mxu0 0.0
  %257 = vmatpush1.msra.mxu0 0.0
  %258 = vmatprep.subr.mxu0 0.0
  %259 = vmatpush1.msra.mxu0 0.0
  %260 = vmatprep.mubr.f32.mxu0 0.0
  %261 = vmatmul.mubr.f32.gmra.mrb[0].mxu0 %v194
  %v262 = vpop.f32.mrb[0].mxu0
  %v263 = vadd.f32 0.0, %v262
  %v264 = vpop.f32.mrb[0].mxu0
  %265 = vdwg.mxu0
  %v266 = vadd.f32 %v155, %v263
  %v267 = vxor.u32 %v266, 2147483648
  %v268 = vmul.f32 %v267, 1.442695
  %v269 = vpow.pop %v268
  %v270 = vadd.f32 %v269, 1.0
  %v271 = vrcp.pop %v270
  %v272 = vmul.f32 1.0, %v271
  %v273 = vtanh.pop %v266
  %v274 = vmul.f32 %v272, 0.0
  %276 = vrot.lane.b32.xlu0 %v273, 64
  %v277 = vpop.permute.xlu0 %276
  %v279 = vmul.f32 %v272, %v277
  %281 = vrot.lane.b32.xlu0 %v279, 32
  %v282 = vpop.permute.xlu0 %281
  %v284 = vadd.f32 %v274, %v282
  %v285 = vtanh.pop %v284
  %287 = vrot.lane.b32.xlu0 %v285, 64
  %v288 = vpop.permute.xlu0 %287
  %v290 = vmul.f32 %v272, %v288
  %292 = vrot.lane.b32.xlu0 %v290, 32
  %v293 = vpop.permute.xlu0 %292
  %v295 = vsel %vm63, %v293, 0.0
  %vm296 = vcmask 523264
  %v298 = vsel %vm296, %v295, 0
  %300 = vmatprep.subr.mxu0 0.0
  %301 = vmatpush1.msra.mxu0 %v20
  %302 = vmatprep.subr.mxu0 0.0
  %303 = vmatpush1.msra.mxu0 %v21
  %304 = vmatprep.subr.mxu0 0.0
  %305 = vmatpush1.msra.mxu0 %v22
  %306 = vmatprep.subr.mxu0 0.0
  %307 = vmatpush1.msra.mxu0 %v23
  %308 = vmatprep.subr.mxu0 0.0
  %309 = vmatpush1.msra.mxu0 %v24
  %310 = vmatprep.subr.mxu0 0.0
  %311 = vmatpush1.msra.mxu0 %v25
  %312 = vmatprep.subr.mxu0 0.0
  %313 = vmatpush1.msra.mxu0 %v26
  %314 = vmatprep.subr.mxu0 0.0
  %315 = vmatpush1.msra.mxu0 %v27
  %316 = vmatprep.subr.mxu0 0.0
  %317 = vmatpush1.msra.mxu0 0.0
  %318 = vmatprep.subr.mxu0 0.0
  %319 = vmatpush1.msra.mxu0 0.0
  %320 = vmatprep.subr.mxu0 0.0
  %321 = vmatpush1.msra.mxu0 0.0
  %322 = vmatprep.subr.mxu0 0.0
  %323 = vmatpush1.msra.mxu0 0.0
  %324 = vmatprep.subr.mxu0 0.0
  %325 = vmatpush1.msra.mxu0 0.0
  %326 = vmatprep.subr.mxu0 0.0
  %327 = vmatpush1.msra.mxu0 0.0
  %328 = vmatprep.subr.mxu0 0.0
  %329 = vmatpush1.msra.mxu0 0.0
  %330 = vmatprep.subr.mxu0 0.0
  %331 = vmatpush1.msra.mxu0 0.0
  %332 = vmatprep.subr.mxu0 0.0
  %333 = vmatpush1.msra.mxu0 0.0
  %334 = vmatprep.subr.mxu0 0.0
  %335 = vmatpush1.msra.mxu0 0.0
  %336 = vmatprep.subr.mxu0 0.0
  %337 = vmatpush1.msra.mxu0 0.0
  %338 = vmatprep.subr.mxu0 0.0
  %339 = vmatpush1.msra.mxu0 0.0
  %340 = vmatprep.subr.mxu0 0.0
  %341 = vmatpush1.msra.mxu0 0.0
  %342 = vmatprep.subr.mxu0 0.0
  %343 = vmatpush1.msra.mxu0 0.0
  %344 = vmatprep.subr.mxu0 0.0
  %345 = vmatpush1.msra.mxu0 0.0
  %346 = vmatprep.subr.mxu0 0.0
  %347 = vmatpush1.msra.mxu0 0.0
  %348 = vmatprep.subr.mxu0 0.0
  %349 = vmatpush1.msra.mxu0 0.0
  %350 = vmatprep.subr.mxu0 0.0
  %351 = vmatpush1.msra.mxu0 0.0
  %352 = vmatprep.subr.mxu0 0.0
  %353 = vmatpush1.msra.mxu0 0.0
  %354 = vmatprep.subr.mxu0 0.0
  %355 = vmatpush1.msra.mxu0 0.0
  %356 = vmatprep.subr.mxu0 0.0
  %357 = vmatpush1.msra.mxu0 0.0
  %358 = vmatprep.subr.mxu0 0.0
  %359 = vmatpush1.msra.mxu0 0.0
  %360 = vmatprep.subr.mxu0 0.0
  %361 = vmatpush1.msra.mxu0 0.0
  %362 = vmatprep.subr.mxu0 0.0
  %363 = vmatpush1.msra.mxu0 0.0
  %364 = vmatprep.mubr.f32.mxu0 0.0
  %365 = vmatmul.mubr.f32.gmra.mrb[0].mxu0 %v298
  %v366 = vpop.f32.mrb[0].mxu0
  %v367 = vadd.f32 %v32, %v366
  %v368 = vpop.f32.mrb[0].mxu0
  %369 = vdwg.mxu0
  %v370 = vxor.u32 %v367, 2147483648
  %v371 = vmul.f32 %v370, 1.442695
  %v372 = vpow.pop %v371
  %v373 = vadd.f32 %v372, 1.0
  %v374 = vrcp.pop %v373
  %v375 = vmul.f32 1.0, %v374
  %v376 = vtanh.pop %v367
  %v377 = vmul.f32 %v375, 0.0
  %379 = vrot.lane.b32.xlu0 %v376, 64
  %v380 = vpop.permute.xlu0 %379
  %v382 = vmul.f32 %v375, %v380
  %384 = vrot.lane.b32.xlu0 %v382, 32
  %v385 = vpop.permute.xlu0 %384
  %v387 = vadd.f32 %v377, %v385
  %v388 = vtanh.pop %v387
  %390 = vrot.lane.b32.xlu0 %v388, 64
  %v391 = vpop.permute.xlu0 %390
  %v393 = vmul.f32 %v375, %v391
  %395 = vrot.lane.b32.xlu0 %v393, 32
  %v396 = vpop.permute.xlu0 %395
  %v398 = vsel %vm63, %v396, 0.0
  %v400 = vsel %vm296, %v398, 0
  %402 = vmatprep.subr.mxu0 0.0
  %403 = vmatpush1.msra.mxu0 %v33
  %404 = vmatprep.subr.mxu0 0.0
  %405 = vmatpush1.msra.mxu0 %v34
  %406 = vmatprep.subr.mxu0 0.0
  %407 = vmatpush1.msra.mxu0 %v35
  %408 = vmatprep.subr.mxu0 0.0
  %409 = vmatpush1.msra.mxu0 %v36
  %410 = vmatprep.subr.mxu0 0.0
  %411 = vmatpush1.msra.mxu0 %v37
  %412 = vmatprep.subr.mxu0 0.0
  %413 = vmatpush1.msra.mxu0 %v38
  %414 = vmatprep.subr.mxu0 0.0
  %415 = vmatpush1.msra.mxu0 %v39
  %416 = vmatprep.subr.mxu0 0.0
  %417 = vmatpush1.msra.mxu0 %v40
  %418 = vmatprep.subr.mxu0 0.0
  %419 = vmatpush1.msra.mxu0 0.0
  %420 = vmatprep.subr.mxu0 0.0
  %421 = vmatpush1.msra.mxu0 0.0
  %422 = vmatprep.subr.mxu0 0.0
  %423 = vmatpush1.msra.mxu0 0.0
  %424 = vmatprep.subr.mxu0 0.0
  %425 = vmatpush1.msra.mxu0 0.0
  %426 = vmatprep.subr.mxu0 0.0
  %427 = vmatpush1.msra.mxu0 0.0
  %428 = vmatprep.subr.mxu0 0.0
  %429 = vmatpush1.msra.mxu0 0.0
  %430 = vmatprep.subr.mxu0 0.0
  %431 = vmatpush1.msra.mxu0 0.0
  %432 = vmatprep.subr.mxu0 0.0
  %433 = vmatpush1.msra.mxu0 0.0
  %434 = vmatprep.subr.mxu0 0.0
  %435 = vmatpush1.msra.mxu0 0.0
  %436 = vmatprep.subr.mxu0 0.0
  %437 = vmatpush1.msra.mxu0 0.0
  %438 = vmatprep.subr.mxu0 0.0
  %439 = vmatpush1.msra.mxu0 0.0
  %440 = vmatprep.subr.mxu0 0.0
  %441 = vmatpush1.msra.mxu0 0.0
  %442 = vmatprep.subr.mxu0 0.0
  %443 = vmatpush1.msra.mxu0 0.0
  %444 = vmatprep.subr.mxu0 0.0
  %445 = vmatpush1.msra.mxu0 0.0
  %446 = vmatprep.subr.mxu0 0.0
  %447 = vmatpush1.msra.mxu0 0.0
  %448 = vmatprep.subr.mxu0 0.0
  %449 = vmatpush1.msra.mxu0 0.0
  %450 = vmatprep.subr.mxu0 0.0
  %451 = vmatpush1.msra.mxu0 0.0
  %452 = vmatprep.subr.mxu0 0.0
  %453 = vmatpush1.msra.mxu0 0.0
  %454 = vmatprep.subr.mxu0 0.0
  %455 = vmatpush1.msra.mxu0 0.0
  %456 = vmatprep.subr.mxu0 0.0
  %457 = vmatpush1.msra.mxu0 0.0
  %458 = vmatprep.subr.mxu0 0.0
  %459 = vmatpush1.msra.mxu0 0.0
  %460 = vmatprep.subr.mxu0 0.0
  %461 = vmatpush1.msra.mxu0 0.0
  %462 = vmatprep.subr.mxu0 0.0
  %463 = vmatpush1.msra.mxu0 0.0
  %464 = vmatprep.subr.mxu0 0.0
  %465 = vmatpush1.msra.mxu0 0.0
  %466 = vmatprep.mubr.f32.mxu0 0.0
  %467 = vmatmul.mubr.f32.gmra.mrb[0].mxu0 %v400
  %v468 = vpop.f32.mrb[0].mxu0
  %v469 = vadd.f32 %v45, %v468
  %v470 = vpop.f32.mrb[0].mxu0
  %471 = vdwg.mxu0
  %v472 = vxor.u32 %v469, 2147483648
  %v473 = vmul.f32 %v472, 1.442695
  %v474 = vpow.pop %v473
  %v475 = vadd.f32 %v474, 1.0
  %v476 = vrcp.pop %v475
  %v477 = vmul.f32 1.0, %v476
  %v478 = vtanh.pop %v469
  %v479 = vmul.f32 %v477, 0.0
  %481 = vrot.lane.b32.xlu0 %v478, 64
  %v482 = vpop.permute.xlu0 %481
  %v484 = vmul.f32 %v477, %v482
  %486 = vrot.lane.b32.xlu0 %v484, 32
  %v487 = vpop.permute.xlu0 %486
  %v489 = vadd.f32 %v479, %v487
  %v490 = vtanh.pop %v489
  %492 = vrot.lane.b32.xlu0 %v490, 64
  %v493 = vpop.permute.xlu0 %492
  %v495 = vmul.f32 %v477, %v493
  %v496 = vsel %vm63, %v293, 0
  %498 = vmatprep.subr.mxu0 0.0
  %499 = vmatpush1.msra.mxu0 %v15
  %500 = vmatprep.subr.mxu0 0.0
  %501 = vmatpush1.msra.mxu0 %v16
  %502 = vmatprep.subr.mxu0 0.0
  %503 = vmatpush1.msra.mxu0 %v17
  %504 = vmatprep.subr.mxu0 0.0
  %505 = vmatpush1.msra.mxu0 %v18
  %506 = vmatprep.subr.mxu0 0.0
  %507 = vmatpush1.msra.mxu0 0.0
  %508 = vmatprep.subr.mxu0 0.0
  %509 = vmatpush1.msra.mxu0 0.0
  %510 = vmatprep.subr.mxu0 0.0
  %511 = vmatpush1.msra.mxu0 0.0
  %512 = vmatprep.subr.mxu0 0.0
  %513 = vmatpush1.msra.mxu0 0.0
  %514 = vmatprep.subr.mxu0 0.0
  %515 = vmatpush1.msra.mxu0 0.0
  %516 = vmatprep.subr.mxu0 0.0
  %517 = vmatpush1.msra.mxu0 0.0
  %518 = vmatprep.subr.mxu0 0.0
  %519 = vmatpush1.msra.mxu0 0.0
  %520 = vmatprep.subr.mxu0 0.0
  %521 = vmatpush1.msra.mxu0 0.0
  %522 = vmatprep.subr.mxu0 0.0
  %523 = vmatpush1.msra.mxu0 0.0
  %524 = vmatprep.subr.mxu0 0.0
  %525 = vmatpush1.msra.mxu0 0.0
  %526 = vmatprep.subr.mxu0 0.0
  %527 = vmatpush1.msra.mxu0 0.0
  %528 = vmatprep.subr.mxu0 0.0
  %529 = vmatpush1.msra.mxu0 0.0
  %530 = vmatprep.subr.mxu0 0.0
  %531 = vmatpush1.msra.mxu0 0.0
  %532 = vmatprep.subr.mxu0 0.0
  %533 = vmatpush1.msra.mxu0 0.0
  %534 = vmatprep.subr.mxu0 0.0
  %535 = vmatpush1.msra.mxu0 0.0
  %536 = vmatprep.subr.mxu0 0.0
  %537 = vmatpush1.msra.mxu0 0.0
  %538 = vmatprep.subr.mxu0 0.0
  %539 = vmatpush1.msra.mxu0 0.0
  %540 = vmatprep.subr.mxu0 0.0
  %541 = vmatpush1.msra.mxu0 0.0
  %542 = vmatprep.subr.mxu0 0.0
  %543 = vmatpush1.msra.mxu0 0.0
  %544 = vmatprep.subr.mxu0 0.0
  %545 = vmatpush1.msra.mxu0 0.0
  %546 = vmatprep.subr.mxu0 0.0
  %547 = vmatpush1.msra.mxu0 0.0
  %548 = vmatprep.subr.mxu0 0.0
  %549 = vmatpush1.msra.mxu0 0.0
  %550 = vmatprep.subr.mxu0 0.0
  %551 = vmatpush1.msra.mxu0 0.0
  %552 = vmatprep.subr.mxu0 0.0
  %553 = vmatpush1.msra.mxu0 0.0
  %554 = vmatprep.subr.mxu0 0.0
  %555 = vmatpush1.msra.mxu0 0.0
  %556 = vmatprep.subr.mxu0 0.0
  %557 = vmatpush1.msra.mxu0 0.0
  %558 = vmatprep.subr.mxu0 0.0
  %559 = vmatpush1.msra.mxu0 0.0
  %560 = vmatprep.subr.mxu0 0.0
  %561 = vmatpush1.msra.mxu0 0.0
  %562 = vmatprep.mubr.f32.mxu0 0.0
  %563 = vmatmul.mubr.f32.gmra.mrb[0].mxu0 %v496
  %v564 = vpop.f32.mrb[0].mxu0
  %v565 = vadd.f32 0.0, %v564
  %v566 = vpop.f32.mrb[0].mxu0
  %567 = vdwg.mxu0
  %v568 = vadd.f32 %v160, %v565
  %v569 = vxor.u32 %v568, 2147483648
  %v570 = vmul.f32 %v569, 1.442695
  %v571 = vpow.pop %v570
  %v572 = vadd.f32 %v571, 1.0
  %v573 = vrcp.pop %v572
  %v574 = vmul.f32 1.0, %v573
  %v575 = vtanh.pop %v568
  %v576 = vmul.f32 %v574, %v284
  %578 = vrot.lane.b32.xlu0 %v575, 64
  %v579 = vpop.permute.xlu0 %578
  %v581 = vmul.f32 %v574, %v579
  %583 = vrot.lane.b32.xlu0 %v581, 32
  %v584 = vpop.permute.xlu0 %583
  %v586 = vadd.f32 %v576, %v584
  %v587 = vtanh.pop %v586
  %589 = vrot.lane.b32.xlu0 %v587, 64
  %v590 = vpop.permute.xlu0 %589
  %v592 = vmul.f32 %v574, %v590
  %594 = vrot.lane.b32.xlu0 %v592, 32
  %v595 = vpop.permute.xlu0 %594
  %597 = vrot.lane.b32.xlu0 %v393, 64
  %v598 = vpop.permute.xlu0 %597
  %v600 = vsel %vm63, %v595, %v598
  %v602 = vsel %vm296, %v600, 0
  %604 = vmatprep.subr.mxu0 0.0
  %605 = vmatpush1.msra.mxu0 %v20
  %606 = vmatprep.subr.mxu0 0.0
  %607 = vmatpush1.msra.mxu0 %v21
  %608 = vmatprep.subr.mxu0 0.0
  %609 = vmatpush1.msra.mxu0 %v22
  %610 = vmatprep.subr.mxu0 0.0
  %611 = vmatpush1.msra.mxu0 %v23
  %612 = vmatprep.subr.mxu0 0.0
  %613 = vmatpush1.msra.mxu0 %v24
  %614 = vmatprep.subr.mxu0 0.0
  %615 = vmatpush1.msra.mxu0 %v25
  %616 = vmatprep.subr.mxu0 0.0
  %617 = vmatpush1.msra.mxu0 %v26
  %618 = vmatprep.subr.mxu0 0.0
  %619 = vmatpush1.msra.mxu0 %v27
  %620 = vmatprep.subr.mxu0 0.0
  %621 = vmatpush1.msra.mxu0 0.0
  %622 = vmatprep.subr.mxu0 0.0
  %623 = vmatpush1.msra.mxu0 0.0
  %624 = vmatprep.subr.mxu0 0.0
  %625 = vmatpush1.msra.mxu0 0.0
  %626 = vmatprep.subr.mxu0 0.0
  %627 = vmatpush1.msra.mxu0 0.0
  %628 = vmatprep.subr.mxu0 0.0
  %629 = vmatpush1.msra.mxu0 0.0
  %630 = vmatprep.subr.mxu0 0.0
  %631 = vmatpush1.msra.mxu0 0.0
  %632 = vmatprep.subr.mxu0 0.0
  %633 = vmatpush1.msra.mxu0 0.0
  %634 = vmatprep.subr.mxu0 0.0
  %635 = vmatpush1.msra.mxu0 0.0
  %636 = vmatprep.subr.mxu0 0.0
  %637 = vmatpush1.msra.mxu0 0.0
  %638 = vmatprep.subr.mxu0 0.0
  %639 = vmatpush1.msra.mxu0 0.0
  %640 = vmatprep.subr.mxu0 0.0
  %641 = vmatpush1.msra.mxu0 0.0
  %642 = vmatprep.subr.mxu0 0.0
  %643 = vmatpush1.msra.mxu0 0.0
  %644 = vmatprep.subr.mxu0 0.0
  %645 = vmatpush1.msra.mxu0 0.0
  %646 = vmatprep.subr.mxu0 0.0
  %647 = vmatpush1.msra.mxu0 0.0
  %648 = vmatprep.subr.mxu0 0.0
  %649 = vmatpush1.msra.mxu0 0.0
  %650 = vmatprep.subr.mxu0 0.0
  %651 = vmatpush1.msra.mxu0 0.0
  %652 = vmatprep.subr.mxu0 0.0
  %653 = vmatpush1.msra.mxu0 0.0
  %654 = vmatprep.subr.mxu0 0.0
  %655 = vmatpush1.msra.mxu0 0.0
  %656 = vmatprep.subr.mxu0 0.0
  %657 = vmatpush1.msra.mxu0 0.0
  %658 = vmatprep.subr.mxu0 0.0
  %659 = vmatpush1.msra.mxu0 0.0
  %660 = vmatprep.subr.mxu0 0.0
  %661 = vmatpush1.msra.mxu0 0.0
  %662 = vmatprep.subr.mxu0 0.0
  %663 = vmatpush1.msra.mxu0 0.0
  %664 = vmatprep.subr.mxu0 0.0
  %665 = vmatpush1.msra.mxu0 0.0
  %666 = vmatprep.subr.mxu0 0.0
  %667 = vmatpush1.msra.mxu0 0.0
  %668 = vmatprep.mubr.f32.mxu0 0.0
  %669 = vmatmul.mubr.f32.gmra.mrb[0].mxu0 %v602
  %v670 = vpop.f32.mrb[0].mxu0
  %v671 = vadd.f32 %v32, %v670
  %v672 = vpop.f32.mrb[0].mxu0
  %673 = vdwg.mxu0
  %v674 = vxor.u32 %v671, 2147483648
  %v675 = vmul.f32 %v674, 1.442695
  %v676 = vpow.pop %v675
  %v677 = vadd.f32 %v676, 1.0
  %v678 = vrcp.pop %v677
  %v679 = vmul.f32 1.0, %v678
  %v680 = vtanh.pop %v671
  %v681 = vmul.f32 %v679, %v387
  %683 = vrot.lane.b32.xlu0 %v680, 64
  %v684 = vpop.permute.xlu0 %683
  %v686 = vmul.f32 %v679, %v684
  %688 = vrot.lane.b32.xlu0 %v686, 32
  %v689 = vpop.permute.xlu0 %688
  %v691 = vadd.f32 %v681, %v689
  %v692 = vtanh.pop %v691
  %694 = vrot.lane.b32.xlu0 %v692, 64
  %v695 = vpop.permute.xlu0 %694
  %v697 = vmul.f32 %v679, %v695
  %699 = vrot.lane.b32.xlu0 %v697, 32
  %v700 = vpop.permute.xlu0 %699
  %703 = vrot.lane.b32.xlu0 %v495, 64
  %v704 = vpop.permute.xlu0 %703
  %v706 = vsel %vm63, %v700, %v704
  %v708 = vsel %vm296, %v706, 0
  %710 = vmatprep.subr.mxu0 0.0
  %711 = vmatpush1.msra.mxu0 %v33
  %712 = vmatprep.subr.mxu0 0.0
  %713 = vmatpush1.msra.mxu0 %v34
  %714 = vmatprep.subr.mxu0 0.0
  %715 = vmatpush1.msra.mxu0 %v35
  %716 = vmatprep.subr.mxu0 0.0
  %717 = vmatpush1.msra.mxu0 %v36
  %718 = vmatprep.subr.mxu0 0.0
  %719 = vmatpush1.msra.mxu0 %v37
  %720 = vmatprep.subr.mxu0 0.0
  %721 = vmatpush1.msra.mxu0 %v38
  %722 = vmatprep.subr.mxu0 0.0
  %723 = vmatpush1.msra.mxu0 %v39
  %724 = vmatprep.subr.mxu0 0.0
  %725 = vmatpush1.msra.mxu0 %v40
  %726 = vmatprep.subr.mxu0 0.0
  %727 = vmatpush1.msra.mxu0 0.0
  %728 = vmatprep.subr.mxu0 0.0
  %729 = vmatpush1.msra.mxu0 0.0
  %730 = vmatprep.subr.mxu0 0.0
  %731 = vmatpush1.msra.mxu0 0.0
  %732 = vmatprep.subr.mxu0 0.0
  %733 = vmatpush1.msra.mxu0 0.0
  %734 = vmatprep.subr.mxu0 0.0
  %735 = vmatpush1.msra.mxu0 0.0
  %736 = vmatprep.subr.mxu0 0.0
  %737 = vmatpush1.msra.mxu0 0.0
  %738 = vmatprep.subr.mxu0 0.0
  %739 = vmatpush1.msra.mxu0 0.0
  %740 = vmatprep.subr.mxu0 0.0
  %741 = vmatpush1.msra.mxu0 0.0
  %742 = vmatprep.subr.mxu0 0.0
  %743 = vmatpush1.msra.mxu0 0.0
  %744 = vmatprep.subr.mxu0 0.0
  %745 = vmatpush1.msra.mxu0 0.0
  %746 = vmatprep.subr.mxu0 0.0
  %747 = vmatpush1.msra.mxu0 0.0
  %748 = vmatprep.subr.mxu0 0.0
  %749 = vmatpush1.msra.mxu0 0.0
  %750 = vmatprep.subr.mxu0 0.0
  %751 = vmatpush1.msra.mxu0 0.0
  %752 = vmatprep.subr.mxu0 0.0
  %753 = vmatpush1.msra.mxu0 0.0
  %754 = vmatprep.subr.mxu0 0.0
  %755 = vmatpush1.msra.mxu0 0.0
  %756 = vmatprep.subr.mxu0 0.0
  %757 = vmatpush1.msra.mxu0 0.0
  %758 = vmatprep.subr.mxu0 0.0
  %759 = vmatpush1.msra.mxu0 0.0
  %760 = vmatprep.subr.mxu0 0.0
  %761 = vmatpush1.msra.mxu0 0.0
  %762 = vmatprep.subr.mxu0 0.0
  %763 = vmatpush1.msra.mxu0 0.0
  %764 = vmatprep.subr.mxu0 0.0
  %765 = vmatpush1.msra.mxu0 0.0
  %766 = vmatprep.subr.mxu0 0.0
  %767 = vmatpush1.msra.mxu0 0.0
  %768 = vmatprep.subr.mxu0 0.0
  %769 = vmatpush1.msra.mxu0 0.0
  %770 = vmatprep.subr.mxu0 0.0
  %771 = vmatpush1.msra.mxu0 0.0
  %772 = vmatprep.subr.mxu0 0.0
  %773 = vmatpush1.msra.mxu0 0.0
  %774 = vmatprep.mubr.f32.mxu0 0.0
  %775 = vmatmul.mubr.f32.gmra.mrb[0].mxu0 %v708
  %v776 = vpop.f32.mrb[0].mxu0
  %v777 = vadd.f32 %v45, %v776
  %v778 = vpop.f32.mrb[0].mxu0
  %779 = vdwg.mxu0
  %v780 = vxor.u32 %v777, 2147483648
  %v781 = vmul.f32 %v780, 1.442695
  %v782 = vpow.pop %v781
  %v783 = vadd.f32 %v782, 1.0
  %v784 = vrcp.pop %v783
  %v785 = vmul.f32 1.0, %v784
  %v786 = vtanh.pop %v777
  %v787 = vmul.f32 %v785, %v489
  %789 = vrot.lane.b32.xlu0 %v786, 64
  %v790 = vpop.permute.xlu0 %789
  %v792 = vmul.f32 %v785, %v790
  %794 = vrot.lane.b32.xlu0 %v792, 32
  %v795 = vpop.permute.xlu0 %794
  %v797 = vadd.f32 %v787, %v795
  %v798 = vtanh.pop %v797
  %800 = vrot.lane.b32.xlu0 %v798, 64
  %v801 = vpop.permute.xlu0 %800
  %v803 = vmul.f32 %v785, %v801
  %v804 = vsel %vm63, %v595, 0
  %806 = vmatprep.subr.mxu0 0.0
  %807 = vmatpush1.msra.mxu0 %v15
  %808 = vmatprep.subr.mxu0 0.0
  %809 = vmatpush1.msra.mxu0 %v16
  %810 = vmatprep.subr.mxu0 0.0
  %811 = vmatpush1.msra.mxu0 %v17
  %812 = vmatprep.subr.mxu0 0.0
  %813 = vmatpush1.msra.mxu0 %v18
  %814 = vmatprep.subr.mxu0 0.0
  %815 = vmatpush1.msra.mxu0 0.0
  %816 = vmatprep.subr.mxu0 0.0
  %817 = vmatpush1.msra.mxu0 0.0
  %818 = vmatprep.subr.mxu0 0.0
  %819 = vmatpush1.msra.mxu0 0.0
  %820 = vmatprep.subr.mxu0 0.0
  %821 = vmatpush1.msra.mxu0 0.0
  %822 = vmatprep.subr.mxu0 0.0
  %823 = vmatpush1.msra.mxu0 0.0
  %824 = vmatprep.subr.mxu0 0.0
  %825 = vmatpush1.msra.mxu0 0.0
  %826 = vmatprep.subr.mxu0 0.0
  %827 = vmatpush1.msra.mxu0 0.0
  %828 = vmatprep.subr.mxu0 0.0
  %829 = vmatpush1.msra.mxu0 0.0
  %830 = vmatprep.subr.mxu0 0.0
  %831 = vmatpush1.msra.mxu0 0.0
  %832 = vmatprep.subr.mxu0 0.0
  %833 = vmatpush1.msra.mxu0 0.0
  %834 = vmatprep.subr.mxu0 0.0
  %835 = vmatpush1.msra.mxu0 0.0
  %836 = vmatprep.subr.mxu0 0.0
  %837 = vmatpush1.msra.mxu0 0.0
  %838 = vmatprep.subr.mxu0 0.0
  %839 = vmatpush1.msra.mxu0 0.0
  %840 = vmatprep.subr.mxu0 0.0
  %841 = vmatpush1.msra.mxu0 0.0
  %842 = vmatprep.subr.mxu0 0.0
  %843 = vmatpush1.msra.mxu0 0.0
  %844 = vmatprep.subr.mxu0 0.0
  %845 = vmatpush1.msra.mxu0 0.0
  %846 = vmatprep.subr.mxu0 0.0
  %847 = vmatpush1.msra.mxu0 0.0
  %848 = vmatprep.subr.mxu0 0.0
  %849 = vmatpush1.msra.mxu0 0.0
  %850 = vmatprep.subr.mxu0 0.0
  %851 = vmatpush1.msra.mxu0 0.0
  %852 = vmatprep.subr.mxu0 0.0
  %853 = vmatpush1.msra.mxu0 0.0
  %854 = vmatprep.subr.mxu0 0.0
  %855 = vmatpush1.msra.mxu0 0.0
  %856 = vmatprep.subr.mxu0 0.0
  %857 = vmatpush1.msra.mxu0 0.0
  %858 = vmatprep.subr.mxu0 0.0
  %859 = vmatpush1.msra.mxu0 0.0
  %860 = vmatprep.subr.mxu0 0.0
  %861 = vmatpush1.msra.mxu0 0.0
  %862 = vmatprep.subr.mxu0 0.0
  %863 = vmatpush1.msra.mxu0 0.0
  %864 = vmatprep.subr.mxu0 0.0
  %865 = vmatpush1.msra.mxu0 0.0
  %866 = vmatprep.subr.mxu0 0.0
  %867 = vmatpush1.msra.mxu0 0.0
  %868 = vmatprep.subr.mxu0 0.0
  %869 = vmatpush1.msra.mxu0 0.0
  %870 = vmatprep.mubr.f32.mxu0 0.0
  %871 = vmatmul.mubr.f32.gmra.mrb[0].mxu0 %v804
  %v872 = vpop.f32.mrb[0].mxu0
  %v873 = vadd.f32 0.0, %v872
  %v874 = vpop.f32.mrb[0].mxu0
  %875 = vdwg.mxu0
  %v876 = vadd.f32 %v165, %v873
  %v877 = vxor.u32 %v876, 2147483648
  %v878 = vmul.f32 %v877, 1.442695
  %v879 = vpow.pop %v878
  %v880 = vadd.f32 %v879, 1.0
  %v881 = vrcp.pop %v880
  %v882 = vmul.f32 1.0, %v881
  %v883 = vtanh.pop %v876
  %v884 = vmul.f32 %v882, %v586
  %886 = vrot.lane.b32.xlu0 %v883, 64
  %v887 = vpop.permute.xlu0 %886
  %v889 = vmul.f32 %v882, %v887
  %891 = vrot.lane.b32.xlu0 %v889, 32
  %v892 = vpop.permute.xlu0 %891
  %v894 = vadd.f32 %v884, %v892
  %v895 = vtanh.pop %v894
  %897 = vrot.lane.b32.xlu0 %v895, 64
  %v898 = vpop.permute.xlu0 %897
  %v900 = vmul.f32 %v882, %v898
  %902 = vrot.lane.b32.xlu0 %v900, 32
  %v903 = vpop.permute.xlu0 %902
  %905 = vrot.lane.b32.xlu0 %v697, 64
  %v906 = vpop.permute.xlu0 %905
  %v908 = vsel %vm63, %v903, %v906
  %v910 = vsel %vm296, %v908, 0
  %912 = vmatprep.subr.mxu0 0.0
  %913 = vmatpush1.msra.mxu0 %v20
  %914 = vmatprep.subr.mxu0 0.0
  %915 = vmatpush1.msra.mxu0 %v21
  %916 = vmatprep.subr.mxu0 0.0
  %917 = vmatpush1.msra.mxu0 %v22
  %918 = vmatprep.subr.mxu0 0.0
  %919 = vmatpush1.msra.mxu0 %v23
  %920 = vmatprep.subr.mxu0 0.0
  %921 = vmatpush1.msra.mxu0 %v24
  %922 = vmatprep.subr.mxu0 0.0
  %923 = vmatpush1.msra.mxu0 %v25
  %924 = vmatprep.subr.mxu0 0.0
  %925 = vmatpush1.msra.mxu0 %v26
  %926 = vmatprep.subr.mxu0 0.0
  %927 = vmatpush1.msra.mxu0 %v27
  %928 = vmatprep.subr.mxu0 0.0
  %929 = vmatpush1.msra.mxu0 0.0
  %930 = vmatprep.subr.mxu0 0.0
  %931 = vmatpush1.msra.mxu0 0.0
  %932 = vmatprep.subr.mxu0 0.0
  %933 = vmatpush1.msra.mxu0 0.0
  %934 = vmatprep.subr.mxu0 0.0
  %935 = vmatpush1.msra.mxu0 0.0
  %936 = vmatprep.subr.mxu0 0.0
  %937 = vmatpush1.msra.mxu0 0.0
  %938 = vmatprep.subr.mxu0 0.0
  %939 = vmatpush1.msra.mxu0 0.0
  %940 = vmatprep.subr.mxu0 0.0
  %941 = vmatpush1.msra.mxu0 0.0
  %942 = vmatprep.subr.mxu0 0.0
  %943 = vmatpush1.msra.mxu0 0.0
  %944 = vmatprep.subr.mxu0 0.0
  %945 = vmatpush1.msra.mxu0 0.0
  %946 = vmatprep.subr.mxu0 0.0
  %947 = vmatpush1.msra.mxu0 0.0
  %948 = vmatprep.subr.mxu0 0.0
  %949 = vmatpush1.msra.mxu0 0.0
  %950 = vmatprep.subr.mxu0 0.0
  %951 = vmatpush1.msra.mxu0 0.0
  %952 = vmatprep.subr.mxu0 0.0
  %953 = vmatpush1.msra.mxu0 0.0
  %954 = vmatprep.subr.mxu0 0.0
  %955 = vmatpush1.msra.mxu0 0.0
  %956 = vmatprep.subr.mxu0 0.0
  %957 = vmatpush1.msra.mxu0 0.0
  %958 = vmatprep.subr.mxu0 0.0
  %959 = vmatpush1.msra.mxu0 0.0
  %960 = vmatprep.subr.mxu0 0.0
  %961 = vmatpush1.msra.mxu0 0.0
  %962 = vmatprep.subr.mxu0 0.0
  %963 = vmatpush1.msra.mxu0 0.0
  %964 = vmatprep.subr.mxu0 0.0
  %965 = vmatpush1.msra.mxu0 0.0
  %966 = vmatprep.subr.mxu0 0.0
  %967 = vmatpush1.msra.mxu0 0.0
  %968 = vmatprep.subr.mxu0 0.0
  %969 = vmatpush1.msra.mxu0 0.0
  %970 = vmatprep.subr.mxu0 0.0
  %971 = vmatpush1.msra.mxu0 0.0
  %972 = vmatprep.subr.mxu0 0.0
  %973 = vmatpush1.msra.mxu0 0.0
  %974 = vmatprep.subr.mxu0 0.0
  %975 = vmatpush1.msra.mxu0 0.0
  %976 = vmatprep.mubr.f32.mxu0 0.0
  %977 = vmatmul.mubr.f32.gmra.mrb[0].mxu0 %v910
  %v978 = vpop.f32.mrb[0].mxu0
  %v979 = vadd.f32 %v32, %v978
  %v980 = vpop.f32.mrb[0].mxu0
  %981 = vdwg.mxu0
  %v982 = vxor.u32 %v979, 2147483648
  %v983 = vmul.f32 %v982, 1.442695
  %v984 = vpow.pop %v983
  %v985 = vadd.f32 %v984, 1.0
  %v986 = vrcp.pop %v985
  %v987 = vmul.f32 1.0, %v986
  %v988 = vtanh.pop %v979
  %v989 = vmul.f32 %v987, %v691
  %991 = vrot.lane.b32.xlu0 %v988, 64
  %v992 = vpop.permute.xlu0 %991
  %v994 = vmul.f32 %v987, %v992
  %996 = vrot.lane.b32.xlu0 %v994, 32
  %v997 = vpop.permute.xlu0 %996
  %v999 = vadd.f32 %v989, %v997
  %v1000 = vtanh.pop %v999
  %1002 = vrot.lane.b32.xlu0 %v1000, 64
  %v1003 = vpop.permute.xlu0 %1002
  %v1005 = vmul.f32 %v987, %v1003
  %1007 = vrot.lane.b32.xlu0 %v1005, 32
  %v1008 = vpop.permute.xlu0 %1007
  %1011 = vrot.lane.b32.xlu0 %v803, 64
  %v1012 = vpop.permute.xlu0 %1011
  %v1014 = vsel %vm63, %v1008, %v1012
  %v1016 = vsel %vm296, %v1014, 0
  %1018 = vmatprep.subr.mxu0 0.0
  %1019 = vmatpush1.msra.mxu0 %v33
  %1020 = vmatprep.subr.mxu0 0.0
  %1021 = vmatpush1.msra.mxu0 %v34
  %1022 = vmatprep.subr.mxu0 0.0
  %1023 = vmatpush1.msra.mxu0 %v35
  %1024 = vmatprep.subr.mxu0 0.0
  %1025 = vmatpush1.msra.mxu0 %v36
  %1026 = vmatprep.subr.mxu0 0.0
  %1027 = vmatpush1.msra.mxu0 %v37
  %1028 = vmatprep.subr.mxu0 0.0
  %1029 = vmatpush1.msra.mxu0 %v38
  %1030 = vmatprep.subr.mxu0 0.0
  %1031 = vmatpush1.msra.mxu0 %v39
  %1032 = vmatprep.subr.mxu0 0.0
  %1033 = vmatpush1.msra.mxu0 %v40
  %1034 = vmatprep.subr.mxu0 0.0
  %1035 = vmatpush1.msra.mxu0 0.0
  %1036 = vmatprep.subr.mxu0 0.0
  %1037 = vmatpush1.msra.mxu0 0.0
  %1038 = vmatprep.subr.mxu0 0.0
  %1039 = vmatpush1.msra.mxu0 0.0
  %1040 = vmatprep.subr.mxu0 0.0
  %1041 = vmatpush1.msra.mxu0 0.0
  %1042 = vmatprep.subr.mxu0 0.0
  %1043 = vmatpush1.msra.mxu0 0.0
  %1044 = vmatprep.subr.mxu0 0.0
  %1045 = vmatpush1.msra.mxu0 0.0
  %1046 = vmatprep.subr.mxu0 0.0
  %1047 = vmatpush1.msra.mxu0 0.0
  %1048 = vmatprep.subr.mxu0 0.0
  %1049 = vmatpush1.msra.mxu0 0.0
  %1050 = vmatprep.subr.mxu0 0.0
  %1051 = vmatpush1.msra.mxu0 0.0
  %1052 = vmatprep.subr.mxu0 0.0
  %1053 = vmatpush1.msra.mxu0 0.0
  %1054 = vmatprep.subr.mxu0 0.0
  %1055 = vmatpush1.msra.mxu0 0.0
  %1056 = vmatprep.subr.mxu0 0.0
  %1057 = vmatpush1.msra.mxu0 0.0
  %1058 = vmatprep.subr.mxu0 0.0
  %1059 = vmatpush1.msra.mxu0 0.0
  %1060 = vmatprep.subr.mxu0 0.0
  %1061 = vmatpush1.msra.mxu0 0.0
  %1062 = vmatprep.subr.mxu0 0.0
  %1063 = vmatpush1.msra.mxu0 0.0
  %1064 = vmatprep.subr.mxu0 0.0
  %1065 = vmatpush1.msra.mxu0 0.0
  %1066 = vmatprep.subr.mxu0 0.0
  %1067 = vmatpush1.msra.mxu0 0.0
  %1068 = vmatprep.subr.mxu0 0.0
  %1069 = vmatpush1.msra.mxu0 0.0
  %1070 = vmatprep.subr.mxu0 0.0
  %1071 = vmatpush1.msra.mxu0 0.0
  %1072 = vmatprep.subr.mxu0 0.0
  %1073 = vmatpush1.msra.mxu0 0.0
  %1074 = vmatprep.subr.mxu0 0.0
  %1075 = vmatpush1.msra.mxu0 0.0
  %1076 = vmatprep.subr.mxu0 0.0
  %1077 = vmatpush1.msra.mxu0 0.0
  %1078 = vmatprep.subr.mxu0 0.0
  %1079 = vmatpush1.msra.mxu0 0.0
  %1080 = vmatprep.subr.mxu0 0.0
  %1081 = vmatpush1.msra.mxu0 0.0
  %1082 = vmatprep.mubr.f32.mxu0 0.0
  %1083 = vmatmul.mubr.f32.gmra.mrb[0].mxu0 %v1016
  %v1084 = vpop.f32.mrb[0].mxu0
  %v1085 = vadd.f32 %v45, %v1084
  %v1086 = vpop.f32.mrb[0].mxu0
  %1087 = vdwg.mxu0
  %v1088 = vxor.u32 %v1085, 2147483648
  %v1089 = vmul.f32 %v1088, 1.442695
  %v1090 = vpow.pop %v1089
  %v1091 = vadd.f32 %v1090, 1.0
  %v1092 = vrcp.pop %v1091
  %v1093 = vmul.f32 1.0, %v1092
  %v1094 = vtanh.pop %v1085
  %v1095 = vmul.f32 %v1093, %v797
  %1097 = vrot.lane.b32.xlu0 %v1094, 64
  %v1098 = vpop.permute.xlu0 %1097
  %v1100 = vmul.f32 %v1093, %v1098
  %1102 = vrot.lane.b32.xlu0 %v1100, 32
  %v1103 = vpop.permute.xlu0 %1102
  %v1105 = vadd.f32 %v1095, %v1103
  %v1106 = vtanh.pop %v1105
  %1108 = vrot.lane.b32.xlu0 %v1106, 64
  %v1109 = vpop.permute.xlu0 %1108
  %v1111 = vmul.f32 %v1093, %v1109
  %v1112 = vsel %vm63, %v903, 0
  %1114 = vmatprep.subr.mxu0 0.0
  %1115 = vmatpush1.msra.mxu0 %v15
  %1116 = vmatprep.subr.mxu0 0.0
  %1117 = vmatpush1.msra.mxu0 %v16
  %1118 = vmatprep.subr.mxu0 0.0
  %1119 = vmatpush1.msra.mxu0 %v17
  %1120 = vmatprep.subr.mxu0 0.0
  %1121 = vmatpush1.msra.mxu0 %v18
  %1122 = vmatprep.subr.mxu0 0.0
  %1123 = vmatpush1.msra.mxu0 0.0
  %1124 = vmatprep.subr.mxu0 0.0
  %1125 = vmatpush1.msra.mxu0 0.0
  %1126 = vmatprep.subr.mxu0 0.0
  %1127 = vmatpush1.msra.mxu0 0.0
  %1128 = vmatprep.subr.mxu0 0.0
  %1129 = vmatpush1.msra.mxu0 0.0
  %1130 = vmatprep.subr.mxu0 0.0
  %1131 = vmatpush1.msra.mxu0 0.0
  %1132 = vmatprep.subr.mxu0 0.0
  %1133 = vmatpush1.msra.mxu0 0.0
  %1134 = vmatprep.subr.mxu0 0.0
  %1135 = vmatpush1.msra.mxu0 0.0
  %1136 = vmatprep.subr.mxu0 0.0
  %1137 = vmatpush1.msra.mxu0 0.0
  %1138 = vmatprep.subr.mxu0 0.0
  %1139 = vmatpush1.msra.mxu0 0.0
  %1140 = vmatprep.subr.mxu0 0.0
  %1141 = vmatpush1.msra.mxu0 0.0
  %1142 = vmatprep.subr.mxu0 0.0
  %1143 = vmatpush1.msra.mxu0 0.0
  %1144 = vmatprep.subr.mxu0 0.0
  %1145 = vmatpush1.msra.mxu0 0.0
  %1146 = vmatprep.subr.mxu0 0.0
  %1147 = vmatpush1.msra.mxu0 0.0
  %1148 = vmatprep.subr.mxu0 0.0
  %1149 = vmatpush1.msra.mxu0 0.0
  %1150 = vmatprep.subr.mxu0 0.0
  %1151 = vmatpush1.msra.mxu0 0.0
  %1152 = vmatprep.subr.mxu0 0.0
  %1153 = vmatpush1.msra.mxu0 0.0
  %1154 = vmatprep.subr.mxu0 0.0
  %1155 = vmatpush1.msra.mxu0 0.0
  %1156 = vmatprep.subr.mxu0 0.0
  %1157 = vmatpush1.msra.mxu0 0.0
  %1158 = vmatprep.subr.mxu0 0.0
  %1159 = vmatpush1.msra.mxu0 0.0
  %1160 = vmatprep.subr.mxu0 0.0
  %1161 = vmatpush1.msra.mxu0 0.0
  %1162 = vmatprep.subr.mxu0 0.0
  %1163 = vmatpush1.msra.mxu0 0.0
  %1164 = vmatprep.subr.mxu0 0.0
  %1165 = vmatpush1.msra.mxu0 0.0
  %1166 = vmatprep.subr.mxu0 0.0
  %1167 = vmatpush1.msra.mxu0 0.0
  %1168 = vmatprep.subr.mxu0 0.0
  %1169 = vmatpush1.msra.mxu0 0.0
  %1170 = vmatprep.subr.mxu0 0.0
  %1171 = vmatpush1.msra.mxu0 0.0
  %1172 = vmatprep.subr.mxu0 0.0
  %1173 = vmatpush1.msra.mxu0 0.0
  %1174 = vmatprep.subr.mxu0 0.0
  %1175 = vmatpush1.msra.mxu0 0.0
  %1176 = vmatprep.subr.mxu0 0.0
  %1177 = vmatpush1.msra.mxu0 0.0
  %1178 = vmatprep.mubr.f32.mxu0 0.0
  %1179 = vmatmul.mubr.f32.gmra.mrb[0].mxu0 %v1112
  %v1180 = vpop.f32.mrb[0].mxu0
  %v1181 = vadd.f32 0.0, %v1180
  %v1182 = vpop.f32.mrb[0].mxu0
  %1183 = vdwg.mxu0
  %v1184 = vadd.f32 %v170, %v1181
  %v1185 = vxor.u32 %v1184, 2147483648
  %v1186 = vmul.f32 %v1185, 1.442695
  %v1187 = vpow.pop %v1186
  %v1188 = vadd.f32 %v1187, 1.0
  %v1189 = vrcp.pop %v1188
  %v1190 = vmul.f32 1.0, %v1189
  %v1191 = vtanh.pop %v1184
  %v1192 = vmul.f32 %v1190, %v894
  %1194 = vrot.lane.b32.xlu0 %v1191, 64
  %v1195 = vpop.permute.xlu0 %1194
  %v1197 = vmul.f32 %v1190, %v1195
  %1199 = vrot.lane.b32.xlu0 %v1197, 32
  %v1200 = vpop.permute.xlu0 %1199
  %v1202 = vadd.f32 %v1192, %v1200
  %v1203 = vtanh.pop %v1202
  %1205 = vrot.lane.b32.xlu0 %v1203, 64
  %v1206 = vpop.permute.xlu0 %1205
  %v1208 = vmul.f32 %v1190, %v1206
  %1210 = vrot.lane.b32.xlu0 %v1208, 32
  %v1211 = vpop.permute.xlu0 %1210
  %1213 = vrot.lane.b32.xlu0 %v1005, 64
  %v1214 = vpop.permute.xlu0 %1213
  %v1216 = vsel %vm63, %v1211, %v1214
  %v1218 = vsel %vm296, %v1216, 0
  %1220 = vmatprep.subr.mxu0 0.0
  %1221 = vmatpush1.msra.mxu0 %v20
  %1222 = vmatprep.subr.mxu0 0.0
  %1223 = vmatpush1.msra.mxu0 %v21
  %1224 = vmatprep.subr.mxu0 0.0
  %1225 = vmatpush1.msra.mxu0 %v22
  %1226 = vmatprep.subr.mxu0 0.0
  %1227 = vmatpush1.msra.mxu0 %v23
  %1228 = vmatprep.subr.mxu0 0.0
  %1229 = vmatpush1.msra.mxu0 %v24
  %1230 = vmatprep.subr.mxu0 0.0
  %1231 = vmatpush1.msra.mxu0 %v25
  %1232 = vmatprep.subr.mxu0 0.0
  %1233 = vmatpush1.msra.mxu0 %v26
  %1234 = vmatprep.subr.mxu0 0.0
  %1235 = vmatpush1.msra.mxu0 %v27
  %1236 = vmatprep.subr.mxu0 0.0
  %1237 = vmatpush1.msra.mxu0 0.0
  %1238 = vmatprep.subr.mxu0 0.0
  %1239 = vmatpush1.msra.mxu0 0.0
  %1240 = vmatprep.subr.mxu0 0.0
  %1241 = vmatpush1.msra.mxu0 0.0
  %1242 = vmatprep.subr.mxu0 0.0
  %1243 = vmatpush1.msra.mxu0 0.0
  %1244 = vmatprep.subr.mxu0 0.0
  %1245 = vmatpush1.msra.mxu0 0.0
  %1246 = vmatprep.subr.mxu0 0.0
  %1247 = vmatpush1.msra.mxu0 0.0
  %1248 = vmatprep.subr.mxu0 0.0
  %1249 = vmatpush1.msra.mxu0 0.0
  %1250 = vmatprep.subr.mxu0 0.0
  %1251 = vmatpush1.msra.mxu0 0.0
  %1252 = vmatprep.subr.mxu0 0.0
  %1253 = vmatpush1.msra.mxu0 0.0
  %1254 = vmatprep.subr.mxu0 0.0
  %1255 = vmatpush1.msra.mxu0 0.0
  %1256 = vmatprep.subr.mxu0 0.0
  %1257 = vmatpush1.msra.mxu0 0.0
  %1258 = vmatprep.subr.mxu0 0.0
  %1259 = vmatpush1.msra.mxu0 0.0
  %1260 = vmatprep.subr.mxu0 0.0
  %1261 = vmatpush1.msra.mxu0 0.0
  %1262 = vmatprep.subr.mxu0 0.0
  %1263 = vmatpush1.msra.mxu0 0.0
  %1264 = vmatprep.subr.mxu0 0.0
  %1265 = vmatpush1.msra.mxu0 0.0
  %1266 = vmatprep.subr.mxu0 0.0
  %1267 = vmatpush1.msra.mxu0 0.0
  %1268 = vmatprep.subr.mxu0 0.0
  %1269 = vmatpush1.msra.mxu0 0.0
  %1270 = vmatprep.subr.mxu0 0.0
  %1271 = vmatpush1.msra.mxu0 0.0
  %1272 = vmatprep.subr.mxu0 0.0
  %1273 = vmatpush1.msra.mxu0 0.0
  %1274 = vmatprep.subr.mxu0 0.0
  %1275 = vmatpush1.msra.mxu0 0.0
  %1276 = vmatprep.subr.mxu0 0.0
  %1277 = vmatpush1.msra.mxu0 0.0
  %1278 = vmatprep.subr.mxu0 0.0
  %1279 = vmatpush1.msra.mxu0 0.0
  %1280 = vmatprep.subr.mxu0 0.0
  %1281 = vmatpush1.msra.mxu0 0.0
  %1282 = vmatprep.subr.mxu0 0.0
  %1283 = vmatpush1.msra.mxu0 0.0
  %1284 = vmatprep.mubr.f32.mxu0 0.0
  %1285 = vmatmul.mubr.f32.gmra.mrb[0].mxu0 %v1218
  %v1286 = vpop.f32.mrb[0].mxu0
  %v1287 = vadd.f32 %v32, %v1286
  %v1288 = vpop.f32.mrb[0].mxu0
  %1289 = vdwg.mxu0
  %v1290 = vxor.u32 %v1287, 2147483648
  %v1291 = vmul.f32 %v1290, 1.442695
  %v1292 = vpow.pop %v1291
  %v1293 = vadd.f32 %v1292, 1.0
  %v1294 = vrcp.pop %v1293
  %v1295 = vmul.f32 1.0, %v1294
  %v1296 = vtanh.pop %v1287
  %v1297 = vmul.f32 %v1295, %v999
  %1299 = vrot.lane.b32.xlu0 %v1296, 64
  %v1300 = vpop.permute.xlu0 %1299
  %v1302 = vmul.f32 %v1295, %v1300
  %1304 = vrot.lane.b32.xlu0 %v1302, 32
  %v1305 = vpop.permute.xlu0 %1304
  %v1307 = vadd.f32 %v1297, %v1305
  %v1308 = vtanh.pop %v1307
  %1310 = vrot.lane.b32.xlu0 %v1308, 64
  %v1311 = vpop.permute.xlu0 %1310
  %v1313 = vmul.f32 %v1295, %v1311
  %1315 = vrot.lane.b32.xlu0 %v1313, 32
  %v1316 = vpop.permute.xlu0 %1315
  %1319 = vrot.lane.b32.xlu0 %v1111, 64
  %v1320 = vpop.permute.xlu0 %1319
  %v1322 = vsel %vm63, %v1316, %v1320
  %v1324 = vsel %vm296, %v1322, 0
  %1326 = vmatprep.subr.mxu0 0.0
  %1327 = vmatpush1.msra.mxu0 %v33
  %1328 = vmatprep.subr.mxu0 0.0
  %1329 = vmatpush1.msra.mxu0 %v34
  %1330 = vmatprep.subr.mxu0 0.0
  %1331 = vmatpush1.msra.mxu0 %v35
  %1332 = vmatprep.subr.mxu0 0.0
  %1333 = vmatpush1.msra.mxu0 %v36
  %1334 = vmatprep.subr.mxu0 0.0
  %1335 = vmatpush1.msra.mxu0 %v37
  %1336 = vmatprep.subr.mxu0 0.0
  %1337 = vmatpush1.msra.mxu0 %v38
  %1338 = vmatprep.subr.mxu0 0.0
  %1339 = vmatpush1.msra.mxu0 %v39
  %1340 = vmatprep.subr.mxu0 0.0
  %1341 = vmatpush1.msra.mxu0 %v40
  %1342 = vmatprep.subr.mxu0 0.0
  %1343 = vmatpush1.msra.mxu0 0.0
  %1344 = vmatprep.subr.mxu0 0.0
  %1345 = vmatpush1.msra.mxu0 0.0
  %1346 = vmatprep.subr.mxu0 0.0
  %1347 = vmatpush1.msra.mxu0 0.0
  %1348 = vmatprep.subr.mxu0 0.0
  %1349 = vmatpush1.msra.mxu0 0.0
  %1350 = vmatprep.subr.mxu0 0.0
  %1351 = vmatpush1.msra.mxu0 0.0
  %1352 = vmatprep.subr.mxu0 0.0
  %1353 = vmatpush1.msra.mxu0 0.0
  %1354 = vmatprep.subr.mxu0 0.0
  %1355 = vmatpush1.msra.mxu0 0.0
  %1356 = vmatprep.subr.mxu0 0.0
  %1357 = vmatpush1.msra.mxu0 0.0
  %1358 = vmatprep.subr.mxu0 0.0
  %1359 = vmatpush1.msra.mxu0 0.0
  %1360 = vmatprep.subr.mxu0 0.0
  %1361 = vmatpush1.msra.mxu0 0.0
  %1362 = vmatprep.subr.mxu0 0.0
  %1363 = vmatpush1.msra.mxu0 0.0
  %1364 = vmatprep.subr.mxu0 0.0
  %1365 = vmatpush1.msra.mxu0 0.0
  %1366 = vmatprep.subr.mxu0 0.0
  %1367 = vmatpush1.msra.mxu0 0.0
  %1368 = vmatprep.subr.mxu0 0.0
  %1369 = vmatpush1.msra.mxu0 0.0
  %1370 = vmatprep.subr.mxu0 0.0
  %1371 = vmatpush1.msra.mxu0 0.0
  %1372 = vmatprep.subr.mxu0 0.0
  %1373 = vmatpush1.msra.mxu0 0.0
  %1374 = vmatprep.subr.mxu0 0.0
  %1375 = vmatpush1.msra.mxu0 0.0
  %1376 = vmatprep.subr.mxu0 0.0
  %1377 = vmatpush1.msra.mxu0 0.0
  %1378 = vmatprep.subr.mxu0 0.0
  %1379 = vmatpush1.msra.mxu0 0.0
  %1380 = vmatprep.subr.mxu0 0.0
  %1381 = vmatpush1.msra.mxu0 0.0
  %1382 = vmatprep.subr.mxu0 0.0
  %1383 = vmatpush1.msra.mxu0 0.0
  %1384 = vmatprep.subr.mxu0 0.0
  %1385 = vmatpush1.msra.mxu0 0.0
  %1386 = vmatprep.subr.mxu0 0.0
  %1387 = vmatpush1.msra.mxu0 0.0
  %1388 = vmatprep.subr.mxu0 0.0
  %1389 = vmatpush1.msra.mxu0 0.0
  %1390 = vmatprep.mubr.f32.mxu0 0.0
  %1391 = vmatmul.mubr.f32.gmra.mrb[0].mxu0 %v1324
  %v1392 = vpop.f32.mrb[0].mxu0
  %v1393 = vadd.f32 %v45, %v1392
  %v1394 = vpop.f32.mrb[0].mxu0
  %1395 = vdwg.mxu0
  %v1396 = vxor.u32 %v1393, 2147483648
  %v1397 = vmul.f32 %v1396, 1.442695
  %v1398 = vpow.pop %v1397
  %v1399 = vadd.f32 %v1398, 1.0
  %v1400 = vrcp.pop %v1399
  %v1401 = vmul.f32 1.0, %v1400
  %v1402 = vtanh.pop %v1393
  %v1403 = vmul.f32 %v1401, %v1105
  %1405 = vrot.lane.b32.xlu0 %v1402, 64
  %v1406 = vpop.permute.xlu0 %1405
  %v1408 = vmul.f32 %v1401, %v1406
  %1410 = vrot.lane.b32.xlu0 %v1408, 32
  %v1411 = vpop.permute.xlu0 %1410
  %v1413 = vadd.f32 %v1403, %v1411
  %v1414 = vtanh.pop %v1413
  %1416 = vrot.lane.b32.xlu0 %v1414, 64
  %v1417 = vpop.permute.xlu0 %1416
  %v1419 = vmul.f32 %v1401, %v1417
  %v1420 = vsel %vm63, %v1211, 0
  %1422 = vmatprep.subr.mxu0 0.0
  %1423 = vmatpush1.msra.mxu0 %v15
  %1424 = vmatprep.subr.mxu0 0.0
  %1425 = vmatpush1.msra.mxu0 %v16
  %1426 = vmatprep.subr.mxu0 0.0
  %1427 = vmatpush1.msra.mxu0 %v17
  %1428 = vmatprep.subr.mxu0 0.0
  %1429 = vmatpush1.msra.mxu0 %v18
  %1430 = vmatprep.subr.mxu0 0.0
  %1431 = vmatpush1.msra.mxu0 0.0
  %1432 = vmatprep.subr.mxu0 0.0
  %1433 = vmatpush1.msra.mxu0 0.0
  %1434 = vmatprep.subr.mxu0 0.0
  %1435 = vmatpush1.msra.mxu0 0.0
  %1436 = vmatprep.subr.mxu0 0.0
  %1437 = vmatpush1.msra.mxu0 0.0
  %1438 = vmatprep.subr.mxu0 0.0
  %1439 = vmatpush1.msra.mxu0 0.0
  %1440 = vmatprep.subr.mxu0 0.0
  %1441 = vmatpush1.msra.mxu0 0.0
  %1442 = vmatprep.subr.mxu0 0.0
  %1443 = vmatpush1.msra.mxu0 0.0
  %1444 = vmatprep.subr.mxu0 0.0
  %1445 = vmatpush1.msra.mxu0 0.0
  %1446 = vmatprep.subr.mxu0 0.0
  %1447 = vmatpush1.msra.mxu0 0.0
  %1448 = vmatprep.subr.mxu0 0.0
  %1449 = vmatpush1.msra.mxu0 0.0
  %1450 = vmatprep.subr.mxu0 0.0
  %1451 = vmatpush1.msra.mxu0 0.0
  %1452 = vmatprep.subr.mxu0 0.0
  %1453 = vmatpush1.msra.mxu0 0.0
  %1454 = vmatprep.subr.mxu0 0.0
  %1455 = vmatpush1.msra.mxu0 0.0
  %1456 = vmatprep.subr.mxu0 0.0
  %1457 = vmatpush1.msra.mxu0 0.0
  %1458 = vmatprep.subr.mxu0 0.0
  %1459 = vmatpush1.msra.mxu0 0.0
  %1460 = vmatprep.subr.mxu0 0.0
  %1461 = vmatpush1.msra.mxu0 0.0
  %1462 = vmatprep.subr.mxu0 0.0
  %1463 = vmatpush1.msra.mxu0 0.0
  %1464 = vmatprep.subr.mxu0 0.0
  %1465 = vmatpush1.msra.mxu0 0.0
  %1466 = vmatprep.subr.mxu0 0.0
  %1467 = vmatpush1.msra.mxu0 0.0
  %1468 = vmatprep.subr.mxu0 0.0
  %1469 = vmatpush1.msra.mxu0 0.0
  %1470 = vmatprep.subr.mxu0 0.0
  %1471 = vmatpush1.msra.mxu0 0.0
  %1472 = vmatprep.subr.mxu0 0.0
  %1473 = vmatpush1.msra.mxu0 0.0
  %1474 = vmatprep.subr.mxu0 0.0
  %1475 = vmatpush1.msra.mxu0 0.0
  %1476 = vmatprep.subr.mxu0 0.0
  %1477 = vmatpush1.msra.mxu0 0.0
  %1478 = vmatprep.subr.mxu0 0.0
  %1479 = vmatpush1.msra.mxu0 0.0
  %1480 = vmatprep.subr.mxu0 0.0
  %1481 = vmatpush1.msra.mxu0 0.0
  %1482 = vmatprep.subr.mxu0 0.0
  %1483 = vmatpush1.msra.mxu0 0.0
  %1484 = vmatprep.subr.mxu0 0.0
  %1485 = vmatpush1.msra.mxu0 0.0
  %1486 = vmatprep.mubr.f32.mxu0 0.0
  %1487 = vmatmul.mubr.f32.gmra.mrb[0].mxu0 %v1420
  %v1488 = vpop.f32.mrb[0].mxu0
  %v1489 = vadd.f32 0.0, %v1488
  %v1490 = vpop.f32.mrb[0].mxu0
  %1491 = vdwg.mxu0
  %v1492 = vadd.f32 %v175, %v1489
  %v1493 = vxor.u32 %v1492, 2147483648
  %v1494 = vmul.f32 %v1493, 1.442695
  %v1495 = vpow.pop %v1494
  %v1496 = vadd.f32 %v1495, 1.0
  %v1497 = vrcp.pop %v1496
  %v1498 = vmul.f32 1.0, %v1497
  %v1499 = vtanh.pop %v1492
  %v1500 = vmul.f32 %v1498, %v1202
  %1502 = vrot.lane.b32.xlu0 %v1499, 64
  %v1503 = vpop.permute.xlu0 %1502
  %v1505 = vmul.f32 %v1498, %v1503
  %1507 = vrot.lane.b32.xlu0 %v1505, 32
  %v1508 = vpop.permute.xlu0 %1507
  %v1510 = vadd.f32 %v1500, %v1508
  %v1511 = vtanh.pop %v1510
  %1513 = vrot.lane.b32.xlu0 %v1511, 64
  %v1514 = vpop.permute.xlu0 %1513
  %v1516 = vmul.f32 %v1498, %v1514
  %1518 = vrot.lane.b32.xlu0 %v1516, 32
  %v1519 = vpop.permute.xlu0 %1518
  %1521 = vrot.lane.b32.xlu0 %v1313, 64
  %v1522 = vpop.permute.xlu0 %1521
  %v1524 = vsel %vm63, %v1519, %v1522
  %v1526 = vsel %vm296, %v1524, 0
  %1528 = vmatprep.subr.mxu0 0.0
  %1529 = vmatpush1.msra.mxu0 %v20
  %1530 = vmatprep.subr.mxu0 0.0
  %1531 = vmatpush1.msra.mxu0 %v21
  %1532 = vmatprep.subr.mxu0 0.0
  %1533 = vmatpush1.msra.mxu0 %v22
  %1534 = vmatprep.subr.mxu0 0.0
  %1535 = vmatpush1.msra.mxu0 %v23
  %1536 = vmatprep.subr.mxu0 0.0
  %1537 = vmatpush1.msra.mxu0 %v24
  %1538 = vmatprep.subr.mxu0 0.0
  %1539 = vmatpush1.msra.mxu0 %v25
  %1540 = vmatprep.subr.mxu0 0.0
  %1541 = vmatpush1.msra.mxu0 %v26
  %1542 = vmatprep.subr.mxu0 0.0
  %1543 = vmatpush1.msra.mxu0 %v27
  %1544 = vmatprep.subr.mxu0 0.0
  %1545 = vmatpush1.msra.mxu0 0.0
  %1546 = vmatprep.subr.mxu0 0.0
  %1547 = vmatpush1.msra.mxu0 0.0
  %1548 = vmatprep.subr.mxu0 0.0
  %1549 = vmatpush1.msra.mxu0 0.0
  %1550 = vmatprep.subr.mxu0 0.0
  %1551 = vmatpush1.msra.mxu0 0.0
  %1552 = vmatprep.subr.mxu0 0.0
  %1553 = vmatpush1.msra.mxu0 0.0
  %1554 = vmatprep.subr.mxu0 0.0
  %1555 = vmatpush1.msra.mxu0 0.0
  %1556 = vmatprep.subr.mxu0 0.0
  %1557 = vmatpush1.msra.mxu0 0.0
  %1558 = vmatprep.subr.mxu0 0.0
  %1559 = vmatpush1.msra.mxu0 0.0
  %1560 = vmatprep.subr.mxu0 0.0
  %1561 = vmatpush1.msra.mxu0 0.0
  %1562 = vmatprep.subr.mxu0 0.0
  %1563 = vmatpush1.msra.mxu0 0.0
  %1564 = vmatprep.subr.mxu0 0.0
  %1565 = vmatpush1.msra.mxu0 0.0
  %1566 = vmatprep.subr.mxu0 0.0
  %1567 = vmatpush1.msra.mxu0 0.0
  %1568 = vmatprep.subr.mxu0 0.0
  %1569 = vmatpush1.msra.mxu0 0.0
  %1570 = vmatprep.subr.mxu0 0.0
  %1571 = vmatpush1.msra.mxu0 0.0
  %1572 = vmatprep.subr.mxu0 0.0
  %1573 = vmatpush1.msra.mxu0 0.0
  %1574 = vmatprep.subr.mxu0 0.0
  %1575 = vmatpush1.msra.mxu0 0.0
  %1576 = vmatprep.subr.mxu0 0.0
  %1577 = vmatpush1.msra.mxu0 0.0
  %1578 = vmatprep.subr.mxu0 0.0
  %1579 = vmatpush1.msra.mxu0 0.0
  %1580 = vmatprep.subr.mxu0 0.0
  %1581 = vmatpush1.msra.mxu0 0.0
  %1582 = vmatprep.subr.mxu0 0.0
  %1583 = vmatpush1.msra.mxu0 0.0
  %1584 = vmatprep.subr.mxu0 0.0
  %1585 = vmatpush1.msra.mxu0 0.0
  %1586 = vmatprep.subr.mxu0 0.0
  %1587 = vmatpush1.msra.mxu0 0.0
  %1588 = vmatprep.subr.mxu0 0.0
  %1589 = vmatpush1.msra.mxu0 0.0
  %1590 = vmatprep.subr.mxu0 0.0
  %1591 = vmatpush1.msra.mxu0 0.0
  %1592 = vmatprep.mubr.f32.mxu0 0.0
  %1593 = vmatmul.mubr.f32.gmra.mrb[0].mxu0 %v1526
  %v1594 = vpop.f32.mrb[0].mxu0
  %v1595 = vadd.f32 %v32, %v1594
  %v1596 = vpop.f32.mrb[0].mxu0
  %1597 = vdwg.mxu0
  %v1598 = vxor.u32 %v1595, 2147483648
  %v1599 = vmul.f32 %v1598, 1.442695
  %v1600 = vpow.pop %v1599
  %v1601 = vadd.f32 %v1600, 1.0
  %v1602 = vrcp.pop %v1601
  %v1603 = vmul.f32 1.0, %v1602
  %v1604 = vtanh.pop %v1595
  %v1605 = vmul.f32 %v1603, %v1307
  %1607 = vrot.lane.b32.xlu0 %v1604, 64
  %v1608 = vpop.permute.xlu0 %1607
  %v1610 = vmul.f32 %v1603, %v1608
  %1612 = vrot.lane.b32.xlu0 %v1610, 32
  %v1613 = vpop.permute.xlu0 %1612
  %v1615 = vadd.f32 %v1605, %v1613
  %v1616 = vtanh.pop %v1615
  %1618 = vrot.lane.b32.xlu0 %v1616, 64
  %v1619 = vpop.permute.xlu0 %1618
  %v1621 = vmul.f32 %v1603, %v1619
  %1623 = vrot.lane.b32.xlu0 %v1621, 32
  %v1624 = vpop.permute.xlu0 %1623
  %1627 = vrot.lane.b32.xlu0 %v1419, 64
  %v1628 = vpop.permute.xlu0 %1627
  %v1630 = vsel %vm63, %v1624, %v1628
  %v1632 = vsel %vm296, %v1630, 0
  %1634 = vmatprep.subr.mxu0 0.0
  %1635 = vmatpush1.msra.mxu0 %v33
  %1636 = vmatprep.subr.mxu0 0.0
  %1637 = vmatpush1.msra.mxu0 %v34
  %1638 = vmatprep.subr.mxu0 0.0
  %1639 = vmatpush1.msra.mxu0 %v35
  %1640 = vmatprep.subr.mxu0 0.0
  %1641 = vmatpush1.msra.mxu0 %v36
  %1642 = vmatprep.subr.mxu0 0.0
  %1643 = vmatpush1.msra.mxu0 %v37
  %1644 = vmatprep.subr.mxu0 0.0
  %1645 = vmatpush1.msra.mxu0 %v38
  %1646 = vmatprep.subr.mxu0 0.0
  %1647 = vmatpush1.msra.mxu0 %v39
  %1648 = vmatprep.subr.mxu0 0.0
  %1649 = vmatpush1.msra.mxu0 %v40
  %1650 = vmatprep.subr.mxu0 0.0
  %1651 = vmatpush1.msra.mxu0 0.0
  %1652 = vmatprep.subr.mxu0 0.0
  %1653 = vmatpush1.msra.mxu0 0.0
  %1654 = vmatprep.subr.mxu0 0.0
  %1655 = vmatpush1.msra.mxu0 0.0
  %1656 = vmatprep.subr.mxu0 0.0
  %1657 = vmatpush1.msra.mxu0 0.0
  %1658 = vmatprep.subr.mxu0 0.0
  %1659 = vmatpush1.msra.mxu0 0.0
  %1660 = vmatprep.subr.mxu0 0.0
  %1661 = vmatpush1.msra.mxu0 0.0
  %1662 = vmatprep.subr.mxu0 0.0
  %1663 = vmatpush1.msra.mxu0 0.0
  %1664 = vmatprep.subr.mxu0 0.0
  %1665 = vmatpush1.msra.mxu0 0.0
  %1666 = vmatprep.subr.mxu0 0.0
  %1667 = vmatpush1.msra.mxu0 0.0
  %1668 = vmatprep.subr.mxu0 0.0
  %1669 = vmatpush1.msra.mxu0 0.0
  %1670 = vmatprep.subr.mxu0 0.0
  %1671 = vmatpush1.msra.mxu0 0.0
  %1672 = vmatprep.subr.mxu0 0.0
  %1673 = vmatpush1.msra.mxu0 0.0
  %1674 = vmatprep.subr.mxu0 0.0
  %1675 = vmatpush1.msra.mxu0 0.0
  %1676 = vmatprep.subr.mxu0 0.0
  %1677 = vmatpush1.msra.mxu0 0.0
  %1678 = vmatprep.subr.mxu0 0.0
  %1679 = vmatpush1.msra.mxu0 0.0
  %1680 = vmatprep.subr.mxu0 0.0
  %1681 = vmatpush1.msra.mxu0 0.0
  %1682 = vmatprep.subr.mxu0 0.0
  %1683 = vmatpush1.msra.mxu0 0.0
  %1684 = vmatprep.subr.mxu0 0.0
  %1685 = vmatpush1.msra.mxu0 0.0
  %1686 = vmatprep.subr.mxu0 0.0
  %1687 = vmatpush1.msra.mxu0 0.0
  %1688 = vmatprep.subr.mxu0 0.0
  %1689 = vmatpush1.msra.mxu0 0.0
  %1690 = vmatprep.subr.mxu0 0.0
  %1691 = vmatpush1.msra.mxu0 0.0
  %1692 = vmatprep.subr.mxu0 0.0
  %1693 = vmatpush1.msra.mxu0 0.0
  %1694 = vmatprep.subr.mxu0 0.0
  %1695 = vmatpush1.msra.mxu0 0.0
  %1696 = vmatprep.subr.mxu0 0.0
  %1697 = vmatpush1.msra.mxu0 0.0
  %1698 = vmatprep.mubr.f32.mxu0 0.0
  %1699 = vmatmul.mubr.f32.gmra.mrb[0].mxu0 %v1632
  %v1700 = vpop.f32.mrb[0].mxu0
  %v1701 = vadd.f32 %v45, %v1700
  %v1702 = vpop.f32.mrb[0].mxu0
  %1703 = vdwg.mxu0
  %v1704 = vxor.u32 %v1701, 2147483648
  %v1705 = vmul.f32 %v1704, 1.442695
  %v1706 = vpow.pop %v1705
  %v1707 = vadd.f32 %v1706, 1.0
  %v1708 = vrcp.pop %v1707
  %v1709 = vmul.f32 1.0, %v1708
  %v1710 = vtanh.pop %v1701
  %v1711 = vmul.f32 %v1709, %v1413
  %1713 = vrot.lane.b32.xlu0 %v1710, 64
  %v1714 = vpop.permute.xlu0 %1713
  %v1716 = vmul.f32 %v1709, %v1714
  %1718 = vrot.lane.b32.xlu0 %v1716, 32
  %v1719 = vpop.permute.xlu0 %1718
  %v1721 = vadd.f32 %v1711, %v1719
  %v1722 = vtanh.pop %v1721
  %1724 = vrot.lane.b32.xlu0 %v1722, 64
  %v1725 = vpop.permute.xlu0 %1724
  %v1727 = vmul.f32 %v1709, %v1725
  %v1728 = vsel %vm63, %v1519, 0
  %1730 = vmatprep.subr.mxu0 0.0
  %1731 = vmatpush1.msra.mxu0 %v15
  %1732 = vmatprep.subr.mxu0 0.0
  %1733 = vmatpush1.msra.mxu0 %v16
  %1734 = vmatprep.subr.mxu0 0.0
  %1735 = vmatpush1.msra.mxu0 %v17
  %1736 = vmatprep.subr.mxu0 0.0
  %1737 = vmatpush1.msra.mxu0 %v18
  %1738 = vmatprep.subr.mxu0 0.0
  %1739 = vmatpush1.msra.mxu0 0.0
  %1740 = vmatprep.subr.mxu0 0.0
  %1741 = vmatpush1.msra.mxu0 0.0
  %1742 = vmatprep.subr.mxu0 0.0
  %1743 = vmatpush1.msra.mxu0 0.0
  %1744 = vmatprep.subr.mxu0 0.0
  %1745 = vmatpush1.msra.mxu0 0.0
  %1746 = vmatprep.subr.mxu0 0.0
  %1747 = vmatpush1.msra.mxu0 0.0
  %1748 = vmatprep.subr.mxu0 0.0
  %1749 = vmatpush1.msra.mxu0 0.0
  %1750 = vmatprep.subr.mxu0 0.0
  %1751 = vmatpush1.msra.mxu0 0.0
  %1752 = vmatprep.subr.mxu0 0.0
  %1753 = vmatpush1.msra.mxu0 0.0
  %1754 = vmatprep.subr.mxu0 0.0
  %1755 = vmatpush1.msra.mxu0 0.0
  %1756 = vmatprep.subr.mxu0 0.0
  %1757 = vmatpush1.msra.mxu0 0.0
  %1758 = vmatprep.subr.mxu0 0.0
  %1759 = vmatpush1.msra.mxu0 0.0
  %1760 = vmatprep.subr.mxu0 0.0
  %1761 = vmatpush1.msra.mxu0 0.0
  %1762 = vmatprep.subr.mxu0 0.0
  %1763 = vmatpush1.msra.mxu0 0.0
  %1764 = vmatprep.subr.mxu0 0.0
  %1765 = vmatpush1.msra.mxu0 0.0
  %1766 = vmatprep.subr.mxu0 0.0
  %1767 = vmatpush1.msra.mxu0 0.0
  %1768 = vmatprep.subr.mxu0 0.0
  %1769 = vmatpush1.msra.mxu0 0.0
  %1770 = vmatprep.subr.mxu0 0.0
  %1771 = vmatpush1.msra.mxu0 0.0
  %1772 = vmatprep.subr.mxu0 0.0
  %1773 = vmatpush1.msra.mxu0 0.0
  %1774 = vmatprep.subr.mxu0 0.0
  %1775 = vmatpush1.msra.mxu0 0.0
  %1776 = vmatprep.subr.mxu0 0.0
  %1777 = vmatpush1.msra.mxu0 0.0
  %1778 = vmatprep.subr.mxu0 0.0
  %1779 = vmatpush1.msra.mxu0 0.0
  %1780 = vmatprep.subr.mxu0 0.0
  %1781 = vmatpush1.msra.mxu0 0.0
  %1782 = vmatprep.subr.mxu0 0.0
  %1783 = vmatpush1.msra.mxu0 0.0
  %1784 = vmatprep.subr.mxu0 0.0
  %1785 = vmatpush1.msra.mxu0 0.0
  %1786 = vmatprep.subr.mxu0 0.0
  %1787 = vmatpush1.msra.mxu0 0.0
  %1788 = vmatprep.subr.mxu0 0.0
  %1789 = vmatpush1.msra.mxu0 0.0
  %1790 = vmatprep.subr.mxu0 0.0
  %1791 = vmatpush1.msra.mxu0 0.0
  %1792 = vmatprep.subr.mxu0 0.0
  %1793 = vmatpush1.msra.mxu0 0.0
  %1794 = vmatprep.mubr.f32.mxu0 0.0
  %1795 = vmatmul.mubr.f32.gmra.mrb[0].mxu0 %v1728
  %v1796 = vpop.f32.mrb[0].mxu0
  %v1797 = vadd.f32 0.0, %v1796
  %v1798 = vpop.f32.mrb[0].mxu0
  %1799 = vdwg.mxu0
  %v1800 = vadd.f32 %v180, %v1797
  %v1801 = vxor.u32 %v1800, 2147483648
  %v1802 = vmul.f32 %v1801, 1.442695
  %v1803 = vpow.pop %v1802
  %v1804 = vadd.f32 %v1803, 1.0
  %v1805 = vrcp.pop %v1804
  %v1806 = vmul.f32 1.0, %v1805
  %v1807 = vtanh.pop %v1800
  %v1808 = vmul.f32 %v1806, %v1510
  %1810 = vrot.lane.b32.xlu0 %v1807, 64
  %v1811 = vpop.permute.xlu0 %1810
  %v1813 = vmul.f32 %v1806, %v1811
  %1815 = vrot.lane.b32.xlu0 %v1813, 32
  %v1816 = vpop.permute.xlu0 %1815
  %v1818 = vadd.f32 %v1808, %v1816
  %v1819 = vtanh.pop %v1818
  %1821 = vrot.lane.b32.xlu0 %v1819, 64
  %v1822 = vpop.permute.xlu0 %1821
  %v1824 = vmul.f32 %v1806, %v1822
  %1826 = vrot.lane.b32.xlu0 %v1824, 32
  %v1827 = vpop.permute.xlu0 %1826
  %1829 = vrot.lane.b32.xlu0 %v1621, 64
  %v1830 = vpop.permute.xlu0 %1829
  %v1832 = vsel %vm63, %v1827, %v1830
  %v1834 = vsel %vm296, %v1832, 0
  %1836 = vmatprep.subr.mxu0 0.0
  %1837 = vmatpush1.msra.mxu0 %v20
  %1838 = vmatprep.subr.mxu0 0.0
  %1839 = vmatpush1.msra.mxu0 %v21
  %1840 = vmatprep.subr.mxu0 0.0
  %1841 = vmatpush1.msra.mxu0 %v22
  %1842 = vmatprep.subr.mxu0 0.0
  %1843 = vmatpush1.msra.mxu0 %v23
  %1844 = vmatprep.subr.mxu0 0.0
  %1845 = vmatpush1.msra.mxu0 %v24
  %1846 = vmatprep.subr.mxu0 0.0
  %1847 = vmatpush1.msra.mxu0 %v25
  %1848 = vmatprep.subr.mxu0 0.0
  %1849 = vmatpush1.msra.mxu0 %v26
  %1850 = vmatprep.subr.mxu0 0.0
  %1851 = vmatpush1.msra.mxu0 %v27
  %1852 = vmatprep.subr.mxu0 0.0
  %1853 = vmatpush1.msra.mxu0 0.0
  %1854 = vmatprep.subr.mxu0 0.0
  %1855 = vmatpush1.msra.mxu0 0.0
  %1856 = vmatprep.subr.mxu0 0.0
  %1857 = vmatpush1.msra.mxu0 0.0
  %1858 = vmatprep.subr.mxu0 0.0
  %1859 = vmatpush1.msra.mxu0 0.0
  %1860 = vmatprep.subr.mxu0 0.0
  %1861 = vmatpush1.msra.mxu0 0.0
  %1862 = vmatprep.subr.mxu0 0.0
  %1863 = vmatpush1.msra.mxu0 0.0
  %1864 = vmatprep.subr.mxu0 0.0
  %1865 = vmatpush1.msra.mxu0 0.0
  %1866 = vmatprep.subr.mxu0 0.0
  %1867 = vmatpush1.msra.mxu0 0.0
  %1868 = vmatprep.subr.mxu0 0.0
  %1869 = vmatpush1.msra.mxu0 0.0
  %1870 = vmatprep.subr.mxu0 0.0
  %1871 = vmatpush1.msra.mxu0 0.0
  %1872 = vmatprep.subr.mxu0 0.0
  %1873 = vmatpush1.msra.mxu0 0.0
  %1874 = vmatprep.subr.mxu0 0.0
  %1875 = vmatpush1.msra.mxu0 0.0
  %1876 = vmatprep.subr.mxu0 0.0
  %1877 = vmatpush1.msra.mxu0 0.0
  %1878 = vmatprep.subr.mxu0 0.0
  %1879 = vmatpush1.msra.mxu0 0.0
  %1880 = vmatprep.subr.mxu0 0.0
  %1881 = vmatpush1.msra.mxu0 0.0
  %1882 = vmatprep.subr.mxu0 0.0
  %1883 = vmatpush1.msra.mxu0 0.0
  %1884 = vmatprep.subr.mxu0 0.0
  %1885 = vmatpush1.msra.mxu0 0.0
  %1886 = vmatprep.subr.mxu0 0.0
  %1887 = vmatpush1.msra.mxu0 0.0
  %1888 = vmatprep.subr.mxu0 0.0
  %1889 = vmatpush1.msra.mxu0 0.0
  %1890 = vmatprep.subr.mxu0 0.0
  %1891 = vmatpush1.msra.mxu0 0.0
  %1892 = vmatprep.subr.mxu0 0.0
  %1893 = vmatpush1.msra.mxu0 0.0
  %1894 = vmatprep.subr.mxu0 0.0
  %1895 = vmatpush1.msra.mxu0 0.0
  %1896 = vmatprep.subr.mxu0 0.0
  %1897 = vmatpush1.msra.mxu0 0.0
  %1898 = vmatprep.subr.mxu0 0.0
  %1899 = vmatpush1.msra.mxu0 0.0
  %1900 = vmatprep.mubr.f32.mxu0 0.0
  %1901 = vmatmul.mubr.f32.gmra.mrb[0].mxu0 %v1834
  %v1902 = vpop.f32.mrb[0].mxu0
  %v1903 = vadd.f32 %v32, %v1902
  %v1904 = vpop.f32.mrb[0].mxu0
  %1905 = vdwg.mxu0
  %v1906 = vxor.u32 %v1903, 2147483648
  %v1907 = vmul.f32 %v1906, 1.442695
  %v1908 = vpow.pop %v1907
  %v1909 = vadd.f32 %v1908, 1.0
  %v1910 = vrcp.pop %v1909
  %v1911 = vmul.f32 1.0, %v1910
  %v1912 = vtanh.pop %v1903
  %v1913 = vmul.f32 %v1911, %v1615
  %1915 = vrot.lane.b32.xlu0 %v1912, 64
  %v1916 = vpop.permute.xlu0 %1915
  %v1918 = vmul.f32 %v1911, %v1916
  %1920 = vrot.lane.b32.xlu0 %v1918, 32
  %v1921 = vpop.permute.xlu0 %1920
  %v1923 = vadd.f32 %v1913, %v1921
  %v1924 = vtanh.pop %v1923
  %1926 = vrot.lane.b32.xlu0 %v1924, 64
  %v1927 = vpop.permute.xlu0 %1926
  %v1929 = vmul.f32 %v1911, %v1927
  %1931 = vrot.lane.b32.xlu0 %v1929, 32
  %v1932 = vpop.permute.xlu0 %1931
  %1935 = vrot.lane.b32.xlu0 %v1727, 64
  %v1936 = vpop.permute.xlu0 %1935
  %v1938 = vsel %vm63, %v1932, %v1936
  %v1940 = vsel %vm296, %v1938, 0
  %1942 = vmatprep.subr.mxu0 0.0
  %1943 = vmatpush1.msra.mxu0 %v33
  %1944 = vmatprep.subr.mxu0 0.0
  %1945 = vmatpush1.msra.mxu0 %v34
  %1946 = vmatprep.subr.mxu0 0.0
  %1947 = vmatpush1.msra.mxu0 %v35
  %1948 = vmatprep.subr.mxu0 0.0
  %1949 = vmatpush1.msra.mxu0 %v36
  %1950 = vmatprep.subr.mxu0 0.0
  %1951 = vmatpush1.msra.mxu0 %v37
  %1952 = vmatprep.subr.mxu0 0.0
  %1953 = vmatpush1.msra.mxu0 %v38
  %1954 = vmatprep.subr.mxu0 0.0
  %1955 = vmatpush1.msra.mxu0 %v39
  %1956 = vmatprep.subr.mxu0 0.0
  %1957 = vmatpush1.msra.mxu0 %v40
  %1958 = vmatprep.subr.mxu0 0.0
  %1959 = vmatpush1.msra.mxu0 0.0
  %1960 = vmatprep.subr.mxu0 0.0
  %1961 = vmatpush1.msra.mxu0 0.0
  %1962 = vmatprep.subr.mxu0 0.0
  %1963 = vmatpush1.msra.mxu0 0.0
  %1964 = vmatprep.subr.mxu0 0.0
  %1965 = vmatpush1.msra.mxu0 0.0
  %1966 = vmatprep.subr.mxu0 0.0
  %1967 = vmatpush1.msra.mxu0 0.0
  %1968 = vmatprep.subr.mxu0 0.0
  %1969 = vmatpush1.msra.mxu0 0.0
  %1970 = vmatprep.subr.mxu0 0.0
  %1971 = vmatpush1.msra.mxu0 0.0
  %1972 = vmatprep.subr.mxu0 0.0
  %1973 = vmatpush1.msra.mxu0 0.0
  %1974 = vmatprep.subr.mxu0 0.0
  %1975 = vmatpush1.msra.mxu0 0.0
  %1976 = vmatprep.subr.mxu0 0.0
  %1977 = vmatpush1.msra.mxu0 0.0
  %1978 = vmatprep.subr.mxu0 0.0
  %1979 = vmatpush1.msra.mxu0 0.0
  %1980 = vmatprep.subr.mxu0 0.0
  %1981 = vmatpush1.msra.mxu0 0.0
  %1982 = vmatprep.subr.mxu0 0.0
  %1983 = vmatpush1.msra.mxu0 0.0
  %1984 = vmatprep.subr.mxu0 0.0
  %1985 = vmatpush1.msra.mxu0 0.0
  %1986 = vmatprep.subr.mxu0 0.0
  %1987 = vmatpush1.msra.mxu0 0.0
  %1988 = vmatprep.subr.mxu0 0.0
  %1989 = vmatpush1.msra.mxu0 0.0
  %1990 = vmatprep.subr.mxu0 0.0
  %1991 = vmatpush1.msra.mxu0 0.0
  %1992 = vmatprep.subr.mxu0 0.0
  %1993 = vmatpush1.msra.mxu0 0.0
  %1994 = vmatprep.subr.mxu0 0.0
  %1995 = vmatpush1.msra.mxu0 0.0
  %1996 = vmatprep.subr.mxu0 0.0
  %1997 = vmatpush1.msra.mxu0 0.0
  %1998 = vmatprep.subr.mxu0 0.0
  %1999 = vmatpush1.msra.mxu0 0.0
  %2000 = vmatprep.subr.mxu0 0.0
  %2001 = vmatpush1.msra.mxu0 0.0
  %2002 = vmatprep.subr.mxu0 0.0
  %2003 = vmatpush1.msra.mxu0 0.0
  %2004 = vmatprep.subr.mxu0 0.0
  %2005 = vmatpush1.msra.mxu0 0.0
  %2006 = vmatprep.mubr.f32.mxu0 0.0
  %2007 = vmatmul.mubr.f32.gmra.mrb[0].mxu0 %v1940
  %v2008 = vpop.f32.mrb[0].mxu0
  %v2009 = vadd.f32 %v45, %v2008
  %v2010 = vpop.f32.mrb[0].mxu0
  %2011 = vdwg.mxu0
  %v2012 = vxor.u32 %v2009, 2147483648
  %v2013 = vmul.f32 %v2012, 1.442695
  %v2014 = vpow.pop %v2013
  %v2015 = vadd.f32 %v2014, 1.0
  %v2016 = vrcp.pop %v2015
  %v2017 = vmul.f32 1.0, %v2016
  %v2018 = vtanh.pop %v2009
  %v2019 = vmul.f32 %v2017, %v1721
  %2021 = vrot.lane.b32.xlu0 %v2018, 64
  %v2022 = vpop.permute.xlu0 %2021
  %v2024 = vmul.f32 %v2017, %v2022
  %2026 = vrot.lane.b32.xlu0 %v2024, 32
  %v2027 = vpop.permute.xlu0 %2026
  %v2029 = vadd.f32 %v2019, %v2027
  %v2030 = vtanh.pop %v2029
  %2032 = vrot.lane.b32.xlu0 %v2030, 64
  %v2033 = vpop.permute.xlu0 %2032
  %v2035 = vmul.f32 %v2017, %v2033
  %v2036 = vsel %vm63, %v1827, 0
  %2038 = vmatprep.subr.mxu0 0.0
  %2039 = vmatpush1.msra.mxu0 %v15
  %2040 = vmatprep.subr.mxu0 0.0
  %2041 = vmatpush1.msra.mxu0 %v16
  %2042 = vmatprep.subr.mxu0 0.0
  %2043 = vmatpush1.msra.mxu0 %v17
  %2044 = vmatprep.subr.mxu0 0.0
  %2045 = vmatpush1.msra.mxu0 %v18
  %2046 = vmatprep.subr.mxu0 0.0
  %2047 = vmatpush1.msra.mxu0 0.0
  %2048 = vmatprep.subr.mxu0 0.0
  %2049 = vmatpush1.msra.mxu0 0.0
  %2050 = vmatprep.subr.mxu0 0.0
  %2051 = vmatpush1.msra.mxu0 0.0
  %2052 = vmatprep.subr.mxu0 0.0
  %2053 = vmatpush1.msra.mxu0 0.0
  %2054 = vmatprep.subr.mxu0 0.0
  %2055 = vmatpush1.msra.mxu0 0.0
  %2056 = vmatprep.subr.mxu0 0.0
  %2057 = vmatpush1.msra.mxu0 0.0
  %2058 = vmatprep.subr.mxu0 0.0
  %2059 = vmatpush1.msra.mxu0 0.0
  %2060 = vmatprep.subr.mxu0 0.0
  %2061 = vmatpush1.msra.mxu0 0.0
  %2062 = vmatprep.subr.mxu0 0.0
  %2063 = vmatpush1.msra.mxu0 0.0
  %2064 = vmatprep.subr.mxu0 0.0
  %2065 = vmatpush1.msra.mxu0 0.0
  %2066 = vmatprep.subr.mxu0 0.0
  %2067 = vmatpush1.msra.mxu0 0.0
  %2068 = vmatprep.subr.mxu0 0.0
  %2069 = vmatpush1.msra.mxu0 0.0
  %2070 = vmatprep.subr.mxu0 0.0
  %2071 = vmatpush1.msra.mxu0 0.0
  %2072 = vmatprep.subr.mxu0 0.0
  %2073 = vmatpush1.msra.mxu0 0.0
  %2074 = vmatprep.subr.mxu0 0.0
  %2075 = vmatpush1.msra.mxu0 0.0
  %2076 = vmatprep.subr.mxu0 0.0
  %2077 = vmatpush1.msra.mxu0 0.0
  %2078 = vmatprep.subr.mxu0 0.0
  %2079 = vmatpush1.msra.mxu0 0.0
  %2080 = vmatprep.subr.mxu0 0.0
  %2081 = vmatpush1.msra.mxu0 0.0
  %2082 = vmatprep.subr.mxu0 0.0
  %2083 = vmatpush1.msra.mxu0 0.0
  %2084 = vmatprep.subr.mxu0 0.0
  %2085 = vmatpush1.msra.mxu0 0.0
  %2086 = vmatprep.subr.mxu0 0.0
  %2087 = vmatpush1.msra.mxu0 0.0
  %2088 = vmatprep.subr.mxu0 0.0
  %2089 = vmatpush1.msra.mxu0 0.0
  %2090 = vmatprep.subr.mxu0 0.0
  %2091 = vmatpush1.msra.mxu0 0.0
  %2092 = vmatprep.subr.mxu0 0.0
  %2093 = vmatpush1.msra.mxu0 0.0
  %2094 = vmatprep.subr.mxu0 0.0
  %2095 = vmatpush1.msra.mxu0 0.0
  %2096 = vmatprep.subr.mxu0 0.0
  %2097 = vmatpush1.msra.mxu0 0.0
  %2098 = vmatprep.subr.mxu0 0.0
  %2099 = vmatpush1.msra.mxu0 0.0
  %2100 = vmatprep.subr.mxu0 0.0
  %2101 = vmatpush1.msra.mxu0 0.0
  %2102 = vmatprep.mubr.f32.mxu0 0.0
  %2103 = vmatmul.mubr.f32.gmra.mrb[0].mxu0 %v2036
  %v2104 = vpop.f32.mrb[0].mxu0
  %v2105 = vadd.f32 0.0, %v2104
  %v2106 = vpop.f32.mrb[0].mxu0
  %2107 = vdwg.mxu0
  %v2108 = vadd.f32 %v185, %v2105
  %v2109 = vxor.u32 %v2108, 2147483648
  %v2110 = vmul.f32 %v2109, 1.442695
  %v2111 = vpow.pop %v2110
  %v2112 = vadd.f32 %v2111, 1.0
  %v2113 = vrcp.pop %v2112
  %v2114 = vmul.f32 1.0, %v2113
  %v2115 = vtanh.pop %v2108
  %v2116 = vmul.f32 %v2114, %v1818
  %2118 = vrot.lane.b32.xlu0 %v2115, 64
  %v2119 = vpop.permute.xlu0 %2118
  %v2121 = vmul.f32 %v2114, %v2119
  %2123 = vrot.lane.b32.xlu0 %v2121, 32
  %v2124 = vpop.permute.xlu0 %2123
  %v2126 = vadd.f32 %v2116, %v2124
  %v2127 = vtanh.pop %v2126
  %2129 = vrot.lane.b32.xlu0 %v2127, 64
  %v2130 = vpop.permute.xlu0 %2129
  %v2132 = vmul.f32 %v2114, %v2130
  %2134 = vrot.lane.b32.xlu0 %v2132, 32
  %v2135 = vpop.permute.xlu0 %2134
  %2137 = vrot.lane.b32.xlu0 %v1929, 64
  %v2138 = vpop.permute.xlu0 %2137
  %v2140 = vsel %vm63, %v2135, %v2138
  %v2142 = vsel %vm296, %v2140, 0
  %2144 = vmatprep.subr.mxu0 0.0
  %2145 = vmatpush1.msra.mxu0 %v20
  %2146 = vmatprep.subr.mxu0 0.0
  %2147 = vmatpush1.msra.mxu0 %v21
  %2148 = vmatprep.subr.mxu0 0.0
  %2149 = vmatpush1.msra.mxu0 %v22
  %2150 = vmatprep.subr.mxu0 0.0
  %2151 = vmatpush1.msra.mxu0 %v23
  %2152 = vmatprep.subr.mxu0 0.0
  %2153 = vmatpush1.msra.mxu0 %v24
  %2154 = vmatprep.subr.mxu0 0.0
  %2155 = vmatpush1.msra.mxu0 %v25
  %2156 = vmatprep.subr.mxu0 0.0
  %2157 = vmatpush1.msra.mxu0 %v26
  %2158 = vmatprep.subr.mxu0 0.0
  %2159 = vmatpush1.msra.mxu0 %v27
  %2160 = vmatprep.subr.mxu0 0.0
  %2161 = vmatpush1.msra.mxu0 0.0
  %2162 = vmatprep.subr.mxu0 0.0
  %2163 = vmatpush1.msra.mxu0 0.0
  %2164 = vmatprep.subr.mxu0 0.0
  %2165 = vmatpush1.msra.mxu0 0.0
  %2166 = vmatprep.subr.mxu0 0.0
  %2167 = vmatpush1.msra.mxu0 0.0
  %2168 = vmatprep.subr.mxu0 0.0
  %2169 = vmatpush1.msra.mxu0 0.0
  %2170 = vmatprep.subr.mxu0 0.0
  %2171 = vmatpush1.msra.mxu0 0.0
  %2172 = vmatprep.subr.mxu0 0.0
  %2173 = vmatpush1.msra.mxu0 0.0
  %2174 = vmatprep.subr.mxu0 0.0
  %2175 = vmatpush1.msra.mxu0 0.0
  %2176 = vmatprep.subr.mxu0 0.0
  %2177 = vmatpush1.msra.mxu0 0.0
  %2178 = vmatprep.subr.mxu0 0.0
  %2179 = vmatpush1.msra.mxu0 0.0
  %2180 = vmatprep.subr.mxu0 0.0
  %2181 = vmatpush1.msra.mxu0 0.0
  %2182 = vmatprep.subr.mxu0 0.0
  %2183 = vmatpush1.msra.mxu0 0.0
  %2184 = vmatprep.subr.mxu0 0.0
  %2185 = vmatpush1.msra.mxu0 0.0
  %2186 = vmatprep.subr.mxu0 0.0
  %2187 = vmatpush1.msra.mxu0 0.0
  %2188 = vmatprep.subr.mxu0 0.0
  %2189 = vmatpush1.msra.mxu0 0.0
  %2190 = vmatprep.subr.mxu0 0.0
  %2191 = vmatpush1.msra.mxu0 0.0
  %2192 = vmatprep.subr.mxu0 0.0
  %2193 = vmatpush1.msra.mxu0 0.0
  %2194 = vmatprep.subr.mxu0 0.0
  %2195 = vmatpush1.msra.mxu0 0.0
  %2196 = vmatprep.subr.mxu0 0.0
  %2197 = vmatpush1.msra.mxu0 0.0
  %2198 = vmatprep.subr.mxu0 0.0
  %2199 = vmatpush1.msra.mxu0 0.0
  %2200 = vmatprep.subr.mxu0 0.0
  %2201 = vmatpush1.msra.mxu0 0.0
  %2202 = vmatprep.subr.mxu0 0.0
  %2203 = vmatpush1.msra.mxu0 0.0
  %2204 = vmatprep.subr.mxu0 0.0
  %2205 = vmatpush1.msra.mxu0 0.0
  %2206 = vmatprep.subr.mxu0 0.0
  %2207 = vmatpush1.msra.mxu0 0.0
  %2208 = vmatprep.mubr.f32.mxu0 0.0
  %2209 = vmatmul.mubr.f32.gmra.mrb[0].mxu0 %v2142
  %v2210 = vpop.f32.mrb[0].mxu0
  %v2211 = vadd.f32 %v32, %v2210
  %v2212 = vpop.f32.mrb[0].mxu0
  %2213 = vdwg.mxu0
  %v2214 = vxor.u32 %v2211, 2147483648
  %v2215 = vmul.f32 %v2214, 1.442695
  %v2216 = vpow.pop %v2215
  %v2217 = vadd.f32 %v2216, 1.0
  %v2218 = vrcp.pop %v2217
  %v2219 = vmul.f32 1.0, %v2218
  %v2220 = vtanh.pop %v2211
  %v2221 = vmul.f32 %v2219, %v1923
  %2223 = vrot.lane.b32.xlu0 %v2220, 64
  %v2224 = vpop.permute.xlu0 %2223
  %v2226 = vmul.f32 %v2219, %v2224
  %2228 = vrot.lane.b32.xlu0 %v2226, 32
  %v2229 = vpop.permute.xlu0 %2228
  %v2231 = vadd.f32 %v2221, %v2229
  %v2232 = vtanh.pop %v2231
  %2234 = vrot.lane.b32.xlu0 %v2232, 64
  %v2235 = vpop.permute.xlu0 %2234
  %v2237 = vmul.f32 %v2219, %v2235
  %2239 = vrot.lane.b32.xlu0 %v2237, 32
  %v2240 = vpop.permute.xlu0 %2239
  %2243 = vrot.lane.b32.xlu0 %v2035, 64
  %v2244 = vpop.permute.xlu0 %2243
  %v2246 = vsel %vm63, %v2240, %v2244
  %v2248 = vsel %vm296, %v2246, 0
  %2250 = vmatprep.subr.mxu0 0.0
  %2251 = vmatpush1.msra.mxu0 %v33
  %2252 = vmatprep.subr.mxu0 0.0
  %2253 = vmatpush1.msra.mxu0 %v34
  %2254 = vmatprep.subr.mxu0 0.0
  %2255 = vmatpush1.msra.mxu0 %v35
  %2256 = vmatprep.subr.mxu0 0.0
  %2257 = vmatpush1.msra.mxu0 %v36
  %2258 = vmatprep.subr.mxu0 0.0
  %2259 = vmatpush1.msra.mxu0 %v37
  %2260 = vmatprep.subr.mxu0 0.0
  %2261 = vmatpush1.msra.mxu0 %v38
  %2262 = vmatprep.subr.mxu0 0.0
  %2263 = vmatpush1.msra.mxu0 %v39
  %2264 = vmatprep.subr.mxu0 0.0
  %2265 = vmatpush1.msra.mxu0 %v40
  %2266 = vmatprep.subr.mxu0 0.0
  %2267 = vmatpush1.msra.mxu0 0.0
  %2268 = vmatprep.subr.mxu0 0.0
  %2269 = vmatpush1.msra.mxu0 0.0
  %2270 = vmatprep.subr.mxu0 0.0
  %2271 = vmatpush1.msra.mxu0 0.0
  %2272 = vmatprep.subr.mxu0 0.0
  %2273 = vmatpush1.msra.mxu0 0.0
  %2274 = vmatprep.subr.mxu0 0.0
  %2275 = vmatpush1.msra.mxu0 0.0
  %2276 = vmatprep.subr.mxu0 0.0
  %2277 = vmatpush1.msra.mxu0 0.0
  %2278 = vmatprep.subr.mxu0 0.0
  %2279 = vmatpush1.msra.mxu0 0.0
  %2280 = vmatprep.subr.mxu0 0.0
  %2281 = vmatpush1.msra.mxu0 0.0
  %2282 = vmatprep.subr.mxu0 0.0
  %2283 = vmatpush1.msra.mxu0 0.0
  %2284 = vmatprep.subr.mxu0 0.0
  %2285 = vmatpush1.msra.mxu0 0.0
  %2286 = vmatprep.subr.mxu0 0.0
  %2287 = vmatpush1.msra.mxu0 0.0
  %2288 = vmatprep.subr.mxu0 0.0
  %2289 = vmatpush1.msra.mxu0 0.0
  %2290 = vmatprep.subr.mxu0 0.0
  %2291 = vmatpush1.msra.mxu0 0.0
  %2292 = vmatprep.subr.mxu0 0.0
  %2293 = vmatpush1.msra.mxu0 0.0
  %2294 = vmatprep.subr.mxu0 0.0
  %2295 = vmatpush1.msra.mxu0 0.0
  %2296 = vmatprep.subr.mxu0 0.0
  %2297 = vmatpush1.msra.mxu0 0.0
  %2298 = vmatprep.subr.mxu0 0.0
  %2299 = vmatpush1.msra.mxu0 0.0
  %2300 = vmatprep.subr.mxu0 0.0
  %2301 = vmatpush1.msra.mxu0 0.0
  %2302 = vmatprep.subr.mxu0 0.0
  %2303 = vmatpush1.msra.mxu0 0.0
  %2304 = vmatprep.subr.mxu0 0.0
  %2305 = vmatpush1.msra.mxu0 0.0
  %2306 = vmatprep.subr.mxu0 0.0
  %2307 = vmatpush1.msra.mxu0 0.0
  %2308 = vmatprep.subr.mxu0 0.0
  %2309 = vmatpush1.msra.mxu0 0.0
  %2310 = vmatprep.subr.mxu0 0.0
  %2311 = vmatpush1.msra.mxu0 0.0
  %2312 = vmatprep.subr.mxu0 0.0
  %2313 = vmatpush1.msra.mxu0 0.0
  %2314 = vmatprep.mubr.f32.mxu0 0.0
  %2315 = vmatmul.mubr.f32.gmra.mrb[0].mxu0 %v2248
  %v2316 = vpop.f32.mrb[0].mxu0
  %v2317 = vadd.f32 %v45, %v2316
  %v2318 = vpop.f32.mrb[0].mxu0
  %2319 = vdwg.mxu0
  %v2320 = vxor.u32 %v2317, 2147483648
  %v2321 = vmul.f32 %v2320, 1.442695
  %v2322 = vpow.pop %v2321
  %v2323 = vadd.f32 %v2322, 1.0
  %v2324 = vrcp.pop %v2323
  %v2325 = vmul.f32 1.0, %v2324
  %v2326 = vtanh.pop %v2317
  %v2327 = vmul.f32 %v2325, %v2029
  %2329 = vrot.lane.b32.xlu0 %v2326, 64
  %v2330 = vpop.permute.xlu0 %2329
  %v2332 = vmul.f32 %v2325, %v2330
  %2334 = vrot.lane.b32.xlu0 %v2332, 32
  %v2335 = vpop.permute.xlu0 %2334
  %v2337 = vadd.f32 %v2327, %v2335
  %v2338 = vtanh.pop %v2337
  %2340 = vrot.lane.b32.xlu0 %v2338, 64
  %v2341 = vpop.permute.xlu0 %2340
  %v2343 = vmul.f32 %v2325, %v2341
  %v2344 = vsel %vm63, %v2135, 0
  %2346 = vmatprep.subr.mxu0 0.0
  %2347 = vmatpush1.msra.mxu0 %v15
  %2348 = vmatprep.subr.mxu0 0.0
  %2349 = vmatpush1.msra.mxu0 %v16
  %2350 = vmatprep.subr.mxu0 0.0
  %2351 = vmatpush1.msra.mxu0 %v17
  %2352 = vmatprep.subr.mxu0 0.0
  %2353 = vmatpush1.msra.mxu0 %v18
  %2354 = vmatprep.subr.mxu0 0.0
  %2355 = vmatpush1.msra.mxu0 0.0
  %2356 = vmatprep.subr.mxu0 0.0
  %2357 = vmatpush1.msra.mxu0 0.0
  %2358 = vmatprep.subr.mxu0 0.0
  %2359 = vmatpush1.msra.mxu0 0.0
  %2360 = vmatprep.subr.mxu0 0.0
  %2361 = vmatpush1.msra.mxu0 0.0
  %2362 = vmatprep.subr.mxu0 0.0
  %2363 = vmatpush1.msra.mxu0 0.0
  %2364 = vmatprep.subr.mxu0 0.0
  %2365 = vmatpush1.msra.mxu0 0.0
  %2366 = vmatprep.subr.mxu0 0.0
  %2367 = vmatpush1.msra.mxu0 0.0
  %2368 = vmatprep.subr.mxu0 0.0
  %2369 = vmatpush1.msra.mxu0 0.0
  %2370 = vmatprep.subr.mxu0 0.0
  %2371 = vmatpush1.msra.mxu0 0.0
  %2372 = vmatprep.subr.mxu0 0.0
  %2373 = vmatpush1.msra.mxu0 0.0
  %2374 = vmatprep.subr.mxu0 0.0
  %2375 = vmatpush1.msra.mxu0 0.0
  %2376 = vmatprep.subr.mxu0 0.0
  %2377 = vmatpush1.msra.mxu0 0.0
  %2378 = vmatprep.subr.mxu0 0.0
  %2379 = vmatpush1.msra.mxu0 0.0
  %2380 = vmatprep.subr.mxu0 0.0
  %2381 = vmatpush1.msra.mxu0 0.0
  %2382 = vmatprep.subr.mxu0 0.0
  %2383 = vmatpush1.msra.mxu0 0.0
  %2384 = vmatprep.subr.mxu0 0.0
  %2385 = vmatpush1.msra.mxu0 0.0
  %2386 = vmatprep.subr.mxu0 0.0
  %2387 = vmatpush1.msra.mxu0 0.0
  %2388 = vmatprep.subr.mxu0 0.0
  %2389 = vmatpush1.msra.mxu0 0.0
  %2390 = vmatprep.subr.mxu0 0.0
  %2391 = vmatpush1.msra.mxu0 0.0
  %2392 = vmatprep.subr.mxu0 0.0
  %2393 = vmatpush1.msra.mxu0 0.0
  %2394 = vmatprep.subr.mxu0 0.0
  %2395 = vmatpush1.msra.mxu0 0.0
  %2396 = vmatprep.subr.mxu0 0.0
  %2397 = vmatpush1.msra.mxu0 0.0
  %2398 = vmatprep.subr.mxu0 0.0
  %2399 = vmatpush1.msra.mxu0 0.0
  %2400 = vmatprep.subr.mxu0 0.0
  %2401 = vmatpush1.msra.mxu0 0.0
  %2402 = vmatprep.subr.mxu0 0.0
  %2403 = vmatpush1.msra.mxu0 0.0
  %2404 = vmatprep.subr.mxu0 0.0
  %2405 = vmatpush1.msra.mxu0 0.0
  %2406 = vmatprep.subr.mxu0 0.0
  %2407 = vmatpush1.msra.mxu0 0.0
  %2408 = vmatprep.subr.mxu0 0.0
  %2409 = vmatpush1.msra.mxu0 0.0
  %2410 = vmatprep.mubr.f32.mxu0 0.0
  %2411 = vmatmul.mubr.f32.gmra.mrb[0].mxu0 %v2344
  %v2412 = vpop.f32.mrb[0].mxu0
  %v2413 = vadd.f32 0.0, %v2412
  %v2414 = vpop.f32.mrb[0].mxu0
  %2415 = vdwg.mxu0
  %v2416 = vadd.f32 %v190, %v2413
  %v2417 = vxor.u32 %v2416, 2147483648
  %v2418 = vmul.f32 %v2417, 1.442695
  %v2419 = vpow.pop %v2418
  %v2420 = vadd.f32 %v2419, 1.0
  %v2421 = vrcp.pop %v2420
  %v2422 = vmul.f32 1.0, %v2421
  %v2423 = vtanh.pop %v2416
  %v2424 = vmul.f32 %v2422, %v2126
  %2426 = vrot.lane.b32.xlu0 %v2423, 64
  %v2427 = vpop.permute.xlu0 %2426
  %v2429 = vmul.f32 %v2422, %v2427
  %2431 = vrot.lane.b32.xlu0 %v2429, 32
  %v2432 = vpop.permute.xlu0 %2431
  %v2434 = vadd.f32 %v2424, %v2432
  %v2435 = vtanh.pop %v2434
  %2437 = vrot.lane.b32.xlu0 %v2435, 64
  %v2438 = vpop.permute.xlu0 %2437
  %v2440 = vmul.f32 %v2422, %v2438
  %2442 = vrot.lane.b32.xlu0 %v2440, 32
  %v2443 = vpop.permute.xlu0 %2442
  %2445 = vrot.lane.b32.xlu0 %v2237, 64
  %v2446 = vpop.permute.xlu0 %2445
  %v2448 = vsel %vm63, %v2443, %v2446
  %v2450 = vsel %vm296, %v2448, 0
  %2452 = vmatprep.subr.mxu0 0.0
  %2453 = vmatpush1.msra.mxu0 %v20
  %2454 = vmatprep.subr.mxu0 0.0
  %2455 = vmatpush1.msra.mxu0 %v21
  %2456 = vmatprep.subr.mxu0 0.0
  %2457 = vmatpush1.msra.mxu0 %v22
  %2458 = vmatprep.subr.mxu0 0.0
  %2459 = vmatpush1.msra.mxu0 %v23
  %2460 = vmatprep.subr.mxu0 0.0
  %2461 = vmatpush1.msra.mxu0 %v24
  %2462 = vmatprep.subr.mxu0 0.0
  %2463 = vmatpush1.msra.mxu0 %v25
  %2464 = vmatprep.subr.mxu0 0.0
  %2465 = vmatpush1.msra.mxu0 %v26
  %2466 = vmatprep.subr.mxu0 0.0
  %2467 = vmatpush1.msra.mxu0 %v27
  %2468 = vmatprep.subr.mxu0 0.0
  %2469 = vmatpush1.msra.mxu0 0.0
  %2470 = vmatprep.subr.mxu0 0.0
  %2471 = vmatpush1.msra.mxu0 0.0
  %2472 = vmatprep.subr.mxu0 0.0
  %2473 = vmatpush1.msra.mxu0 0.0
  %2474 = vmatprep.subr.mxu0 0.0
  %2475 = vmatpush1.msra.mxu0 0.0
  %2476 = vmatprep.subr.mxu0 0.0
  %2477 = vmatpush1.msra.mxu0 0.0
  %2478 = vmatprep.subr.mxu0 0.0
  %2479 = vmatpush1.msra.mxu0 0.0
  %2480 = vmatprep.subr.mxu0 0.0
  %2481 = vmatpush1.msra.mxu0 0.0
  %2482 = vmatprep.subr.mxu0 0.0
  %2483 = vmatpush1.msra.mxu0 0.0
  %2484 = vmatprep.subr.mxu0 0.0
  %2485 = vmatpush1.msra.mxu0 0.0
  %2486 = vmatprep.subr.mxu0 0.0
  %2487 = vmatpush1.msra.mxu0 0.0
  %2488 = vmatprep.subr.mxu0 0.0
  %2489 = vmatpush1.msra.mxu0 0.0
  %2490 = vmatprep.subr.mxu0 0.0
  %2491 = vmatpush1.msra.mxu0 0.0
  %2492 = vmatprep.subr.mxu0 0.0
  %2493 = vmatpush1.msra.mxu0 0.0
  %2494 = vmatprep.subr.mxu0 0.0
  %2495 = vmatpush1.msra.mxu0 0.0
  %2496 = vmatprep.subr.mxu0 0.0
  %2497 = vmatpush1.msra.mxu0 0.0
  %2498 = vmatprep.subr.mxu0 0.0
  %2499 = vmatpush1.msra.mxu0 0.0
  %2500 = vmatprep.subr.mxu0 0.0
  %2501 = vmatpush1.msra.mxu0 0.0
  %2502 = vmatprep.subr.mxu0 0.0
  %2503 = vmatpush1.msra.mxu0 0.0
  %2504 = vmatprep.subr.mxu0 0.0
  %2505 = vmatpush1.msra.mxu0 0.0
  %2506 = vmatprep.subr.mxu0 0.0
  %2507 = vmatpush1.msra.mxu0 0.0
  %2508 = vmatprep.subr.mxu0 0.0
  %2509 = vmatpush1.msra.mxu0 0.0
  %2510 = vmatprep.subr.mxu0 0.0
  %2511 = vmatpush1.msra.mxu0 0.0
  %2512 = vmatprep.subr.mxu0 0.0
  %2513 = vmatpush1.msra.mxu0 0.0
  %2514 = vmatprep.subr.mxu0 0.0
  %2515 = vmatpush1.msra.mxu0 0.0
  %2516 = vmatprep.mubr.f32.mxu0 0.0
  %2517 = vmatmul.mubr.f32.gmra.mrb[0].mxu0 %v2450
  %v2518 = vpop.f32.mrb[0].mxu0
  %v2519 = vadd.f32 %v32, %v2518
  %v2520 = vpop.f32.mrb[0].mxu0
  %2521 = vdwg.mxu0
  %v2522 = vxor.u32 %v2519, 2147483648
  %v2523 = vmul.f32 %v2522, 1.442695
  %v2524 = vpow.pop %v2523
  %v2525 = vadd.f32 %v2524, 1.0
  %v2526 = vrcp.pop %v2525
  %v2527 = vmul.f32 1.0, %v2526
  %v2528 = vtanh.pop %v2519
  %v2529 = vmul.f32 %v2527, %v2231
  %2531 = vrot.lane.b32.xlu0 %v2528, 64
  %v2532 = vpop.permute.xlu0 %2531
  %v2534 = vmul.f32 %v2527, %v2532
  %2536 = vrot.lane.b32.xlu0 %v2534, 32
  %v2537 = vpop.permute.xlu0 %2536
  %v2539 = vadd.f32 %v2529, %v2537
  %v2540 = vtanh.pop %v2539
  %2542 = vrot.lane.b32.xlu0 %v2540, 64
  %v2543 = vpop.permute.xlu0 %2542
  %v2545 = vmul.f32 %v2527, %v2543
  %2547 = vrot.lane.b32.xlu0 %v2545, 32
  %v2548 = vpop.permute.xlu0 %2547
  %2551 = vrot.lane.b32.xlu0 %v2343, 64
  %v2552 = vpop.permute.xlu0 %2551
  %v2554 = vsel %vm63, %v2548, %v2552
  %v2556 = vsel %vm296, %v2554, 0
  %2558 = vmatprep.subr.mxu0 0.0
  %2559 = vmatpush1.msra.mxu0 %v33
  %2560 = vmatprep.subr.mxu0 0.0
  %2561 = vmatpush1.msra.mxu0 %v34
  %2562 = vmatprep.subr.mxu0 0.0
  %2563 = vmatpush1.msra.mxu0 %v35
  %2564 = vmatprep.subr.mxu0 0.0
  %2565 = vmatpush1.msra.mxu0 %v36
  %2566 = vmatprep.subr.mxu0 0.0
  %2567 = vmatpush1.msra.mxu0 %v37
  %2568 = vmatprep.subr.mxu0 0.0
  %2569 = vmatpush1.msra.mxu0 %v38
  %2570 = vmatprep.subr.mxu0 0.0
  %2571 = vmatpush1.msra.mxu0 %v39
  %2572 = vmatprep.subr.mxu0 0.0
  %2573 = vmatpush1.msra.mxu0 %v40
  %2574 = vmatprep.subr.mxu0 0.0
  %2575 = vmatpush1.msra.mxu0 0.0
  %2576 = vmatprep.subr.mxu0 0.0
  %2577 = vmatpush1.msra.mxu0 0.0
  %2578 = vmatprep.subr.mxu0 0.0
  %2579 = vmatpush1.msra.mxu0 0.0
  %2580 = vmatprep.subr.mxu0 0.0
  %2581 = vmatpush1.msra.mxu0 0.0
  %2582 = vmatprep.subr.mxu0 0.0
  %2583 = vmatpush1.msra.mxu0 0.0
  %2584 = vmatprep.subr.mxu0 0.0
  %2585 = vmatpush1.msra.mxu0 0.0
  %2586 = vmatprep.subr.mxu0 0.0
  %2587 = vmatpush1.msra.mxu0 0.0
  %2588 = vmatprep.subr.mxu0 0.0
  %2589 = vmatpush1.msra.mxu0 0.0
  %2590 = vmatprep.subr.mxu0 0.0
  %2591 = vmatpush1.msra.mxu0 0.0
  %2592 = vmatprep.subr.mxu0 0.0
  %2593 = vmatpush1.msra.mxu0 0.0
  %2594 = vmatprep.subr.mxu0 0.0
  %2595 = vmatpush1.msra.mxu0 0.0
  %2596 = vmatprep.subr.mxu0 0.0
  %2597 = vmatpush1.msra.mxu0 0.0
  %2598 = vmatprep.subr.mxu0 0.0
  %2599 = vmatpush1.msra.mxu0 0.0
  %2600 = vmatprep.subr.mxu0 0.0
  %2601 = vmatpush1.msra.mxu0 0.0
  %2602 = vmatprep.subr.mxu0 0.0
  %2603 = vmatpush1.msra.mxu0 0.0
  %2604 = vmatprep.subr.mxu0 0.0
  %2605 = vmatpush1.msra.mxu0 0.0
  %2606 = vmatprep.subr.mxu0 0.0
  %2607 = vmatpush1.msra.mxu0 0.0
  %2608 = vmatprep.subr.mxu0 0.0
  %2609 = vmatpush1.msra.mxu0 0.0
  %2610 = vmatprep.subr.mxu0 0.0
  %2611 = vmatpush1.msra.mxu0 0.0
  %2612 = vmatprep.subr.mxu0 0.0
  %2613 = vmatpush1.msra.mxu0 0.0
  %2614 = vmatprep.subr.mxu0 0.0
  %2615 = vmatpush1.msra.mxu0 0.0
  %2616 = vmatprep.subr.mxu0 0.0
  %2617 = vmatpush1.msra.mxu0 0.0
  %2618 = vmatprep.subr.mxu0 0.0
  %2619 = vmatpush1.msra.mxu0 0.0
  %2620 = vmatprep.subr.mxu0 0.0
  %2621 = vmatpush1.msra.mxu0 0.0
  %2622 = vmatprep.mubr.f32.mxu0 0.0
  %2623 = vmatmul.mubr.f32.gmra.mrb[0].mxu0 %v2556
  %v2624 = vpop.f32.mrb[0].mxu0
  %v2625 = vadd.f32 %v45, %v2624
  %v2626 = vpop.f32.mrb[0].mxu0
  %2627 = vdwg.mxu0
  %v2628 = vxor.u32 %v2625, 2147483648
  %v2629 = vmul.f32 %v2628, 1.442695
  %v2630 = vpow.pop %v2629
  %v2631 = vadd.f32 %v2630, 1.0
  %v2632 = vrcp.pop %v2631
  %v2633 = vmul.f32 1.0, %v2632
  %v2634 = vtanh.pop %v2625
  %v2635 = vmul.f32 %v2633, %v2337
  %2637 = vrot.lane.b32.xlu0 %v2634, 64
  %v2638 = vpop.permute.xlu0 %2637
  %v2640 = vmul.f32 %v2633, %v2638
  %2642 = vrot.lane.b32.xlu0 %v2640, 32
  %v2643 = vpop.permute.xlu0 %2642
  %v2645 = vadd.f32 %v2635, %v2643
  %v2646 = vtanh.pop %v2645
  %2648 = vrot.lane.b32.xlu0 %v2646, 64
  %v2649 = vpop.permute.xlu0 %2648
  %v2651 = vmul.f32 %v2633, %v2649
  %v2652 = vlaneseq
  %v2653 = vshrl.u32 %v2652, 7
  %v2654 = vsub.s32 0, %v2653
  %v2655 = vrot.slane %v50, %v2654
  %2657 = vrot.lane.b32.xlu0 %v2651, 32
  %v2658 = vpop.permute.xlu0 %2657
  %v2659 = vsel %vm63, %v2658, 0
  %2661 = vmatprep.subr.mxu0 0.0
  %2662 = vmatpush1.msra.mxu0 %v46
  %2663 = vmatprep.subr.mxu0 0.0
  %2664 = vmatpush1.msra.mxu0 %v47
  %2665 = vmatprep.subr.mxu0 0.0
  %2666 = vmatpush1.msra.mxu0 %v48
  %2667 = vmatprep.subr.mxu0 0.0
  %2668 = vmatpush1.msra.mxu0 %v49
  %2669 = vmatprep.subr.mxu0 0.0
  %2670 = vmatpush1.msra.mxu0 0.0
  %2671 = vmatprep.subr.mxu0 0.0
  %2672 = vmatpush1.msra.mxu0 0.0
  %2673 = vmatprep.subr.mxu0 0.0
  %2674 = vmatpush1.msra.mxu0 0.0
  %2675 = vmatprep.subr.mxu0 0.0
  %2676 = vmatpush1.msra.mxu0 0.0
  %2677 = vmatprep.subr.mxu0 0.0
  %2678 = vmatpush1.msra.mxu0 0.0
  %2679 = vmatprep.subr.mxu0 0.0
  %2680 = vmatpush1.msra.mxu0 0.0
  %2681 = vmatprep.subr.mxu0 0.0
  %2682 = vmatpush1.msra.mxu0 0.0
  %2683 = vmatprep.subr.mxu0 0.0
  %2684 = vmatpush1.msra.mxu0 0.0
  %2685 = vmatprep.subr.mxu0 0.0
  %2686 = vmatpush1.msra.mxu0 0.0
  %2687 = vmatprep.subr.mxu0 0.0
  %2688 = vmatpush1.msra.mxu0 0.0
  %2689 = vmatprep.subr.mxu0 0.0
  %2690 = vmatpush1.msra.mxu0 0.0
  %2691 = vmatprep.subr.mxu0 0.0
  %2692 = vmatpush1.msra.mxu0 0.0
  %2693 = vmatprep.subr.mxu0 0.0
  %2694 = vmatpush1.msra.mxu0 0.0
  %2695 = vmatprep.subr.mxu0 0.0
  %2696 = vmatpush1.msra.mxu0 0.0
  %2697 = vmatprep.subr.mxu0 0.0
  %2698 = vmatpush1.msra.mxu0 0.0
  %2699 = vmatprep.subr.mxu0 0.0
  %2700 = vmatpush1.msra.mxu0 0.0
  %2701 = vmatprep.subr.mxu0 0.0
  %2702 = vmatpush1.msra.mxu0 0.0
  %2703 = vmatprep.subr.mxu0 0.0
  %2704 = vmatpush1.msra.mxu0 0.0
  %2705 = vmatprep.subr.mxu0 0.0
  %2706 = vmatpush1.msra.mxu0 0.0
  %2707 = vmatprep.subr.mxu0 0.0
  %2708 = vmatpush1.msra.mxu0 0.0
  %2709 = vmatprep.subr.mxu0 0.0
  %2710 = vmatpush1.msra.mxu0 0.0
  %2711 = vmatprep.subr.mxu0 0.0
  %2712 = vmatpush1.msra.mxu0 0.0
  %2713 = vmatprep.subr.mxu0 0.0
  %2714 = vmatpush1.msra.mxu0 0.0
  %2715 = vmatprep.subr.mxu0 0.0
  %2716 = vmatpush1.msra.mxu0 0.0
  %2717 = vmatprep.subr.mxu0 0.0
  %2718 = vmatpush1.msra.mxu0 0.0
  %2719 = vmatprep.subr.mxu0 0.0
  %2720 = vmatpush1.msra.mxu0 0.0
  %2721 = vmatprep.subr.mxu0 0.0
  %2722 = vmatpush1.msra.mxu0 0.0
  %2723 = vmatprep.subr.mxu0 0.0
  %2724 = vmatpush1.msra.mxu0 0.0
  %2725 = vmatprep.mubr.f32.mxu0 0.0
  %2726 = vmatmul.mubr.f32.gmra.mrb[0].mxu0 %v2659
  %v2727 = vpop.f32.mrb[0].mxu0
  %v2728 = vadd.f32 %v2655, %v2727
  %v2729 = vpop.f32.mrb[0].mxu0
  %2730 = vdwg.mxu0
  %v2731 = vmul.f32 %v2728, %v2728
  %2732 = vadd.xlane.f32.xlu0 %v2731
  %v2733 = vpop.xlane.xlu0 %2732
  %v2734 = vadd.f32 %v2733, 1e-12
  %v2735 = vrsqrt.pop %v2734
  %v2736 = vmul.f32 %v2728, %v2735
  %2737 = vst [vmem:[%s2] sm:$0xff] %v2736
  // Predicated region
  $region10: #{speech_embedder_forward.1} parent=0 // pred_check
    _
  $region11: #{speech_embedder_forward.1} parent=0 // pred_check_branch
    %2739 = sbr.rel (0) target = $region13
  $region12: #{speech_embedder_forward.1} parent=0 // pred_region
    _
  $region13: #{speech_embedder_forward.1} parent=0 // pred_fallthru
    _
  // Predicated region
  $region14: #{speech_embedder_forward.1} parent=0 // pred_check
    _
  $region15: #{speech_embedder_forward.1} parent=0 // pred_check_branch
    %2741 = sbr.rel (0) target = $region17
  $region16: #{speech_embedder_forward.1} parent=0 // pred_region
    _
  $region17: #{speech_embedder_forward.1} parent=0 // pred_fallthru
    _

</llo_original>
